<compile_context>
chip_gen: v7x
topology: tpu7x:2x2x1
jax: 0.10.0
libtpu: 0.0.40
codegen_flags: <defaults>
</compile_context>

<pallas_src>
import jax
import jax.numpy as jnp
from jax.experimental import pallas as pl
from jax.experimental.pallas import tpu as pltpu

LN_EPS = 1e-5  # nn.LayerNorm default eps


# ----------------------------------------------------------------------------
# Host-side helpers (match the PyTorch module's construction)
# ----------------------------------------------------------------------------
def compute_rope_angles(head_dim, theta_base, context_length):
    """JAX port of the PyTorch compute_rope_angles helper."""
    freqs = theta_base ** (
        -2.0 * (jnp.arange(0, head_dim // 2, dtype=jnp.float32) / head_dim)
    )
    positions = jnp.arange(context_length, dtype=jnp.float32)[:, None]
    angles = positions * freqs[None, :]
    angles = jnp.concatenate([angles, angles], axis=1)  # (context_length, head_dim)
    return jnp.cos(angles), jnp.sin(angles)


def init_layer_params(key, emb_dim, ff_mult):
    """Deterministic synthetic init for one transformer block (f32, (in,out) layout)."""
    ks = jax.random.split(key, 6)
    scale = 0.02
    d_ff = emb_dim * ff_mult
    return {
        "ln1_g": jnp.ones((1, emb_dim), jnp.float32),
        "ln1_b": jnp.zeros((1, emb_dim), jnp.float32),
        "wq": scale * jax.random.normal(ks[0], (emb_dim, emb_dim), jnp.float32),
        "wk": scale * jax.random.normal(ks[1], (emb_dim, emb_dim), jnp.float32),
        "wv": scale * jax.random.normal(ks[2], (emb_dim, emb_dim), jnp.float32),
        "wo": scale * jax.random.normal(ks[3], (emb_dim, emb_dim), jnp.float32),
        "ln2_g": jnp.ones((1, emb_dim), jnp.float32),
        "ln2_b": jnp.zeros((1, emb_dim), jnp.float32),
        "w_in": scale * jax.random.normal(ks[4], (emb_dim, d_ff), jnp.float32),
        "b_in": jnp.zeros((1, d_ff), jnp.float32),
        "w_out": scale * jax.random.normal(ks[5], (d_ff, emb_dim), jnp.float32),
        "b_out": jnp.zeros((1, emb_dim), jnp.float32),
    }


def pack_stack(layer_params, n_heads):
    """Stack per-layer params with a leading L axis.

    * QKV weights are packed per-head and transposed to (5H, hd, D) bf16:
      per head h the 5 hd-wide blocks are [Wq*s, rot(Wq)*s, Wk, rot(Wk), Wv],
      where rot() folds the RoPE rotate-half into the weight columns and
      s = 1/sqrt(hd) folds the attention scale into Q.
    * Wo is reshaped to per-head (H, hd, D) bf16.
    * The six small vectors are coalesced into one (8, max(D, Dff)) f32 slab.
    """
    D = layer_params[0]["wq"].shape[0]
    Dff = layer_params[0]["w_in"].shape[1]
    H = n_heads
    hd = D // H
    W = max(D, Dff)
    scale = 1.0 / (hd ** 0.5)

    def rot_cols(w):
        # rotate-half applied to the output columns of w, per head.
        w3 = w.reshape(D, H, hd)
        rot = jnp.concatenate([-w3[..., hd // 2:], w3[..., : hd // 2]], axis=-1)
        return rot.reshape(D, D)

    def per_head_t(w):
        # (D, D) -> (H, hd, D): head-h output columns, transposed so the kernel
        # contracts over the last (D) axis.
        return jnp.transpose(w.reshape(D, H, hd), (1, 2, 0))

    w_qkv, w_o, w_in, w_out, vecs = [], [], [], [], []
    for p in layer_params:
        wq_s = p["wq"] * scale  # fold 1/sqrt(hd) into Q (and its rotated copy)
        comps = [wq_s, rot_cols(wq_s), p["wk"], rot_cols(p["wk"]), p["wv"]]
        w_qkv.append(
            jnp.concatenate([per_head_t(c) for c in comps], axis=0).astype(jnp.bfloat16)
        )                                                          # (5H, hd, D)
        w_o.append(p["wo"].reshape(H, hd, D).astype(jnp.bfloat16))  # (H, hd, D)
        w_in.append(p["w_in"].astype(jnp.bfloat16))                 # (D, Dff)
        w_out.append(p["w_out"].astype(jnp.bfloat16))               # (Dff, D)

        v = jnp.zeros((8, W), jnp.float32)
        v = v.at[0, :D].set(p["ln1_g"][0]).at[1, :D].set(p["ln1_b"][0])
        v = v.at[2, :D].set(p["ln2_g"][0]).at[3, :D].set(p["ln2_b"][0])
        v = v.at[4, :D].set(p["b_out"][0]).at[5, :Dff].set(p["b_in"][0])
        vecs.append(v)                                              # (8, W)

    return {
        "w_qkv": jnp.stack(w_qkv, axis=0),   # (L, 5H, hd, D) bf16
        "w_o": jnp.stack(w_o, axis=0),       # (L, H, hd, D)  bf16
        "w_in": jnp.stack(w_in, axis=0),     # (L, D, Dff)    bf16
        "w_out": jnp.stack(w_out, axis=0),   # (L, Dff, D)    bf16
        "vecs": jnp.stack(vecs, axis=0),     # (L, 8, W)      f32
    }


# ----------------------------------------------------------------------------
# In-kernel math helpers (only guaranteed-lowerable primitives)
# ----------------------------------------------------------------------------
def _erf(x):
    # Abramowitz & Stegun 7.1.26 rational approximation, |error| <= 1.5e-7
    # (effectively exact at f32 working precision).  Uses only exp/mul/add/div.
    a1, a2, a3, a4, a5 = 0.254829592, -0.284496736, 1.421413741, -1.453152027, 1.061405429
    p = 0.3275911
    sign = jnp.where(x >= 0.0, 1.0, -1.0)
    ax = jnp.abs(x)
    t = 1.0 / (1.0 + p * ax)
    poly = ((((a5 * t + a4) * t + a3) * t + a2) * t + a1) * t
    y = 1.0 - poly * jnp.exp(-ax * ax)
    return sign * y


def _gelu_exact(x):
    # Exact (erf-based) GELU, matching PyTorch nn.GELU() default.
    return 0.5 * x * (1.0 + _erf(x * 0.7071067811865476))


# ----------------------------------------------------------------------------
# The fused transformer-stack kernel
# ----------------------------------------------------------------------------
def _stack_kernel(
    x_ref, cos_ref, sin_ref, vec_ref,
    wqkv_ref, wo_ref, win_ref, wout_ref,
    o_ref,
):
    """Grid = (L,).  The (B, S, D) activation is carried in o_ref (same block
    index for every layer => VMEM-resident, written to HBM once).  Per-layer
    weights stream over the single 'arbitrary' layer axis (one pass, not B)."""
    layer = pl.program_id(0)

    @pl.when(layer == 0)
    def _():
        o_ref[...] = x_ref[...]

    B, S, D = x_ref.shape
    H, hd = wo_ref.shape[1], wo_ref.shape[2]
    Dff = win_ref.shape[2]
    n = B * S

    x = o_ref[...]                     # (B, S, D) f32 resident activation
    xf = x.reshape(n, D)               # batch folded into the matmul M dim

    # Coalesced per-layer vectors: one DMA stream instead of six.
    vec = vec_ref[0]                   # (8, max(D, Dff)) f32
    ln1_g, ln1_b = vec[0:1, :D], vec[1:2, :D]
    ln2_g, ln2_b = vec[2:3, :D], vec[3:4, :D]
    b_out, b_in = vec[4:5, :D], vec[5:6, :Dff]

    # ---- LayerNorm 1 (f32) ----
    mu = jnp.mean(xf, axis=-1, keepdims=True)
    var = jnp.mean((xf - mu) ** 2, axis=-1, keepdims=True)
    xn = (xf - mu) * jax.lax.rsqrt(var + LN_EPS) * ln1_g + ln1_b

    # ---- Per-head fused QKV projection (head split comes from weight layout,
    #      no lane slicing / stacking / transposes); bf16 MXU, f32 accumulate.
    xn_h = jnp.broadcast_to(xn.astype(jnp.bfloat16), (H, n, D))

    def proj(j):
        w = wqkv_ref[0, j * H:(j + 1) * H]          # (H, hd, D) bf16
        return jnp.einsum("hnd,hkd->hnk", xn_h, w,
                          preferred_element_type=jnp.float32)      # (H, n, hd)

    qf, qr, kf, kr, vv = proj(0), proj(1), proj(2), proj(3), proj(4)

    # ---- RoPE: pure elementwise (rotate-half folded into the qr/kr weight
    #      columns, 1/sqrt(hd) folded into Q at pack time).
    cos = cos_ref[...]                                 # (S, hd) f32
    sin = sin_ref[...]

    def rope4(a, b):
        return a.reshape(H, B, S, hd) * cos + b.reshape(H, B, S, hd) * sin

    q = rope4(qf, qr)                                  # (H, B, S, hd) f32
    k = rope4(kf, kr)
    v4 = vv.reshape(H, B, S, hd)

    # ---- Causal additive bias generated in-kernel (no HBM/VMEM mask traffic).
    rows = jax.lax.broadcasted_iota(jnp.int32, (S, S), 0)
    cols = jax.lax.broadcasted_iota(jnp.int32, (S, S), 1)
    bias = jnp.where(cols > rows, -1e30, 0.0).astype(jnp.float32)

    wo = wo_ref[0]                                     # (H, hd, D) bf16

    attn_rows = []
    for b in range(B):                                 # static unroll over batch
        qb = q[:, b].astype(jnp.bfloat16)              # (H, S, hd)
        kb = k[:, b].astype(jnp.bfloat16)
        vb = v4[:, b].astype(jnp.bfloat16)

        s = jnp.einsum("hqd,hkd->hqk", qb, kb,
                       preferred_element_type=jnp.float32) + bias  # (H, S, S)
        m = jnp.max(s, axis=-1, keepdims=True)
        p = jnp.exp(s - m)
        wts = p * pl.reciprocal(jnp.sum(p, axis=-1, keepdims=True), approx=True)
        ctx = jnp.einsum("hqk,hkd->hqd", wts.astype(jnp.bfloat16), vb,
                         preferred_element_type=jnp.float32)       # (H, S, hd)

        # Output projection: per-head accumulation into an f32 (S, D) register
        # accumulator — no (H, S, D) temporary, no lane-dim concat of heads.
        acc = jnp.zeros((S, D), jnp.float32)
        for h in range(H):
            acc = acc + jnp.dot(ctx[h].astype(jnp.bfloat16), wo[h],
                                preferred_element_type=jnp.float32)
        attn_rows.append(acc)

    attn = jnp.stack(attn_rows, axis=0)                # (B, S, D)
    x1 = x + attn                                      # residual 1
    x1f = x1.reshape(n, D)

    # ---- LayerNorm 2 + MLP (exact GELU) ----
    mu2 = jnp.mean(x1f, axis=-1, keepdims=True)
    var2 = jnp.mean((x1f - mu2) ** 2, axis=-1, keepdims=True)
    xn2 = (x1f - mu2) * jax.lax.rsqrt(var2 + LN_EPS) * ln2_g + ln2_b

    h_mid = jnp.dot(xn2.astype(jnp.bfloat16), win_ref[0],
                    preferred_element_type=jnp.float32) + b_in     # (n, Dff)
    h_mid = _gelu_exact(h_mid)
    mlp = jnp.dot(h_mid.astype(jnp.bfloat16), wout_ref[0],
                  preferred_element_type=jnp.float32) + b_out      # (n, D)

    o_ref[...] = x1 + mlp.reshape(B, S, D)             # residual 2


def _pick_vmem_limit():
    # ~100 MiB on v5e/v6e (128 MiB physical); conservative fallback otherwise
    # (e.g. v7x has only 64 MiB physical VMEM).
    try:
        cap = pltpu.get_tpu_info().vmem_capacity_bytes
    except Exception:
        cap = 64 * 1024 * 1024
    return int(min(100 * 1024 * 1024, (cap * 3) // 4))


def transformer_stack(x, packed, cos, sin, n_heads):
    """Run the full L-layer stack in a single pallas_call, grid = (L,)."""
    B, S, D = x.shape
    L = packed["w_qkv"].shape[0]
    H = n_heads
    hd = D // H
    Dff = packed["w_in"].shape[-1]
    W = packed["vecs"].shape[-1]

    cos_s = cos[:S].astype(jnp.float32)   # (S, hd)
    sin_s = sin[:S].astype(jnp.float32)

    return pl.pallas_call(
        _stack_kernel,
        out_shape=jax.ShapeDtypeStruct((B, S, D), jnp.float32),
        grid=(L,),
        in_specs=[
            pl.BlockSpec((B, S, D), lambda l: (0, 0, 0)),           # activation in
            pl.BlockSpec((S, hd), lambda l: (0, 0)),                # cos (shared)
            pl.BlockSpec((S, hd), lambda l: (0, 0)),                # sin (shared)
            pl.BlockSpec((1, 8, W), lambda l: (l, 0, 0)),           # coalesced vectors
            pl.BlockSpec((1, 5 * H, hd, D), lambda l: (l, 0, 0, 0)),  # fused QKV(+rot)
            pl.BlockSpec((1, H, hd, D), lambda l: (l, 0, 0, 0)),    # Wo per head
            pl.BlockSpec((1, D, Dff), lambda l: (l, 0, 0)),         # W_in
            pl.BlockSpec((1, Dff, D), lambda l: (l, 0, 0)),         # W_out
        ],
        out_specs=pl.BlockSpec((B, S, D), lambda l: (0, 0, 0)),     # resident activation
        compiler_params=pltpu.CompilerParams(
            dimension_semantics=("arbitrary",),
            vmem_limit_bytes=_pick_vmem_limit(),
        ),
    )(
        x, cos_s, sin_s,
        packed["vecs"], packed["w_qkv"], packed["w_o"],
        packed["w_in"], packed["w_out"],
    )


# ----------------------------------------------------------------------------
# Pure-JAX f32 reference (mirrors the PyTorch module) for self-validation
# ----------------------------------------------------------------------------
def reference_forward(x, layer_params, cos, sin, n_heads):
    B, S, D = x.shape
    H = n_heads
    hd = D // H
    mask = jnp.triu(jnp.ones((S, S), dtype=bool), 1)
    for p in layer_params:
        orig = x
        mu = x.mean(-1, keepdims=True)
        var = ((x - mu) ** 2).mean(-1, keepdims=True)
        xn = (x - mu) / jnp.sqrt(var + LN_EPS) * p["ln1_g"][0] + p["ln1_b"][0]
        Q, K, V = xn @ p["wq"], xn @ p["wk"], xn @ p["wv"]

        def split(t):
            return t.reshape(B, S, H, hd).transpose(0, 2, 1, 3)

        Qs, Ks, Vs = split(Q), split(K), split(V)

        def rope_ref(t):
            lhs, rhs = t[..., : hd // 2], t[..., hd // 2:]
            rot = jnp.concatenate([-rhs, lhs], axis=-1)
            return t * cos[:S][None, None] + rot * sin[:S][None, None]

        Qs, Ks = rope_ref(Qs), rope_ref(Ks)
        scores = (Qs @ Ks.transpose(0, 1, 3, 2)) / (hd ** 0.5)
        scores = jnp.where(mask, -jnp.inf, scores)
        wts = jax.nn.softmax(scores, axis=-1)
        ctx = (wts @ Vs).transpose(0, 2, 1, 3).reshape(B, S, D)
        x = orig + ctx @ p["wo"]

        orig = x
        mu = x.mean(-1, keepdims=True)
        var = ((x - mu) ** 2).mean(-1, keepdims=True)
        xn = (x - mu) / jnp.sqrt(var + LN_EPS) * p["ln2_g"][0] + p["ln2_b"][0]
        h = jax.nn.gelu(xn @ p["w_in"] + p["b_in"][0], approximate=False)
        x = orig + h @ p["w_out"] + p["b_out"][0]
    return x


if __name__ == "__main__":
    # Small shapes consistent with the module's forward (lane-aligned D).
    B, S, D = 2, 16, 128
    n_heads = 4
    ff_mult = 4
    n_layers = 2
    context_length = S

    key = jax.random.PRNGKey(0)
    key, xk = jax.random.split(key)
    x = jax.random.normal(xk, (B, S, D), dtype=jnp.float32)

    # Shared RoPE tables (as in TransformerStack.__init__)
    cos, sin = compute_rope_angles(D // n_heads, 10000, context_length)

    layer_params = []
    for _ in range(n_layers):
        key, lk = jax.random.split(key)
        layer_params.append(init_layer_params(lk, D, ff_mult))
    packed = pack_stack(layer_params, n_heads)

    out = transformer_stack(x, packed, cos, sin, n_heads)
    out = jax.block_until_ready(out)

    assert out.shape == (B, S, D) and out.dtype == jnp.float32
    assert bool(jnp.all(jnp.isfinite(out)))

    # bf16 MXU operands (f32 accumulation) -> small drift vs the f32 reference.
    ref = reference_forward(x, layer_params, cos, sin, n_heads)
    max_err = float(jnp.max(jnp.abs(out - ref)))
    assert max_err < 5e-2, f"max |out - ref| = {max_err}"

    print("KERNEL_OK")
</pallas_src>

<mosaic_0001>
module attributes {stable_mosaic.version = 11 : i64} {
  func.func @_stack_kernel(%arg0: i32, %arg1: memref<2x16x128xf32, #tpu.memory_space<vmem>>, %arg2: memref<16x32xf32, #tpu.memory_space<vmem>>, %arg3: memref<16x32xf32, #tpu.memory_space<vmem>>, %arg4: memref<1x8x512xf32, #tpu.memory_space<vmem>>, %arg5: memref<1x20x32x128xbf16, #tpu.memory_space<vmem>>, %arg6: memref<1x4x32x128xbf16, #tpu.memory_space<vmem>>, %arg7: memref<1x128x512xbf16, #tpu.memory_space<vmem>>, %arg8: memref<1x512x128xbf16, #tpu.memory_space<vmem>>, %arg9: memref<2x16x128xf32, #tpu.memory_space<vmem>>) attributes {dimension_semantics = [#tpu.dimension_semantics<arbitrary>], iteration_bounds = array<i64: 2>, scalar_prefetch = 0 : i64, scratch_operands = 0 : i64, tpu.core_type = #tpu.core_type<tc>, window_params = [{pipeline_mode = #tpu.pipeline_mode<synchronous>, transform_indices = @transform_0, window_bounds = array<i64: 2, 16, 128>}, {pipeline_mode = #tpu.pipeline_mode<synchronous>, transform_indices = @transform_1, window_bounds = array<i64: 16, 32>}, {pipeline_mode = #tpu.pipeline_mode<synchronous>, transform_indices = @transform_2, window_bounds = array<i64: 16, 32>}, {transform_indices = @transform_3, window_bounds = array<i64: 1, 8, 512>}, {transform_indices = @transform_4, window_bounds = array<i64: 1, 20, 32, 128>}, {transform_indices = @transform_5, window_bounds = array<i64: 1, 4, 32, 128>}, {transform_indices = @transform_6, window_bounds = array<i64: 1, 128, 512>}, {transform_indices = @transform_7, window_bounds = array<i64: 1, 512, 128>}, {pipeline_mode = #tpu.pipeline_mode<synchronous>, transform_indices = @transform_8, window_bounds = array<i64: 2, 16, 128>}]} {
    %c0_i32 = arith.constant 0 : i32
    %0 = arith.cmpi eq, %arg0, %c0_i32 : i32
    %1 = arith.extui %0 : i1 to i32
    %c0_i32_0 = arith.constant 0 : i32
    %2 = arith.cmpi ne, %1, %c0_i32_0 : i32
    scf.if %2 {
      %c0_91 = arith.constant 0 : index
      %c0_92 = arith.constant 0 : index
      %c0_93 = arith.constant 0 : index
      %273 = vector.load %arg1[%c0_91, %c0_92, %c0_93] : memref<2x16x128xf32, #tpu.memory_space<vmem>>, vector<2x16x128xf32>
      %c0_94 = arith.constant 0 : index
      %c0_95 = arith.constant 0 : index
      %c0_96 = arith.constant 0 : index
      %274 = vector.load %arg9[%c0_94, %c0_95, %c0_96] : memref<2x16x128xf32, #tpu.memory_space<vmem>>, vector<2x16x128xf32>
      tpu.vector_store %arg9[%c0_94, %c0_95, %c0_96], %273 {strides = array<i32>} : memref<2x16x128xf32, #tpu.memory_space<vmem>>, vector<2x16x128xf32>,
    } else {
    }
    %c0 = arith.constant 0 : index
    %c0_1 = arith.constant 0 : index
    %c0_2 = arith.constant 0 : index
    %3 = vector.load %arg9[%c0, %c0_1, %c0_2] : memref<2x16x128xf32, #tpu.memory_space<vmem>>, vector<2x16x128xf32>
    %4 = vector.shape_cast %3 : vector<2x16x128xf32> to vector<32x128xf32>
    %c0_3 = arith.constant 0 : index
    %c0_4 = arith.constant 0 : index
    %c0_5 = arith.constant 0 : index
    %5 = vector.load %arg4[%c0_3, %c0_4, %c0_5] : memref<1x8x512xf32, #tpu.memory_space<vmem>>, vector<1x8x512xf32>
    %6 = vector.shape_cast %5 : vector<1x8x512xf32> to vector<8x512xf32>
    %7 = vector.extract_strided_slice %6 {offsets = [0, 0], sizes = [1, 128], strides = [1, 1]} : vector<8x512xf32> to vector<1x128xf32>
    %8 = vector.extract_strided_slice %6 {offsets = [1, 0], sizes = [1, 128], strides = [1, 1]} : vector<8x512xf32> to vector<1x128xf32>
    %9 = vector.extract_strided_slice %6 {offsets = [2, 0], sizes = [1, 128], strides = [1, 1]} : vector<8x512xf32> to vector<1x128xf32>
    %10 = vector.extract_strided_slice %6 {offsets = [3, 0], sizes = [1, 128], strides = [1, 1]} : vector<8x512xf32> to vector<1x128xf32>
    %11 = vector.extract_strided_slice %6 {offsets = [4, 0], sizes = [1, 128], strides = [1, 1]} : vector<8x512xf32> to vector<1x128xf32>
    %12 = vector.extract_strided_slice %6 {offsets = [5, 0], sizes = [1, 512], strides = [1, 1]} : vector<8x512xf32> to vector<1x512xf32>
    %cst = arith.constant dense<0.000000e+00> : vector<32xf32>
    %13 = vector.multi_reduction <add>, %4, %cst [1] : vector<32x128xf32> to vector<32xf32>
    %14 = vector.shape_cast %13 : vector<32xf32> to vector<32x1xf32>
    %cst_6 = arith.constant 1.280000e+02 : f32
    %15 = vector.broadcast %cst_6 : f32 to vector<32x1xf32>
    %16 = arith.divf %14, %15 : vector<32x1xf32>
    %17 = vector.broadcast %16 : vector<32x1xf32> to vector<32x128xf32>
    %18 = arith.subf %4, %17 : vector<32x128xf32>
    %19 = arith.mulf %18, %18 : vector<32x128xf32>
    %cst_7 = arith.constant dense<0.000000e+00> : vector<32xf32>
    %20 = vector.multi_reduction <add>, %19, %cst_7 [1] : vector<32x128xf32> to vector<32xf32>
    %21 = vector.shape_cast %20 : vector<32xf32> to vector<32x1xf32>
    %cst_8 = arith.constant 1.280000e+02 : f32
    %22 = vector.broadcast %cst_8 : f32 to vector<32x1xf32>
    %23 = arith.divf %21, %22 : vector<32x1xf32>
    %24 = vector.broadcast %16 : vector<32x1xf32> to vector<32x128xf32>
    %25 = arith.subf %4, %24 : vector<32x128xf32>
    %cst_9 = arith.constant 9.99999974E-6 : f32
    %26 = vector.broadcast %cst_9 : f32 to vector<32x1xf32>
    %27 = arith.addf %23, %26 : vector<32x1xf32>
    %28 = math.rsqrt %27 : vector<32x1xf32>
    %29 = vector.broadcast %28 : vector<32x1xf32> to vector<32x128xf32>
    %30 = arith.mulf %25, %29 : vector<32x128xf32>
    %31 = vector.broadcast %7 : vector<1x128xf32> to vector<32x128xf32>
    %32 = arith.mulf %30, %31 : vector<32x128xf32>
    %33 = vector.broadcast %8 : vector<1x128xf32> to vector<32x128xf32>
    %34 = arith.addf %32, %33 : vector<32x128xf32>
    %35 = arith.truncf %34 : vector<32x128xf32> to vector<32x128xbf16>
    %36 = vector.shape_cast %35 : vector<32x128xbf16> to vector<1x32x128xbf16>
    %37 = vector.broadcast %36 : vector<1x32x128xbf16> to vector<4x32x128xbf16>
    %c0_10 = arith.constant 0 : index
    %c0_11 = arith.constant 0 : index
    %c0_12 = arith.constant 0 : index
    %c0_13 = arith.constant 0 : index
    %38 = vector.load %arg5[%c0_10, %c0_11, %c0_12, %c0_13] : memref<1x20x32x128xbf16, #tpu.memory_space<vmem>>, vector<1x4x32x128xbf16>
    %39 = vector.shape_cast %38 : vector<1x4x32x128xbf16> to vector<4x32x128xbf16>
    "tpu.trace_start"() <{level = 10 : i32, message = "hnd,hkd->hnk"}> : () -> ()
    %cst_14 = arith.constant dense<0.000000e+00> : vector<4x32x32xf32>
    %40 = tpu.matmul %37, %39, %cst_14 {dimension_numbers = #tpu.dot_dimension_numbers<[2], [2], [1], [1], [0, 0, 0, 1, 1, 1], [0], [0]>} : vector<4x32x128xbf16>, vector<4x32x128xbf16>, vector<4x32x32xf32> -> vector<4x32x32xf32>
    "tpu.trace_stop"() : () -> ()
    %c0_15 = arith.constant 0 : index
    %c4 = arith.constant 4 : index
    %c0_16 = arith.constant 0 : index
    %c0_17 = arith.constant 0 : index
    %41 = vector.load %arg5[%c0_15, %c4, %c0_16, %c0_17] : memref<1x20x32x128xbf16, #tpu.memory_space<vmem>>, vector<1x4x32x128xbf16>
    %42 = vector.shape_cast %41 : vector<1x4x32x128xbf16> to vector<4x32x128xbf16>
    "tpu.trace_start"() <{level = 10 : i32, message = "hnd,hkd->hnk"}> : () -> ()
    %cst_18 = arith.constant dense<0.000000e+00> : vector<4x32x32xf32>
    %43 = tpu.matmul %37, %42, %cst_18 {dimension_numbers = #tpu.dot_dimension_numbers<[2], [2], [1], [1], [0, 0, 0, 1, 1, 1], [0], [0]>} : vector<4x32x128xbf16>, vector<4x32x128xbf16>, vector<4x32x32xf32> -> vector<4x32x32xf32>
    "tpu.trace_stop"() : () -> ()
    %c0_19 = arith.constant 0 : index
    %c8 = arith.constant 8 : index
    %c0_20 = arith.constant 0 : index
    %c0_21 = arith.constant 0 : index
    %44 = vector.load %arg5[%c0_19, %c8, %c0_20, %c0_21] : memref<1x20x32x128xbf16, #tpu.memory_space<vmem>>, vector<1x4x32x128xbf16>
    %45 = vector.shape_cast %44 : vector<1x4x32x128xbf16> to vector<4x32x128xbf16>
    "tpu.trace_start"() <{level = 10 : i32, message = "hnd,hkd->hnk"}> : () -> ()
    %cst_22 = arith.constant dense<0.000000e+00> : vector<4x32x32xf32>
    %46 = tpu.matmul %37, %45, %cst_22 {dimension_numbers = #tpu.dot_dimension_numbers<[2], [2], [1], [1], [0, 0, 0, 1, 1, 1], [0], [0]>} : vector<4x32x128xbf16>, vector<4x32x128xbf16>, vector<4x32x32xf32> -> vector<4x32x32xf32>
    "tpu.trace_stop"() : () -> ()
    %c0_23 = arith.constant 0 : index
    %c12 = arith.constant 12 : index
    %c0_24 = arith.constant 0 : index
    %c0_25 = arith.constant 0 : index
    %47 = vector.load %arg5[%c0_23, %c12, %c0_24, %c0_25] : memref<1x20x32x128xbf16, #tpu.memory_space<vmem>>, vector<1x4x32x128xbf16>
    %48 = vector.shape_cast %47 : vector<1x4x32x128xbf16> to vector<4x32x128xbf16>
    "tpu.trace_start"() <{level = 10 : i32, message = "hnd,hkd->hnk"}> : () -> ()
    %cst_26 = arith.constant dense<0.000000e+00> : vector<4x32x32xf32>
    %49 = tpu.matmul %37, %48, %cst_26 {dimension_numbers = #tpu.dot_dimension_numbers<[2], [2], [1], [1], [0, 0, 0, 1, 1, 1], [0], [0]>} : vector<4x32x128xbf16>, vector<4x32x128xbf16>, vector<4x32x32xf32> -> vector<4x32x32xf32>
    "tpu.trace_stop"() : () -> ()
    %c0_27 = arith.constant 0 : index
    %c16 = arith.constant 16 : index
    %c0_28 = arith.constant 0 : index
    %c0_29 = arith.constant 0 : index
    %50 = vector.load %arg5[%c0_27, %c16, %c0_28, %c0_29] : memref<1x20x32x128xbf16, #tpu.memory_space<vmem>>, vector<1x4x32x128xbf16>
    %51 = vector.shape_cast %50 : vector<1x4x32x128xbf16> to vector<4x32x128xbf16>
    "tpu.trace_start"() <{level = 10 : i32, message = "hnd,hkd->hnk"}> : () -> ()
    %cst_30 = arith.constant dense<0.000000e+00> : vector<4x32x32xf32>
    %52 = tpu.matmul %37, %51, %cst_30 {dimension_numbers = #tpu.dot_dimension_numbers<[2], [2], [1], [1], [0, 0, 0, 1, 1, 1], [0], [0]>} : vector<4x32x128xbf16>, vector<4x32x128xbf16>, vector<4x32x32xf32> -> vector<4x32x32xf32>
    "tpu.trace_stop"() : () -> ()
    %c0_31 = arith.constant 0 : index
    %c0_32 = arith.constant 0 : index
    %53 = vector.load %arg2[%c0_31, %c0_32] : memref<16x32xf32, #tpu.memory_space<vmem>>, vector<16x32xf32>
    %c0_33 = arith.constant 0 : index
    %c0_34 = arith.constant 0 : index
    %54 = vector.load %arg3[%c0_33, %c0_34] : memref<16x32xf32, #tpu.memory_space<vmem>>, vector<16x32xf32>
    %55 = vector.shape_cast %40 : vector<4x32x32xf32> to vector<4x2x16x32xf32>
    %56 = vector.shape_cast %53 : vector<16x32xf32> to vector<1x1x16x32xf32>
    %57 = vector.broadcast %56 : vector<1x1x16x32xf32> to vector<4x2x16x32xf32>
    %58 = arith.mulf %55, %57 : vector<4x2x16x32xf32>
    %59 = vector.shape_cast %43 : vector<4x32x32xf32> to vector<4x2x16x32xf32>
    %60 = vector.shape_cast %54 : vector<16x32xf32> to vector<1x1x16x32xf32>
    %61 = vector.broadcast %60 : vector<1x1x16x32xf32> to vector<4x2x16x32xf32>
    %62 = arith.mulf %59, %61 : vector<4x2x16x32xf32>
    %63 = arith.addf %58, %62 : vector<4x2x16x32xf32>
    %64 = vector.shape_cast %46 : vector<4x32x32xf32> to vector<4x2x16x32xf32>
    %65 = vector.shape_cast %53 : vector<16x32xf32> to vector<1x1x16x32xf32>
    %66 = vector.broadcast %65 : vector<1x1x16x32xf32> to vector<4x2x16x32xf32>
    %67 = arith.mulf %64, %66 : vector<4x2x16x32xf32>
    %68 = vector.shape_cast %49 : vector<4x32x32xf32> to vector<4x2x16x32xf32>
    %69 = vector.shape_cast %54 : vector<16x32xf32> to vector<1x1x16x32xf32>
    %70 = vector.broadcast %69 : vector<1x1x16x32xf32> to vector<4x2x16x32xf32>
    %71 = arith.mulf %68, %70 : vector<4x2x16x32xf32>
    %72 = arith.addf %67, %71 : vector<4x2x16x32xf32>
    %73 = vector.shape_cast %52 : vector<4x32x32xf32> to vector<4x2x16x32xf32>
    %74 = tpu.iota {dimensions = array<i32: 0>} : vector<16x16xi32>
    %75 = tpu.iota {dimensions = array<i32: 1>} : vector<16x16xi32>
    %76 = arith.cmpi sgt, %75, %74 : vector<16x16xi32>
    %cst_35 = arith.constant -1.000000e+30 : f32
    %cst_36 = arith.constant 0.000000e+00 : f32
    %77 = vector.broadcast %cst_35 : f32 to vector<16x16xf32>
    %78 = vector.broadcast %cst_36 : f32 to vector<16x16xf32>
    %79 = arith.select %76, %77, %78 : vector<16x16xi1>, vector<16x16xf32>
    %c0_37 = arith.constant 0 : index
    %c0_38 = arith.constant 0 : index
    %c0_39 = arith.constant 0 : index
    %c0_40 = arith.constant 0 : index
    %80 = vector.load %arg6[%c0_37, %c0_38, %c0_39, %c0_40] : memref<1x4x32x128xbf16, #tpu.memory_space<vmem>>, vector<1x4x32x128xbf16>
    %81 = vector.shape_cast %80 : vector<1x4x32x128xbf16> to vector<4x32x128xbf16>
    %82 = vector.extract_strided_slice %63 {offsets = [0, 0, 0, 0], sizes = [4, 1, 16, 32], strides = [1, 1, 1, 1]} : vector<4x2x16x32xf32> to vector<4x1x16x32xf32>
    %83 = vector.shape_cast %82 : vector<4x1x16x32xf32> to vector<4x16x32xf32>
    %84 = arith.truncf %83 : vector<4x16x32xf32> to vector<4x16x32xbf16>
    %85 = vector.extract_strided_slice %72 {offsets = [0, 0, 0, 0], sizes = [4, 1, 16, 32], strides = [1, 1, 1, 1]} : vector<4x2x16x32xf32> to vector<4x1x16x32xf32>
    %86 = vector.shape_cast %85 : vector<4x1x16x32xf32> to vector<4x16x32xf32>
    %87 = arith.truncf %86 : vector<4x16x32xf32> to vector<4x16x32xbf16>
    %88 = vector.extract_strided_slice %73 {offsets = [0, 0, 0, 0], sizes = [4, 1, 16, 32], strides = [1, 1, 1, 1]} : vector<4x2x16x32xf32> to vector<4x1x16x32xf32>
    %89 = vector.shape_cast %88 : vector<4x1x16x32xf32> to vector<4x16x32xf32>
    %90 = arith.truncf %89 : vector<4x16x32xf32> to vector<4x16x32xbf16>
    "tpu.trace_start"() <{level = 10 : i32, message = "hqd,hkd->hqk"}> : () -> ()
    %cst_41 = arith.constant dense<0.000000e+00> : vector<4x16x16xf32>
    %91 = tpu.matmul %84, %87, %cst_41 {dimension_numbers = #tpu.dot_dimension_numbers<[2], [2], [1], [1], [0, 0, 0, 1, 1, 1], [0], [0]>} : vector<4x16x32xbf16>, vector<4x16x32xbf16>, vector<4x16x16xf32> -> vector<4x16x16xf32>
    "tpu.trace_stop"() : () -> ()
    %92 = vector.shape_cast %79 : vector<16x16xf32> to vector<1x16x16xf32>
    %93 = vector.broadcast %92 : vector<1x16x16xf32> to vector<4x16x16xf32>
    %94 = arith.addf %91, %93 : vector<4x16x16xf32>
    %cst_42 = arith.constant dense<0xFF800000> : vector<4x16xf32>
    %95 = vector.multi_reduction <maximumf>, %94, %cst_42 [2] : vector<4x16x16xf32> to vector<4x16xf32>
    %96 = vector.shape_cast %95 : vector<4x16xf32> to vector<4x16x1xf32>
    %97 = vector.broadcast %96 : vector<4x16x1xf32> to vector<4x16x16xf32>
    %98 = arith.subf %94, %97 : vector<4x16x16xf32>
    %99 = math.exp %98 : vector<4x16x16xf32>
    %cst_43 = arith.constant dense<0.000000e+00> : vector<4x16xf32>
    %100 = vector.multi_reduction <add>, %99, %cst_43 [2] : vector<4x16x16xf32> to vector<4x16xf32>
    %101 = vector.shape_cast %100 : vector<4x16xf32> to vector<4x16x1xf32>
    %102 = tpu.reciprocal %101 {approx = true} : vector<4x16x1xf32> -> vector<4x16x1xf32>
    %103 = vector.broadcast %102 : vector<4x16x1xf32> to vector<4x16x16xf32>
    %104 = arith.mulf %99, %103 : vector<4x16x16xf32>
    %105 = arith.truncf %104 : vector<4x16x16xf32> to vector<4x16x16xbf16>
    "tpu.trace_start"() <{level = 10 : i32, message = "hqk,hkd->hqd"}> : () -> ()
    %cst_44 = arith.constant dense<0.000000e+00> : vector<4x16x32xf32>
    %106 = tpu.matmul %105, %90, %cst_44 {dimension_numbers = #tpu.dot_dimension_numbers<[2], [1], [1], [2], [0, 0, 0, 1, 1, 2], [0], [0]>} : vector<4x16x16xbf16>, vector<4x16x32xbf16>, vector<4x16x32xf32> -> vector<4x16x32xf32>
    %cst_45 = arith.constant 0.000000e+00 : f32
    "tpu.trace_stop"() : () -> ()
    %107 = vector.broadcast %cst_45 : f32 to vector<16x128xf32>
    %108 = vector.extract_strided_slice %106 {offsets = [0, 0, 0], sizes = [1, 16, 32], strides = [1, 1, 1]} : vector<4x16x32xf32> to vector<1x16x32xf32>
    %109 = vector.shape_cast %108 : vector<1x16x32xf32> to vector<16x32xf32>
    %110 = arith.truncf %109 : vector<16x32xf32> to vector<16x32xbf16>
    %111 = vector.extract_strided_slice %81 {offsets = [0, 0, 0], sizes = [1, 32, 128], strides = [1, 1, 1]} : vector<4x32x128xbf16> to vector<1x32x128xbf16>
    %112 = vector.shape_cast %111 : vector<1x32x128xbf16> to vector<32x128xbf16>
    %cst_46 = arith.constant dense<0.000000e+00> : vector<16x128xf32>
    %113 = tpu.matmul %110, %112, %cst_46 {dimension_numbers = #tpu.dot_dimension_numbers<[1], [0], [0], [1], [0, 0, 1, 1], [], []>} : vector<16x32xbf16>, vector<32x128xbf16>, vector<16x128xf32> -> vector<16x128xf32>
    %114 = arith.addf %107, %113 : vector<16x128xf32>
    %115 = vector.extract_strided_slice %106 {offsets = [1, 0, 0], sizes = [1, 16, 32], strides = [1, 1, 1]} : vector<4x16x32xf32> to vector<1x16x32xf32>
    %116 = vector.shape_cast %115 : vector<1x16x32xf32> to vector<16x32xf32>
    %117 = arith.truncf %116 : vector<16x32xf32> to vector<16x32xbf16>
    %118 = vector.extract_strided_slice %81 {offsets = [1, 0, 0], sizes = [1, 32, 128], strides = [1, 1, 1]} : vector<4x32x128xbf16> to vector<1x32x128xbf16>
    %119 = vector.shape_cast %118 : vector<1x32x128xbf16> to vector<32x128xbf16>
    %cst_47 = arith.constant dense<0.000000e+00> : vector<16x128xf32>
    %120 = tpu.matmul %117, %119, %cst_47 {dimension_numbers = #tpu.dot_dimension_numbers<[1], [0], [0], [1], [0, 0, 1, 1], [], []>} : vector<16x32xbf16>, vector<32x128xbf16>, vector<16x128xf32> -> vector<16x128xf32>
    %121 = arith.addf %114, %120 : vector<16x128xf32>
    %122 = vector.extract_strided_slice %106 {offsets = [2, 0, 0], sizes = [1, 16, 32], strides = [1, 1, 1]} : vector<4x16x32xf32> to vector<1x16x32xf32>
    %123 = vector.shape_cast %122 : vector<1x16x32xf32> to vector<16x32xf32>
    %124 = arith.truncf %123 : vector<16x32xf32> to vector<16x32xbf16>
    %125 = vector.extract_strided_slice %81 {offsets = [2, 0, 0], sizes = [1, 32, 128], strides = [1, 1, 1]} : vector<4x32x128xbf16> to vector<1x32x128xbf16>
    %126 = vector.shape_cast %125 : vector<1x32x128xbf16> to vector<32x128xbf16>
    %cst_48 = arith.constant dense<0.000000e+00> : vector<16x128xf32>
    %127 = tpu.matmul %124, %126, %cst_48 {dimension_numbers = #tpu.dot_dimension_numbers<[1], [0], [0], [1], [0, 0, 1, 1], [], []>} : vector<16x32xbf16>, vector<32x128xbf16>, vector<16x128xf32> -> vector<16x128xf32>
    %128 = arith.addf %121, %127 : vector<16x128xf32>
    %129 = vector.extract_strided_slice %106 {offsets = [3, 0, 0], sizes = [1, 16, 32], strides = [1, 1, 1]} : vector<4x16x32xf32> to vector<1x16x32xf32>
    %130 = vector.shape_cast %129 : vector<1x16x32xf32> to vector<16x32xf32>
    %131 = arith.truncf %130 : vector<16x32xf32> to vector<16x32xbf16>
    %132 = vector.extract_strided_slice %81 {offsets = [3, 0, 0], sizes = [1, 32, 128], strides = [1, 1, 1]} : vector<4x32x128xbf16> to vector<1x32x128xbf16>
    %133 = vector.shape_cast %132 : vector<1x32x128xbf16> to vector<32x128xbf16>
    %cst_49 = arith.constant dense<0.000000e+00> : vector<16x128xf32>
    %134 = tpu.matmul %131, %133, %cst_49 {dimension_numbers = #tpu.dot_dimension_numbers<[1], [0], [0], [1], [0, 0, 1, 1], [], []>} : vector<16x32xbf16>, vector<32x128xbf16>, vector<16x128xf32> -> vector<16x128xf32>
    %135 = arith.addf %128, %134 : vector<16x128xf32>
    %136 = vector.extract_strided_slice %63 {offsets = [0, 1, 0, 0], sizes = [4, 1, 16, 32], strides = [1, 1, 1, 1]} : vector<4x2x16x32xf32> to vector<4x1x16x32xf32>
    %137 = vector.shape_cast %136 : vector<4x1x16x32xf32> to vector<4x16x32xf32>
    %138 = arith.truncf %137 : vector<4x16x32xf32> to vector<4x16x32xbf16>
    %139 = vector.extract_strided_slice %72 {offsets = [0, 1, 0, 0], sizes = [4, 1, 16, 32], strides = [1, 1, 1, 1]} : vector<4x2x16x32xf32> to vector<4x1x16x32xf32>
    %140 = vector.shape_cast %139 : vector<4x1x16x32xf32> to vector<4x16x32xf32>
    %141 = arith.truncf %140 : vector<4x16x32xf32> to vector<4x16x32xbf16>
    %142 = vector.extract_strided_slice %73 {offsets = [0, 1, 0, 0], sizes = [4, 1, 16, 32], strides = [1, 1, 1, 1]} : vector<4x2x16x32xf32> to vector<4x1x16x32xf32>
    %143 = vector.shape_cast %142 : vector<4x1x16x32xf32> to vector<4x16x32xf32>
    %144 = arith.truncf %143 : vector<4x16x32xf32> to vector<4x16x32xbf16>
    "tpu.trace_start"() <{level = 10 : i32, message = "hqd,hkd->hqk"}> : () -> ()
    %cst_50 = arith.constant dense<0.000000e+00> : vector<4x16x16xf32>
    %145 = tpu.matmul %138, %141, %cst_50 {dimension_numbers = #tpu.dot_dimension_numbers<[2], [2], [1], [1], [0, 0, 0, 1, 1, 1], [0], [0]>} : vector<4x16x32xbf16>, vector<4x16x32xbf16>, vector<4x16x16xf32> -> vector<4x16x16xf32>
    "tpu.trace_stop"() : () -> ()
    %146 = vector.shape_cast %79 : vector<16x16xf32> to vector<1x16x16xf32>
    %147 = vector.broadcast %146 : vector<1x16x16xf32> to vector<4x16x16xf32>
    %148 = arith.addf %145, %147 : vector<4x16x16xf32>
    %cst_51 = arith.constant dense<0xFF800000> : vector<4x16xf32>
    %149 = vector.multi_reduction <maximumf>, %148, %cst_51 [2] : vector<4x16x16xf32> to vector<4x16xf32>
    %150 = vector.shape_cast %149 : vector<4x16xf32> to vector<4x16x1xf32>
    %151 = vector.broadcast %150 : vector<4x16x1xf32> to vector<4x16x16xf32>
    %152 = arith.subf %148, %151 : vector<4x16x16xf32>
    %153 = math.exp %152 : vector<4x16x16xf32>
    %cst_52 = arith.constant dense<0.000000e+00> : vector<4x16xf32>
    %154 = vector.multi_reduction <add>, %153, %cst_52 [2] : vector<4x16x16xf32> to vector<4x16xf32>
    %155 = vector.shape_cast %154 : vector<4x16xf32> to vector<4x16x1xf32>
    %156 = tpu.reciprocal %155 {approx = true} : vector<4x16x1xf32> -> vector<4x16x1xf32>
    %157 = vector.broadcast %156 : vector<4x16x1xf32> to vector<4x16x16xf32>
    %158 = arith.mulf %153, %157 : vector<4x16x16xf32>
    %159 = arith.truncf %158 : vector<4x16x16xf32> to vector<4x16x16xbf16>
    "tpu.trace_start"() <{level = 10 : i32, message = "hqk,hkd->hqd"}> : () -> ()
    %cst_53 = arith.constant dense<0.000000e+00> : vector<4x16x32xf32>
    %160 = tpu.matmul %159, %144, %cst_53 {dimension_numbers = #tpu.dot_dimension_numbers<[2], [1], [1], [2], [0, 0, 0, 1, 1, 2], [0], [0]>} : vector<4x16x16xbf16>, vector<4x16x32xbf16>, vector<4x16x32xf32> -> vector<4x16x32xf32>
    %cst_54 = arith.constant 0.000000e+00 : f32
    "tpu.trace_stop"() : () -> ()
    %161 = vector.broadcast %cst_54 : f32 to vector<16x128xf32>
    %162 = vector.extract_strided_slice %160 {offsets = [0, 0, 0], sizes = [1, 16, 32], strides = [1, 1, 1]} : vector<4x16x32xf32> to vector<1x16x32xf32>
    %163 = vector.shape_cast %162 : vector<1x16x32xf32> to vector<16x32xf32>
    %164 = arith.truncf %163 : vector<16x32xf32> to vector<16x32xbf16>
    %165 = vector.extract_strided_slice %81 {offsets = [0, 0, 0], sizes = [1, 32, 128], strides = [1, 1, 1]} : vector<4x32x128xbf16> to vector<1x32x128xbf16>
    %166 = vector.shape_cast %165 : vector<1x32x128xbf16> to vector<32x128xbf16>
    %cst_55 = arith.constant dense<0.000000e+00> : vector<16x128xf32>
    %167 = tpu.matmul %164, %166, %cst_55 {dimension_numbers = #tpu.dot_dimension_numbers<[1], [0], [0], [1], [0, 0, 1, 1], [], []>} : vector<16x32xbf16>, vector<32x128xbf16>, vector<16x128xf32> -> vector<16x128xf32>
    %168 = arith.addf %161, %167 : vector<16x128xf32>
    %169 = vector.extract_strided_slice %160 {offsets = [1, 0, 0], sizes = [1, 16, 32], strides = [1, 1, 1]} : vector<4x16x32xf32> to vector<1x16x32xf32>
    %170 = vector.shape_cast %169 : vector<1x16x32xf32> to vector<16x32xf32>
    %171 = arith.truncf %170 : vector<16x32xf32> to vector<16x32xbf16>
    %172 = vector.extract_strided_slice %81 {offsets = [1, 0, 0], sizes = [1, 32, 128], strides = [1, 1, 1]} : vector<4x32x128xbf16> to vector<1x32x128xbf16>
    %173 = vector.shape_cast %172 : vector<1x32x128xbf16> to vector<32x128xbf16>
    %cst_56 = arith.constant dense<0.000000e+00> : vector<16x128xf32>
    %174 = tpu.matmul %171, %173, %cst_56 {dimension_numbers = #tpu.dot_dimension_numbers<[1], [0], [0], [1], [0, 0, 1, 1], [], []>} : vector<16x32xbf16>, vector<32x128xbf16>, vector<16x128xf32> -> vector<16x128xf32>
    %175 = arith.addf %168, %174 : vector<16x128xf32>
    %176 = vector.extract_strided_slice %160 {offsets = [2, 0, 0], sizes = [1, 16, 32], strides = [1, 1, 1]} : vector<4x16x32xf32> to vector<1x16x32xf32>
    %177 = vector.shape_cast %176 : vector<1x16x32xf32> to vector<16x32xf32>
    %178 = arith.truncf %177 : vector<16x32xf32> to vector<16x32xbf16>
    %179 = vector.extract_strided_slice %81 {offsets = [2, 0, 0], sizes = [1, 32, 128], strides = [1, 1, 1]} : vector<4x32x128xbf16> to vector<1x32x128xbf16>
    %180 = vector.shape_cast %179 : vector<1x32x128xbf16> to vector<32x128xbf16>
    %cst_57 = arith.constant dense<0.000000e+00> : vector<16x128xf32>
    %181 = tpu.matmul %178, %180, %cst_57 {dimension_numbers = #tpu.dot_dimension_numbers<[1], [0], [0], [1], [0, 0, 1, 1], [], []>} : vector<16x32xbf16>, vector<32x128xbf16>, vector<16x128xf32> -> vector<16x128xf32>
    %182 = arith.addf %175, %181 : vector<16x128xf32>
    %183 = vector.extract_strided_slice %160 {offsets = [3, 0, 0], sizes = [1, 16, 32], strides = [1, 1, 1]} : vector<4x16x32xf32> to vector<1x16x32xf32>
    %184 = vector.shape_cast %183 : vector<1x16x32xf32> to vector<16x32xf32>
    %185 = arith.truncf %184 : vector<16x32xf32> to vector<16x32xbf16>
    %186 = vector.extract_strided_slice %81 {offsets = [3, 0, 0], sizes = [1, 32, 128], strides = [1, 1, 1]} : vector<4x32x128xbf16> to vector<1x32x128xbf16>
    %187 = vector.shape_cast %186 : vector<1x32x128xbf16> to vector<32x128xbf16>
    %cst_58 = arith.constant dense<0.000000e+00> : vector<16x128xf32>
    %188 = tpu.matmul %185, %187, %cst_58 {dimension_numbers = #tpu.dot_dimension_numbers<[1], [0], [0], [1], [0, 0, 1, 1], [], []>} : vector<16x32xbf16>, vector<32x128xbf16>, vector<16x128xf32> -> vector<16x128xf32>
    %189 = arith.addf %182, %188 : vector<16x128xf32>
    %190 = vector.shape_cast %135 : vector<16x128xf32> to vector<1x16x128xf32>
    %191 = vector.shape_cast %189 : vector<16x128xf32> to vector<1x16x128xf32>
    %192 = tpu.concatenate %190, %191 in 0 : vector<1x16x128xf32>, vector<1x16x128xf32> -> vector<2x16x128xf32>
    %193 = arith.addf %3, %192 : vector<2x16x128xf32>
    %194 = vector.shape_cast %193 : vector<2x16x128xf32> to vector<32x128xf32>
    %cst_59 = arith.constant dense<0.000000e+00> : vector<32xf32>
    %195 = vector.multi_reduction <add>, %194, %cst_59 [1] : vector<32x128xf32> to vector<32xf32>
    %196 = vector.shape_cast %195 : vector<32xf32> to vector<32x1xf32>
    %cst_60 = arith.constant 1.280000e+02 : f32
    %197 = vector.broadcast %cst_60 : f32 to vector<32x1xf32>
    %198 = arith.divf %196, %197 : vector<32x1xf32>
    %199 = vector.broadcast %198 : vector<32x1xf32> to vector<32x128xf32>
    %200 = arith.subf %194, %199 : vector<32x128xf32>
    %201 = arith.mulf %200, %200 : vector<32x128xf32>
    %cst_61 = arith.constant dense<0.000000e+00> : vector<32xf32>
    %202 = vector.multi_reduction <add>, %201, %cst_61 [1] : vector<32x128xf32> to vector<32xf32>
    %203 = vector.shape_cast %202 : vector<32xf32> to vector<32x1xf32>
    %cst_62 = arith.constant 1.280000e+02 : f32
    %204 = vector.broadcast %cst_62 : f32 to vector<32x1xf32>
    %205 = arith.divf %203, %204 : vector<32x1xf32>
    %206 = vector.broadcast %198 : vector<32x1xf32> to vector<32x128xf32>
    %207 = arith.subf %194, %206 : vector<32x128xf32>
    %cst_63 = arith.constant 9.99999974E-6 : f32
    %208 = vector.broadcast %cst_63 : f32 to vector<32x1xf32>
    %209 = arith.addf %205, %208 : vector<32x1xf32>
    %210 = math.rsqrt %209 : vector<32x1xf32>
    %211 = vector.broadcast %210 : vector<32x1xf32> to vector<32x128xf32>
    %212 = arith.mulf %207, %211 : vector<32x128xf32>
    %213 = vector.broadcast %9 : vector<1x128xf32> to vector<32x128xf32>
    %214 = arith.mulf %212, %213 : vector<32x128xf32>
    %215 = vector.broadcast %10 : vector<1x128xf32> to vector<32x128xf32>
    %216 = arith.addf %214, %215 : vector<32x128xf32>
    %217 = arith.truncf %216 : vector<32x128xf32> to vector<32x128xbf16>
    %c0_64 = arith.constant 0 : index
    %c0_65 = arith.constant 0 : index
    %c0_66 = arith.constant 0 : index
    %218 = vector.load %arg7[%c0_64, %c0_65, %c0_66] : memref<1x128x512xbf16, #tpu.memory_space<vmem>>, vector<1x128x512xbf16>
    %219 = vector.shape_cast %218 : vector<1x128x512xbf16> to vector<128x512xbf16>
    %cst_67 = arith.constant dense<0.000000e+00> : vector<32x512xf32>
    %220 = tpu.matmul %217, %219, %cst_67 {dimension_numbers = #tpu.dot_dimension_numbers<[1], [0], [0], [1], [0, 0, 1, 1], [], []>} : vector<32x128xbf16>, vector<128x512xbf16>, vector<32x512xf32> -> vector<32x512xf32>
    %221 = vector.broadcast %12 : vector<1x512xf32> to vector<32x512xf32>
    %222 = arith.addf %220, %221 : vector<32x512xf32>
    %cst_68 = arith.constant 5.000000e-01 : f32
    %223 = vector.broadcast %cst_68 : f32 to vector<32x512xf32>
    %224 = arith.mulf %223, %222 : vector<32x512xf32>
    %cst_69 = arith.constant 0.707106769 : f32
    %225 = vector.broadcast %cst_69 : f32 to vector<32x512xf32>
    %226 = arith.mulf %222, %225 : vector<32x512xf32>
    %cst_70 = arith.constant 0.000000e+00 : f32
    %227 = vector.broadcast %cst_70 : f32 to vector<32x512xf32>
    %228 = arith.cmpf oge, %226, %227 : vector<32x512xf32>
    %cst_71 = arith.constant 1.000000e+00 : f32
    %cst_72 = arith.constant -1.000000e+00 : f32
    %229 = vector.broadcast %cst_71 : f32 to vector<32x512xf32>
    %230 = vector.broadcast %cst_72 : f32 to vector<32x512xf32>
    %231 = arith.select %228, %229, %230 : vector<32x512xi1>, vector<32x512xf32>
    %232 = math.absf %226 : vector<32x512xf32>
    %cst_73 = arith.constant 0.327591091 : f32
    %233 = vector.broadcast %cst_73 : f32 to vector<32x512xf32>
    %234 = arith.mulf %233, %232 : vector<32x512xf32>
    %cst_74 = arith.constant 1.000000e+00 : f32
    %235 = vector.broadcast %cst_74 : f32 to vector<32x512xf32>
    %236 = arith.addf %235, %234 : vector<32x512xf32>
    %cst_75 = arith.constant 1.000000e+00 : f32
    %237 = vector.broadcast %cst_75 : f32 to vector<32x512xf32>
    %238 = arith.divf %237, %236 : vector<32x512xf32>
    %cst_76 = arith.constant 1.06140542 : f32
    %239 = vector.broadcast %cst_76 : f32 to vector<32x512xf32>
    %240 = arith.mulf %239, %238 : vector<32x512xf32>
    %cst_77 = arith.constant -1.45315206 : f32
    %241 = vector.broadcast %cst_77 : f32 to vector<32x512xf32>
    %242 = arith.addf %240, %241 : vector<32x512xf32>
    %243 = arith.mulf %242, %238 : vector<32x512xf32>
    %cst_78 = arith.constant 1.42141378 : f32
    %244 = vector.broadcast %cst_78 : f32 to vector<32x512xf32>
    %245 = arith.addf %243, %244 : vector<32x512xf32>
    %246 = arith.mulf %245, %238 : vector<32x512xf32>
    %cst_79 = arith.constant -0.284496725 : f32
    %247 = vector.broadcast %cst_79 : f32 to vector<32x512xf32>
    %248 = arith.addf %246, %247 : vector<32x512xf32>
    %249 = arith.mulf %248, %238 : vector<32x512xf32>
    %cst_80 = arith.constant 0.254829586 : f32
    %250 = vector.broadcast %cst_80 : f32 to vector<32x512xf32>
    %251 = arith.addf %249, %250 : vector<32x512xf32>
    %252 = arith.mulf %251, %238 : vector<32x512xf32>
    %cst_81 = arith.constant 0.000000e+00 : f32
    %253 = vector.broadcast %cst_81 : f32 to vector<32x512xf32>
    %254 = arith.subf %253, %232 : vector<32x512xf32>
    %255 = arith.mulf %254, %232 : vector<32x512xf32>
    %256 = math.exp %255 : vector<32x512xf32>
    %257 = arith.mulf %252, %256 : vector<32x512xf32>
    %cst_82 = arith.constant 1.000000e+00 : f32
    %258 = vector.broadcast %cst_82 : f32 to vector<32x512xf32>
    %259 = arith.subf %258, %257 : vector<32x512xf32>
    %260 = arith.mulf %231, %259 : vector<32x512xf32>
    %cst_83 = arith.constant 1.000000e+00 : f32
    %261 = vector.broadcast %cst_83 : f32 to vector<32x512xf32>
    %262 = arith.addf %261, %260 : vector<32x512xf32>
    %263 = arith.mulf %224, %262 : vector<32x512xf32>
    %264 = arith.truncf %263 : vector<32x512xf32> to vector<32x512xbf16>
    %c0_84 = arith.constant 0 : index
    %c0_85 = arith.constant 0 : index
    %c0_86 = arith.constant 0 : index
    %265 = vector.load %arg8[%c0_84, %c0_85, %c0_86] : memref<1x512x128xbf16, #tpu.memory_space<vmem>>, vector<1x512x128xbf16>
    %266 = vector.shape_cast %265 : vector<1x512x128xbf16> to vector<512x128xbf16>
    %cst_87 = arith.constant dense<0.000000e+00> : vector<32x128xf32>
    %267 = tpu.matmul %264, %266, %cst_87 {dimension_numbers = #tpu.dot_dimension_numbers<[1], [0], [0], [1], [0, 0, 1, 1], [], []>} : vector<32x512xbf16>, vector<512x128xbf16>, vector<32x128xf32> -> vector<32x128xf32>
    %268 = vector.broadcast %11 : vector<1x128xf32> to vector<32x128xf32>
    %269 = arith.addf %267, %268 : vector<32x128xf32>
    %270 = vector.shape_cast %269 : vector<32x128xf32> to vector<2x16x128xf32>
    %271 = arith.addf %193, %270 : vector<2x16x128xf32>
    %c0_88 = arith.constant 0 : index
    %c0_89 = arith.constant 0 : index
    %c0_90 = arith.constant 0 : index
    %272 = vector.load %arg9[%c0_88, %c0_89, %c0_90] : memref<2x16x128xf32, #tpu.memory_space<vmem>>, vector<2x16x128xf32>
    tpu.vector_store %arg9[%c0_88, %c0_89, %c0_90], %271 {strides = array<i32>} : memref<2x16x128xf32, #tpu.memory_space<vmem>>, vector<2x16x128xf32>,
    return
  }
  func.func @transform_0(%arg0: i32) -> (i32, i32, i32) {
    %c0_i32 = arith.constant 0 : i32
    %c0_i32_0 = arith.constant 0 : i32
    %c0_i32_1 = arith.constant 0 : i32
    %c0_i32_2 = arith.constant 0 : i32
    return %c0_i32, %c0_i32_0, %c0_i32_1 : i32, i32, i32
  }
  func.func @transform_1(%arg0: i32) -> (i32, i32) {
    %c0_i32 = arith.constant 0 : i32
    %c0_i32_0 = arith.constant 0 : i32
    %c0_i32_1 = arith.constant 0 : i32
    return %c0_i32, %c0_i32_0 : i32, i32
  }
  func.func @transform_2(%arg0: i32) -> (i32, i32) {
    %c0_i32 = arith.constant 0 : i32
    %c0_i32_0 = arith.constant 0 : i32
    %c0_i32_1 = arith.constant 0 : i32
    return %c0_i32, %c0_i32_0 : i32, i32
  }
  func.func @transform_3(%arg0: i32) -> (i32, i32, i32) {
    %c0_i32 = arith.constant 0 : i32
    %c0_i32_0 = arith.constant 0 : i32
    %c0_i32_1 = arith.constant 0 : i32
    return %arg0, %c0_i32, %c0_i32_0 : i32, i32, i32
  }
  func.func @transform_4(%arg0: i32) -> (i32, i32, i32, i32) {
    %c0_i32 = arith.constant 0 : i32
    %c0_i32_0 = arith.constant 0 : i32
    %c0_i32_1 = arith.constant 0 : i32
    %c0_i32_2 = arith.constant 0 : i32
    return %arg0, %c0_i32, %c0_i32_0, %c0_i32_1 : i32, i32, i32, i32
  }
  func.func @transform_5(%arg0: i32) -> (i32, i32, i32, i32) {
    %c0_i32 = arith.constant 0 : i32
    %c0_i32_0 = arith.constant 0 : i32
    %c0_i32_1 = arith.constant 0 : i32
    %c0_i32_2 = arith.constant 0 : i32
    return %arg0, %c0_i32, %c0_i32_0, %c0_i32_1 : i32, i32, i32, i32
  }
  func.func @transform_6(%arg0: i32) -> (i32, i32, i32) {
    %c0_i32 = arith.constant 0 : i32
    %c0_i32_0 = arith.constant 0 : i32
    %c0_i32_1 = arith.constant 0 : i32
    return %arg0, %c0_i32, %c0_i32_0 : i32, i32, i32
  }
  func.func @transform_7(%arg0: i32) -> (i32, i32, i32) {
    %c0_i32 = arith.constant 0 : i32
    %c0_i32_0 = arith.constant 0 : i32
    %c0_i32_1 = arith.constant 0 : i32
    return %arg0, %c0_i32, %c0_i32_0 : i32, i32, i32
  }
  func.func @transform_8(%arg0: i32) -> (i32, i32, i32) {
    %c0_i32 = arith.constant 0 : i32
    %c0_i32_0 = arith.constant 0 : i32
    %c0_i32_1 = arith.constant 0 : i32
    %c0_i32_2 = arith.constant 0 : i32
    return %c0_i32, %c0_i32_0, %c0_i32_1 : i32, i32, i32
  }
}

</mosaic_0001>

<llo_original>
// kernel: tpu_custom_call.1
$region0: #{tpu_custom_call.1}
  #allocation0 [shape = 'u32[]', space=smem, size = 0x4, offset = 0x4, fixed_abs, tag = 'smem constant byte address 0x4 - core index']
  #allocation1 [shape = 'u32[144,128]{1,0:T(1,128)}', space=vmem, size = 0x12000, scoped, tag = 'internal scratch']
  %s0 = inlined_call_operand.hbm [shape: f32[2,16,128], index: 0, kind: input, shape index: {}]
  %s1 = inlined_call_operand.hbm [shape: f32[16,32], index: 1, kind: input, shape index: {}]
  %s2 = inlined_call_operand.hbm [shape: f32[16,32], index: 2, kind: input, shape index: {}]
  %s3 = inlined_call_operand.hbm [shape: f32[2,8,512], index: 3, kind: input, shape index: {}]
  %s4 = inlined_call_operand.hbm [shape: bf16[2,20,32,128], index: 4, kind: input, shape index: {}]
  %s5 = inlined_call_operand.hbm [shape: bf16[2,4,32,128], index: 5, kind: input, shape index: {}]
  %s6 = inlined_call_operand.hbm [shape: bf16[2,128,512], index: 6, kind: input, shape index: {}]
  %s7 = inlined_call_operand.hbm [shape: bf16[2,512,128], index: 7, kind: input, shape index: {}]
  %s8 = inlined_call_operand.hbm [shape: f32[2,16,128], index: 8, kind: output, shape index: {}]
  %s9 = sld [smem:[#allocation0]]
  $region101: #{tpu_custom_call.1} parent=0
    _
  %s11 = ssub.s32 1, %s9
  %s12 = scalar_select 0, %s11, %s9
  $region1: #{tpu_custom_call.1} parent=0
    #allocation2 [shape = 'u8[16384]{0}', space=vmem, size = 0x4000, scoped, tag = 'input window, operand 0, single buffered']
    #allocation3 [shape = 's32[2]{0}', space=sflag, size = 0x8, scoped, tag = 'scoped memory for tpu_custom_call.1']
    #allocation4 [shape = 's32[2]{0}', space=sflag, size = 0x8, scoped, tag = 'scoped memory for tpu_custom_call.1']
    #allocation5 [shape = 'u8[8192]{0}', space=vmem, size = 0x2000, scoped, tag = 'input window, operand 1, single buffered']
    #allocation6 [shape = 's32[1]{0}', space=sflag, size = 0x4, scoped, tag = 'scoped memory for tpu_custom_call.1']
    #allocation7 [shape = 'u8[8192]{0}', space=vmem, size = 0x2000, scoped, tag = 'input window, operand 2, single buffered']
    #allocation8 [shape = 'u8[32768]{0}', space=vmem, size = 0x8000, scoped, tag = 'input window, operand 3']
    #allocation9 [shape = 's32[2]{0}', space=sflag, size = 0x8, scoped, tag = 'scoped memory for tpu_custom_call.1']
    #allocation10 [shape = 'u8[327680]{0}', space=vmem, size = 0x50000, scoped, tag = 'input window, operand 4']
    #allocation11 [shape = 'u8[65536]{0}', space=vmem, size = 0x10000, scoped, tag = 'input window, operand 5']
    #allocation12 [shape = 's32[2]{0}', space=sflag, size = 0x8, scoped, tag = 'scoped memory for tpu_custom_call.1']
    #allocation13 [shape = 'u8[262144]{0}', space=vmem, size = 0x40000, scoped, tag = 'input window, operand 6']
    #allocation14 [shape = 'u8[262144]{0}', space=vmem, size = 0x40000, scoped, tag = 'input window, operand 7']
    #allocation15 [shape = 's32[2]{0}', space=sflag, size = 0x8, scoped, tag = 'scoped memory for tpu_custom_call.1']
    #allocation16 [shape = 'u8[16384]{0}', space=vmem, size = 0x4000, scoped, tag = 'output window, operand 0, single buffered']
    %13 = vsyncpa [#allocation3], 0
    %14 = vsyncpa [#allocation6], 0
    %15 = vsyncpa [#allocation9], 0
    %s16 = scalar_lea.sflag [#allocation9], 1
    %17 = vsyncpa %s16, 0
    %18 = vsyncpa [#allocation12], 0
    %s19 = scalar_lea.sflag [#allocation12], 1
    %20 = vsyncpa %s19, 0
    %21 = vsyncpa [#allocation15], 0
    %s22 = scalar_lea.sflag [#allocation15], 1
    %23 = vsyncpa %s22, 0
    %24 = vsyncpa [#allocation4], 0
    loop: start=0, step=1, limit=4
    $region2: #{tpu_custom_call.1} parent=1 // loop_pre_header
      _
    $region3: #{tpu_custom_call.1} parent=1 // loop_header
      %s26 = sphi 0, %s30
      %p27 = scmp.ge.s32.totalorder %s26, 4
      %s34 = sphi 0, %s34
      %s36 = sphi 0, %s34
      %s37 = sphi 0, %s36
      %s51 = sphi 0, %s37
      %s55 = sphi 0, %s55
      %s57 = sphi 0, %s55
      %s58 = sphi 0, %s57
      %s72 = sphi 0, %s58
      %s76 = sphi 0, %s76
      %s78 = sphi 0, %s76
      %s79 = sphi 0, %s78
      %s93 = sphi 0, %s79
      %s99 = sphi 0, %s101
      %s102 = sphi 0, %s99
      %s103 = sphi 0, %s102
      %s119 = sphi 0, %s103
      %s125 = sphi 0, %s127
      %s128 = sphi 0, %s125
      %s129 = sphi 0, %s128
      %s145 = sphi 0, %s129
      %s151 = sphi 0, %s153
      %s154 = sphi 0, %s151
      %s155 = sphi 0, %s154
      %s171 = sphi 0, %s155
      %s177 = sphi 0, %s179
      %s180 = sphi 0, %s177
      %s181 = sphi 0, %s180
      %s197 = sphi 0, %s181
      %s203 = sphi 0, %s205
      %s206 = sphi 0, %s203
      %s207 = sphi 0, %s206
      %s223 = sphi 0, %s207
      %s227 = sphi 0, %s227
      %s229 = sphi 0, %s227
      %s230 = sphi 0, %s229
      %s244 = sphi 0, %s230
    $region4: #{tpu_custom_call.1} parent=1 // loop_header_branch
      %29 = sbr.rel (%p27) target = $region8
    $region5: #{tpu_custom_call.1} parent=1 // loop_body
      %s31 = ssub.s32 %s26, 1
      %s32 = ssub.s32 %s26, 2
      %s33 = sadd.s32 %s26, 1
      %s35 = sadd.s32 %s34, 1
      %p38 = scmp.eq.s32.totalorder %s26, 1
      %p39 = scmp.ne.s32.totalorder %s34, %s36
      %p40 = scmp.eq.s32.totalorder %s26, 0
      %p41 = por %p39, %p40
      %p42 = scmp.ne.s32.totalorder %s34, %s36
      %p43 = scmp.eq.s32.totalorder %s31, 1
      %p44 = por %p42, %p43
      %p45 = scmp.ne.s32.totalorder %s36, %s37
      %p46 = scmp.eq.s32.totalorder %s31, 0
      %p47 = por %p45, %p46
      %p48 = scmp.ne.s32.totalorder %s36, %s37
      %p49 = scmp.eq.s32.totalorder %s32, 1
      %p50 = por %p48, %p49
      %p52 = scmp.ne.s32.totalorder %s37, %s51
      %p53 = scmp.eq.s32.totalorder %s32, 0
      %p54 = por %p52, %p53
      %s56 = sadd.s32 %s55, 1
      %p59 = scmp.eq.s32.totalorder %s26, 1
      %p60 = scmp.ne.s32.totalorder %s55, %s57
      %p61 = scmp.eq.s32.totalorder %s26, 0
      %p62 = por %p60, %p61
      %p63 = scmp.ne.s32.totalorder %s55, %s57
      %p64 = scmp.eq.s32.totalorder %s31, 1
      %p65 = por %p63, %p64
      %p66 = scmp.ne.s32.totalorder %s57, %s58
      %p67 = scmp.eq.s32.totalorder %s31, 0
      %p68 = por %p66, %p67
      %p69 = scmp.ne.s32.totalorder %s57, %s58
      %p70 = scmp.eq.s32.totalorder %s32, 1
      %p71 = por %p69, %p70
      %p73 = scmp.ne.s32.totalorder %s58, %s72
      %p74 = scmp.eq.s32.totalorder %s32, 0
      %p75 = por %p73, %p74
      %s77 = sadd.s32 %s76, 1
      %p80 = scmp.eq.s32.totalorder %s26, 1
      %p81 = scmp.ne.s32.totalorder %s76, %s78
      %p82 = scmp.eq.s32.totalorder %s26, 0
      %p83 = por %p81, %p82
      %p84 = scmp.ne.s32.totalorder %s76, %s78
      %p85 = scmp.eq.s32.totalorder %s31, 1
      %p86 = por %p84, %p85
      %p87 = scmp.ne.s32.totalorder %s78, %s79
      %p88 = scmp.eq.s32.totalorder %s31, 0
      %p89 = por %p87, %p88
      %p90 = scmp.ne.s32.totalorder %s78, %s79
      %p91 = scmp.eq.s32.totalorder %s32, 1
      %p92 = por %p90, %p91
      %p94 = scmp.ne.s32.totalorder %s79, %s93
      %p95 = scmp.eq.s32.totalorder %s32, 0
      %p96 = por %p94, %p95
      %s97 = ssub.s32 %s26, %s33
      %p98 = scmp.eq.s32.totalorder %s97, 0
      %s100 = sadd.s32 %s99, 1
      %s101 = scalar_select %p98, %s99, %s100
      %p104 = pneg %p98
      %p105 = scmp.eq.s32.totalorder %s26, 1
      %p106 = por %p104, %p105
      %p107 = scmp.ne.s32.totalorder %s99, %s102
      %p108 = scmp.eq.s32.totalorder %s26, 0
      %p109 = por %p107, %p108
      %p110 = scmp.ne.s32.totalorder %s99, %s102
      %p111 = scmp.eq.s32.totalorder %s31, 1
      %p112 = por %p110, %p111
      %p113 = scmp.ne.s32.totalorder %s102, %s103
      %p114 = scmp.eq.s32.totalorder %s31, 0
      %p115 = por %p113, %p114
      %p116 = scmp.ne.s32.totalorder %s102, %s103
      %p117 = scmp.eq.s32.totalorder %s32, 1
      %p118 = por %p116, %p117
      %p120 = scmp.ne.s32.totalorder %s103, %s119
      %p121 = scmp.eq.s32.totalorder %s32, 0
      %p122 = por %p120, %p121
      %s123 = ssub.s32 %s26, %s33
      %p124 = scmp.eq.s32.totalorder %s123, 0
      %s126 = sadd.s32 %s125, 1
      %s127 = scalar_select %p124, %s125, %s126
      %p130 = pneg %p124
      %p131 = scmp.eq.s32.totalorder %s26, 1
      %p132 = por %p130, %p131
      %p133 = scmp.ne.s32.totalorder %s125, %s128
      %p134 = scmp.eq.s32.totalorder %s26, 0
      %p135 = por %p133, %p134
      %p136 = scmp.ne.s32.totalorder %s125, %s128
      %p137 = scmp.eq.s32.totalorder %s31, 1
      %p138 = por %p136, %p137
      %p139 = scmp.ne.s32.totalorder %s128, %s129
      %p140 = scmp.eq.s32.totalorder %s31, 0
      %p141 = por %p139, %p140
      %p142 = scmp.ne.s32.totalorder %s128, %s129
      %p143 = scmp.eq.s32.totalorder %s32, 1
      %p144 = por %p142, %p143
      %p146 = scmp.ne.s32.totalorder %s129, %s145
      %p147 = scmp.eq.s32.totalorder %s32, 0
      %p148 = por %p146, %p147
      %s149 = ssub.s32 %s26, %s33
      %p150 = scmp.eq.s32.totalorder %s149, 0
      %s152 = sadd.s32 %s151, 1
      %s153 = scalar_select %p150, %s151, %s152
      %p156 = pneg %p150
      %p157 = scmp.eq.s32.totalorder %s26, 1
      %p158 = por %p156, %p157
      %p159 = scmp.ne.s32.totalorder %s151, %s154
      %p160 = scmp.eq.s32.totalorder %s26, 0
      %p161 = por %p159, %p160
      %p162 = scmp.ne.s32.totalorder %s151, %s154
      %p163 = scmp.eq.s32.totalorder %s31, 1
      %p164 = por %p162, %p163
      %p165 = scmp.ne.s32.totalorder %s154, %s155
      %p166 = scmp.eq.s32.totalorder %s31, 0
      %p167 = por %p165, %p166
      %p168 = scmp.ne.s32.totalorder %s154, %s155
      %p169 = scmp.eq.s32.totalorder %s32, 1
      %p170 = por %p168, %p169
      %p172 = scmp.ne.s32.totalorder %s155, %s171
      %p173 = scmp.eq.s32.totalorder %s32, 0
      %p174 = por %p172, %p173
      %s175 = ssub.s32 %s26, %s33
      %p176 = scmp.eq.s32.totalorder %s175, 0
      %s178 = sadd.s32 %s177, 1
      %s179 = scalar_select %p176, %s177, %s178
      %p182 = pneg %p176
      %p183 = scmp.eq.s32.totalorder %s26, 1
      %p184 = por %p182, %p183
      %p185 = scmp.ne.s32.totalorder %s177, %s180
      %p186 = scmp.eq.s32.totalorder %s26, 0
      %p187 = por %p185, %p186
      %p188 = scmp.ne.s32.totalorder %s177, %s180
      %p189 = scmp.eq.s32.totalorder %s31, 1
      %p190 = por %p188, %p189
      %p191 = scmp.ne.s32.totalorder %s180, %s181
      %p192 = scmp.eq.s32.totalorder %s31, 0
      %p193 = por %p191, %p192
      %p194 = scmp.ne.s32.totalorder %s180, %s181
      %p195 = scmp.eq.s32.totalorder %s32, 1
      %p196 = por %p194, %p195
      %p198 = scmp.ne.s32.totalorder %s181, %s197
      %p199 = scmp.eq.s32.totalorder %s32, 0
      %p200 = por %p198, %p199
      %s201 = ssub.s32 %s26, %s33
      %p202 = scmp.eq.s32.totalorder %s201, 0
      %s204 = sadd.s32 %s203, 1
      %s205 = scalar_select %p202, %s203, %s204
      %p208 = pneg %p202
      %p209 = scmp.eq.s32.totalorder %s26, 1
      %p210 = por %p208, %p209
      %p211 = scmp.ne.s32.totalorder %s203, %s206
      %p212 = scmp.eq.s32.totalorder %s26, 0
      %p213 = por %p211, %p212
      %p214 = scmp.ne.s32.totalorder %s203, %s206
      %p215 = scmp.eq.s32.totalorder %s31, 1
      %p216 = por %p214, %p215
      %p217 = scmp.ne.s32.totalorder %s206, %s207
      %p218 = scmp.eq.s32.totalorder %s31, 0
      %p219 = por %p217, %p218
      %p220 = scmp.ne.s32.totalorder %s206, %s207
      %p221 = scmp.eq.s32.totalorder %s32, 1
      %p222 = por %p220, %p221
      %p224 = scmp.ne.s32.totalorder %s207, %s223
      %p225 = scmp.eq.s32.totalorder %s32, 0
      %p226 = por %p224, %p225
      %s228 = sadd.s32 %s227, 1
      %p231 = scmp.eq.s32.totalorder %s26, 1
      %p232 = scmp.ne.s32.totalorder %s227, %s229
      %p233 = scmp.eq.s32.totalorder %s26, 0
      %p234 = por %p232, %p233
      %p235 = scmp.ne.s32.totalorder %s227, %s229
      %p236 = scmp.eq.s32.totalorder %s31, 1
      %p237 = por %p235, %p236
      %p238 = scmp.ne.s32.totalorder %s229, %s230
      %p239 = scmp.eq.s32.totalorder %s31, 0
      %p240 = por %p238, %p239
      %p241 = scmp.ne.s32.totalorder %s229, %s230
      %p242 = scmp.eq.s32.totalorder %s32, 1
      %p243 = por %p241, %p242
      %p245 = scmp.ne.s32.totalorder %s230, %s244
      %p246 = scmp.eq.s32.totalorder %s32, 0
      %p247 = por %p245, %p246
      %p248 = scmp.le.s32.totalorder 1, %s26
      %p249 = scmp.lt.s32.totalorder %s26, 3
      %p250 = pnand %p248, %p249
      %p251 = pneg %p250
      // Predicated region
      $region9: #{tpu_custom_call.1} parent=5 // pred_check
        _
      $region10: #{tpu_custom_call.1} parent=5 // pred_check_branch
        %253 = sbr.rel (%p250) target = $region12
      $region11: #{tpu_custom_call.1} parent=5 // pred_region
        %s254 = ssub.s32 %s26, 1
        // Predicated region
        $region13: #{tpu_custom_call.1} parent=11 // pred_check
          %p255 = pneg %p47
        $region14: #{tpu_custom_call.1} parent=11 // pred_check_branch
          %257 = sbr.rel (%p255) target = $region16
        $region15: #{tpu_custom_call.1} parent=11 // pred_region
          %s259 = ssub.s32 512, 512
          %260 = vsyncadd [#allocation3], %s259
          %s261 = sshll.u32 [#allocation2], 4
          %s262 = int_to_ptr.vmem [resolvable:$true] %s261
          %267 = dma.hbm_to_vmem [thread:$0]  %s0, 512, %s262, [#allocation3], 128, 128, 8
        $region16: #{tpu_custom_call.1} parent=11 // pred_fallthru
          _
        // Predicated region
        $region17: #{tpu_custom_call.1} parent=11 // pred_check
          %p268 = pneg %p68
        $region18: #{tpu_custom_call.1} parent=11 // pred_check_branch
          %270 = sbr.rel (%p268) target = $region20
        $region19: #{tpu_custom_call.1} parent=11 // pred_region
          %s272 = ssub.s32 256, 256
          %273 = vsyncadd [#allocation6], %s272
          %s274 = sshll.u32 [#allocation5], 4
          %s275 = int_to_ptr.vmem [resolvable:$true] %s274
          %280 = dma.hbm_to_vmem [thread:$0]  %s1, 256, %s275, [#allocation6], 128, 128, 8
        $region20: #{tpu_custom_call.1} parent=11 // pred_fallthru
          _
        // Predicated region
        $region21: #{tpu_custom_call.1} parent=11 // pred_check
          %p281 = pneg %p89
        $region22: #{tpu_custom_call.1} parent=11 // pred_check_branch
          %283 = sbr.rel (%p281) target = $region24
        $region23: #{tpu_custom_call.1} parent=11 // pred_region
          %s285 = ssub.s32 256, 256
          %286 = vsyncadd [#allocation6], %s285
          %s287 = sshll.u32 [#allocation7], 4
          %s288 = int_to_ptr.vmem [resolvable:$true] %s287
          %293 = dma.hbm_to_vmem [thread:$0]  %s2, 256, %s288, [#allocation6], 128, 128, 8
        $region24: #{tpu_custom_call.1} parent=11 // pred_fallthru
          _
      $region12: #{tpu_custom_call.1} parent=5 // pred_fallthru
        _
      %p294 = scmp.lt.s32.totalorder %s26, 2
      // Predicated region
      $region25: #{tpu_custom_call.1} parent=5 // pred_check
        %p295 = pneg %p294
      $region26: #{tpu_custom_call.1} parent=5 // pred_check_branch
        %297 = sbr.rel (%p295) target = $region28
      $region27: #{tpu_custom_call.1} parent=5 // pred_region
        // Predicated region
        $region29: #{tpu_custom_call.1} parent=27 // pred_check
          %p298 = pneg %p109
        $region30: #{tpu_custom_call.1} parent=27 // pred_check_branch
          %300 = sbr.rel (%p298) target = $region32
        $region31: #{tpu_custom_call.1} parent=27 // pred_region
          %s301 = sand.u32 %s26, 1
          %s302 = scalar_lea.sflag [#allocation9], %s301
          %s303 = sand.u32 %s99, 1
          %s304 = smul.addr %s303, 32
          %s305 = scalar_lea.vmem [#allocation8], %s304
          %s307 = ssub.s32 512, 512
          %308 = vsyncadd %s302, %s307
          %s309 = smul.addr %s26, 4
          %s310 = smul.addr %s309, 128
          %s311 = scalar_lea.hbm %s3, %s310
          %s313 = sshll.u32 %s305, 4
          %s314 = int_to_ptr.vmem [resolvable:$true] %s313
          %316 = dma.hbm_to_vmem [thread:$0]  %s311, 512, %s314, %s302
        $region32: #{tpu_custom_call.1} parent=27 // pred_fallthru
          _
        // Predicated region
        $region33: #{tpu_custom_call.1} parent=27 // pred_check
          %p317 = pneg %p135
        $region34: #{tpu_custom_call.1} parent=27 // pred_check_branch
          %319 = sbr.rel (%p317) target = $region36
        $region35: #{tpu_custom_call.1} parent=27 // pred_region
          %s320 = sand.u32 %s26, 1
          %s321 = scalar_lea.sflag [#allocation9], %s320
          %s322 = sand.u32 %s125, 1
          %s323 = smul.addr %s322, 320
          %s324 = scalar_lea.vmem [#allocation10], %s323
          %s326 = ssub.s32 5120, 5120
          %327 = vsyncadd %s321, %s326
          %s328 = smul.addr %s26, 80
          %s329 = smul.addr %s328, 64
          %s330 = scalar_lea.hbm %s4, %s329
          %s331 = sshll.u32 %s324, 4
          %s332 = int_to_ptr.vmem [resolvable:$true] %s331
          %337 = dma.hbm_to_vmem [thread:$0]  %s330, 5120, %s332, %s321, 64, 64, 4
        $region36: #{tpu_custom_call.1} parent=27 // pred_fallthru
          _
        // Predicated region
        $region37: #{tpu_custom_call.1} parent=27 // pred_check
          %p338 = pneg %p161
        $region38: #{tpu_custom_call.1} parent=27 // pred_check_branch
          %340 = sbr.rel (%p338) target = $region40
        $region39: #{tpu_custom_call.1} parent=27 // pred_region
          %s341 = sand.u32 %s26, 1
          %s342 = scalar_lea.sflag [#allocation12], %s341
          %s343 = sand.u32 %s151, 1
          %s344 = smul.addr %s343, 64
          %s345 = scalar_lea.vmem [#allocation11], %s344
          %s347 = ssub.s32 1024, 1024
          %348 = vsyncadd %s342, %s347
          %s349 = smul.addr %s26, 16
          %s350 = smul.addr %s349, 64
          %s351 = scalar_lea.hbm %s5, %s350
          %s352 = sshll.u32 %s345, 4
          %s353 = int_to_ptr.vmem [resolvable:$true] %s352
          %358 = dma.hbm_to_vmem [thread:$0]  %s351, 1024, %s353, %s342, 64, 64, 4
        $region40: #{tpu_custom_call.1} parent=27 // pred_fallthru
          _
        // Predicated region
        $region41: #{tpu_custom_call.1} parent=27 // pred_check
          %p359 = pneg %p187
        $region42: #{tpu_custom_call.1} parent=27 // pred_check_branch
          %361 = sbr.rel (%p359) target = $region44
        $region43: #{tpu_custom_call.1} parent=27 // pred_region
          %s362 = sand.u32 %s26, 1
          %s363 = scalar_lea.sflag [#allocation12], %s362
          %s364 = sand.u32 %s177, 1
          %s365 = smul.addr %s364, 256
          %s366 = scalar_lea.vmem [#allocation13], %s365
          %s368 = ssub.s32 4096, 4096
          %369 = vsyncadd %s363, %s368
          %s370 = smul.addr %s26, 64
          %s371 = smul.addr %s370, 64
          %s372 = scalar_lea.hbm %s6, %s371
          %s373 = sshll.u32 %s366, 4
          %s374 = int_to_ptr.vmem [resolvable:$true] %s373
          %379 = dma.hbm_to_vmem [thread:$0]  %s372, 4096, %s374, %s363, 256, 256, 16
        $region44: #{tpu_custom_call.1} parent=27 // pred_fallthru
          _
        // Predicated region
        $region45: #{tpu_custom_call.1} parent=27 // pred_check
          %p380 = pneg %p213
        $region46: #{tpu_custom_call.1} parent=27 // pred_check_branch
          %382 = sbr.rel (%p380) target = $region48
        $region47: #{tpu_custom_call.1} parent=27 // pred_region
          %s383 = sand.u32 %s203, 1
          %s384 = scalar_lea.sflag [#allocation15], %s383
          %s385 = sand.u32 %s203, 1
          %s386 = smul.addr %s385, 256
          %s387 = scalar_lea.vmem [#allocation14], %s386
          %s389 = ssub.s32 4096, 4096
          %390 = vsyncadd %s384, %s389
          %s391 = smul.addr %s26, 64
          %s392 = smul.addr %s391, 64
          %s393 = scalar_lea.hbm %s7, %s392
          %s394 = sshll.u32 %s387, 4
          %s395 = int_to_ptr.vmem [resolvable:$true] %s394
          %400 = dma.hbm_to_vmem [thread:$0]  %s393, 4096, %s395, %s384, 64, 64, 4
        $region48: #{tpu_custom_call.1} parent=27 // pred_fallthru
          _
      $region28: #{tpu_custom_call.1} parent=5 // pred_fallthru
        _
      %p401 = scmp.le.s32.totalorder 1, %s26
      %p402 = scmp.lt.s32.totalorder %s26, 3
      %p403 = pnand %p401, %p402
      %p404 = pneg %p403
      // Predicated region
      $region49: #{tpu_custom_call.1} parent=5 // pred_check
        _
      $region50: #{tpu_custom_call.1} parent=5 // pred_check_branch
        %406 = sbr.rel (%p403) target = $region52
      $region51: #{tpu_custom_call.1} parent=5 // pred_region
        %s407 = ssub.s32 %s26, 1
        // Predicated region
        $region53: #{tpu_custom_call.1} parent=51 // pred_check
          %p408 = pneg %p47
        $region54: #{tpu_custom_call.1} parent=51 // pred_check_branch
          %410 = sbr.rel (%p408) target = $region56
        $region55: #{tpu_custom_call.1} parent=51 // pred_region
          %411 = dma.done [#allocation3], 512
        $region56: #{tpu_custom_call.1} parent=51 // pred_fallthru
          _
        // Predicated region
        $region57: #{tpu_custom_call.1} parent=51 // pred_check
          %p412 = pneg %p68
        $region58: #{tpu_custom_call.1} parent=51 // pred_check_branch
          %414 = sbr.rel (%p412) target = $region60
        $region59: #{tpu_custom_call.1} parent=51 // pred_region
          %415 = dma.done [#allocation6], 256
        $region60: #{tpu_custom_call.1} parent=51 // pred_fallthru
          _
        // Predicated region
        $region61: #{tpu_custom_call.1} parent=51 // pred_check
          %p416 = pneg %p89
        $region62: #{tpu_custom_call.1} parent=51 // pred_check_branch
          %418 = sbr.rel (%p416) target = $region64
        $region63: #{tpu_custom_call.1} parent=51 // pred_region
          %419 = dma.done [#allocation6], 256
        $region64: #{tpu_custom_call.1} parent=51 // pred_fallthru
          _
        %s420 = sand.u32 %s31, 1
        %s421 = scalar_lea.sflag [#allocation9], %s420
        %s422 = sand.u32 %s102, 1
        %s423 = smul.addr %s422, 32
        %s424 = scalar_lea.vmem [#allocation8], %s423
        // Predicated region
        $region65: #{tpu_custom_call.1} parent=51 // pred_check
          %p425 = pneg %p115
        $region66: #{tpu_custom_call.1} parent=51 // pred_check_branch
          %427 = sbr.rel (%p425) target = $region68
        $region67: #{tpu_custom_call.1} parent=51 // pred_region
          %428 = dma.done %s421, 512
        $region68: #{tpu_custom_call.1} parent=51 // pred_fallthru
          _
        %s429 = sand.u32 %s31, 1
        %s430 = scalar_lea.sflag [#allocation9], %s429
        %s431 = sand.u32 %s128, 1
        %s432 = smul.addr %s431, 320
        %s433 = scalar_lea.vmem [#allocation10], %s432
        // Predicated region
        $region69: #{tpu_custom_call.1} parent=51 // pred_check
          %p434 = pneg %p141
        $region70: #{tpu_custom_call.1} parent=51 // pred_check_branch
          %436 = sbr.rel (%p434) target = $region72
        $region71: #{tpu_custom_call.1} parent=51 // pred_region
          %437 = dma.done %s430, 5120
        $region72: #{tpu_custom_call.1} parent=51 // pred_fallthru
          _
        %s438 = sand.u32 %s31, 1
        %s439 = scalar_lea.sflag [#allocation12], %s438
        %s440 = sand.u32 %s154, 1
        %s441 = smul.addr %s440, 64
        %s442 = scalar_lea.vmem [#allocation11], %s441
        // Predicated region
        $region73: #{tpu_custom_call.1} parent=51 // pred_check
          %p443 = pneg %p167
        $region74: #{tpu_custom_call.1} parent=51 // pred_check_branch
          %445 = sbr.rel (%p443) target = $region76
        $region75: #{tpu_custom_call.1} parent=51 // pred_region
          %446 = dma.done %s439, 1024
        $region76: #{tpu_custom_call.1} parent=51 // pred_fallthru
          _
        %s447 = sand.u32 %s31, 1
        %s448 = scalar_lea.sflag [#allocation12], %s447
        %s449 = sand.u32 %s180, 1
        %s450 = smul.addr %s449, 256
        %s451 = scalar_lea.vmem [#allocation13], %s450
        // Predicated region
        $region77: #{tpu_custom_call.1} parent=51 // pred_check
          %p452 = pneg %p193
        $region78: #{tpu_custom_call.1} parent=51 // pred_check_branch
          %454 = sbr.rel (%p452) target = $region80
        $region79: #{tpu_custom_call.1} parent=51 // pred_region
          %455 = dma.done %s448, 4096
        $region80: #{tpu_custom_call.1} parent=51 // pred_fallthru
          _
        %s456 = sand.u32 %s206, 1
        %s457 = scalar_lea.sflag [#allocation15], %s456
        %s458 = sand.u32 %s206, 1
        %s459 = smul.addr %s458, 256
        %s460 = scalar_lea.vmem [#allocation14], %s459
        // Predicated region
        $region81: #{tpu_custom_call.1} parent=51 // pred_check
          %p461 = pneg %p219
        $region82: #{tpu_custom_call.1} parent=51 // pred_check_branch
          %463 = sbr.rel (%p461) target = $region84
        $region83: #{tpu_custom_call.1} parent=51 // pred_region
          %464 = dma.done %s457, 4096
        $region84: #{tpu_custom_call.1} parent=51 // pred_fallthru
          _
        %p465 = pneg %p47
        %p466 = pneg %p44
        %p467 = pneg %p68
        %p468 = pneg %p65
        %p469 = pneg %p89
        %p470 = pneg %p86
        %s471 = sand.u32 %s31, 1
        %s472 = scalar_lea.sflag [#allocation9], %s471
        %s473 = sand.u32 %s102, 1
        %s474 = smul.addr %s473, 32
        %s475 = scalar_lea.vmem [#allocation8], %s474
        %p476 = pneg %p115
        %p477 = pneg %p112
        %s478 = sand.u32 %s31, 1
        %s479 = scalar_lea.sflag [#allocation9], %s478
        %s480 = sand.u32 %s128, 1
        %s481 = smul.addr %s480, 320
        %s482 = scalar_lea.vmem [#allocation10], %s481
        %p483 = pneg %p141
        %p484 = pneg %p138
        %s485 = sand.u32 %s31, 1
        %s486 = scalar_lea.sflag [#allocation12], %s485
        %s487 = sand.u32 %s154, 1
        %s488 = smul.addr %s487, 64
        %s489 = scalar_lea.vmem [#allocation11], %s488
        %p490 = pneg %p167
        %p491 = pneg %p164
        %s492 = sand.u32 %s31, 1
        %s493 = scalar_lea.sflag [#allocation12], %s492
        %s494 = sand.u32 %s180, 1
        %s495 = smul.addr %s494, 256
        %s496 = scalar_lea.vmem [#allocation13], %s495
        %p497 = pneg %p193
        %p498 = pneg %p190
        %s499 = sand.u32 %s206, 1
        %s500 = scalar_lea.sflag [#allocation15], %s499
        %s501 = sand.u32 %s206, 1
        %s502 = smul.addr %s501, 256
        %s503 = scalar_lea.vmem [#allocation14], %s502
        %p504 = pneg %p219
        %p505 = pneg %p216
        %p506 = pneg %p240
        %p507 = pneg %p237
        %p509 = scmp.eq.s32.totalorder %s31, 0
        // Predicated region
        $region85: #{tpu_custom_call.1} parent=51 // pred_check
          %p510 = pneg %p509
        $region86: #{tpu_custom_call.1} parent=51 // pred_check_branch
          %512 = sbr.rel (%p510) target = $region88
        $region87: #{tpu_custom_call.1} parent=51 // pred_region
          %v513 = vld [vmem:[#allocation2] sm:$0xff]
          %v514 = vld [vmem:[#allocation2 + $0x8] sm:$0xff]
          %v515 = vld [vmem:[#allocation2 + $0x10] sm:$0xff]
          %v516 = vld [vmem:[#allocation2 + $0x18] sm:$0xff]
          %517 = vst [vmem:[#allocation16] sm:$0xff] %v513
          %518 = vst [vmem:[#allocation16 + $0x8] sm:$0xff] %v514
          %519 = vst [vmem:[#allocation16 + $0x10] sm:$0xff] %v515
          %520 = vst [vmem:[#allocation16 + $0x18] sm:$0xff] %v516
        $region88: #{tpu_custom_call.1} parent=51 // pred_fallthru
          _
        %v521 = vld [vmem:[#allocation16] sm:$0xff]
        %v522 = vld [vmem:[#allocation16 + $0x8] sm:$0xff]
        %v523 = vld [vmem:[#allocation16 + $0x10] sm:$0xff]
        %v524 = vld [vmem:[#allocation16 + $0x18] sm:$0xff]
        %v525 = vld [vmem:[%s424] sm:$0xff]
        %v526 = vld [vmem:[%s424 + $0x8] sm:$0xff]
        %v527 = vld [vmem:[%s424 + $0x10] sm:$0xff]
        %v528 = vld [vmem:[%s424 + $0x18] sm:$0xff]
        %529 = vadd.xlane.f32.xlu0 %v521
        %v530 = vpop.xlane.xlu0 %529
        %531 = vadd.xlane.f32.xlu0 %v522
        %v532 = vpop.xlane.xlu0 %531
        %533 = vadd.xlane.f32.xlu0 %v523
        %v534 = vpop.xlane.xlu0 %533
        %535 = vadd.xlane.f32.xlu0 %v524
        %v536 = vpop.xlane.xlu0 %535
        %v537 = vrcp.pop 128.0
        %v538 = vmul.f32 %v530, %v537
        %v539 = vmul.f32 %v532, %v537
        %v540 = vmul.f32 %v534, %v537
        %v541 = vmul.f32 %v536, %v537
        %v542 = vsub.f32 %v521, %v538
        %v543 = vsub.f32 %v522, %v539
        %v544 = vsub.f32 %v523, %v540
        %v545 = vsub.f32 %v524, %v541
        %v546 = vmul.f32 %v542, %v542
        %v547 = vmul.f32 %v543, %v543
        %v548 = vmul.f32 %v544, %v544
        %v549 = vmul.f32 %v545, %v545
        %550 = vadd.xlane.f32.xlu0 %v546
        %v551 = vpop.xlane.xlu0 %550
        %552 = vadd.xlane.f32.xlu0 %v547
        %v553 = vpop.xlane.xlu0 %552
        %554 = vadd.xlane.f32.xlu0 %v548
        %v555 = vpop.xlane.xlu0 %554
        %556 = vadd.xlane.f32.xlu0 %v549
        %v557 = vpop.xlane.xlu0 %556
        %v558 = vmul.f32 %v551, %v537
        %v559 = vmul.f32 %v553, %v537
        %v560 = vmul.f32 %v555, %v537
        %v561 = vmul.f32 %v557, %v537
        %v562 = vadd.f32 %v558, 1e-05
        %v563 = vadd.f32 %v559, 1e-05
        %v564 = vadd.f32 %v560, 1e-05
        %v565 = vadd.f32 %v561, 1e-05
        %v566 = vrsqrt.pop %v562
        %v567 = vrsqrt.pop %v563
        %v568 = vrsqrt.pop %v564
        %v569 = vrsqrt.pop %v565
        %v570 = vmul.f32 %v542, %v566
        %v571 = vmul.f32 %v543, %v567
        %v572 = vmul.f32 %v544, %v568
        %v573 = vmul.f32 %v545, %v569
        %v574 = vlaneseq
        %v575 = vshrl.u32 %v574, 7
        %v576 = vsub.s32 0, %v575
        %v577 = vrot.slane %v525, %v576
        %v578 = vmul.f32 %v570, %v577
        %v579 = vmul.f32 %v571, %v577
        %v580 = vmul.f32 %v572, %v577
        %v581 = vmul.f32 %v573, %v577
        %v582 = vlaneseq
        %v583 = vshrl.u32 %v582, 7
        %v584 = vsub.s32 1, %v583
        %v585 = vrot.slane %v525, %v584
        %v586 = vadd.f32 %v578, %v585
        %v587 = vadd.f32 %v579, %v585
        %v588 = vadd.f32 %v580, %v585
        %v589 = vadd.f32 %v581, %v585
        %v590 = vpack.c.bf16 %v587, %v586
        %v591 = vpack.c.bf16 %v589, %v588
        %v592 = vld [vmem:[%s433] sm:$0xf]
        %v593 = vld [vmem:[%s433 + $0x4] sm:$0xf]
        %v594 = vld [vmem:[%s433 + $0x8] sm:$0xf]
        %v595 = vld [vmem:[%s433 + $0xc] sm:$0xf]
        %v596 = vld [vmem:[%s433 + $0x10] sm:$0xf]
        %v597 = vld [vmem:[%s433 + $0x14] sm:$0xf]
        %v598 = vld [vmem:[%s433 + $0x18] sm:$0xf]
        %v599 = vld [vmem:[%s433 + $0x1c] sm:$0xf]
        %v600 = vld [vmem:[%s433 + $0x20] sm:$0xf]
        %v601 = vld [vmem:[%s433 + $0x24] sm:$0xf]
        %v602 = vld [vmem:[%s433 + $0x28] sm:$0xf]
        %v603 = vld [vmem:[%s433 + $0x2c] sm:$0xf]
        %v604 = vld [vmem:[%s433 + $0x30] sm:$0xf]
        %v605 = vld [vmem:[%s433 + $0x34] sm:$0xf]
        %v606 = vld [vmem:[%s433 + $0x38] sm:$0xf]
        %v607 = vld [vmem:[%s433 + $0x3c] sm:$0xf]
        %v612 = vunpack.c.l.b16 %v592
        %v613 = vunpack.c.l.b16 %v593
        %v614 = vunpack.c.l.b16 %v594
        %v615 = vunpack.c.l.b16 %v595
        %v616 = vpack.c.b16 %v613, %v612
        %v617 = vpack.c.b16 %v615, %v614
        %620 = vmatprep.subr.bf16.mxu0 0
        %621 = vmatpush1.bf16.xpose.msra.mxu0 %v616
        %622 = vmatprep.subr.bf16.mxu0 0
        %623 = vmatpush1.bf16.xpose.msra.mxu0 %v617
        %624 = vmatprep.subr.bf16.mxu0 0
        %625 = vmatpush1.bf16.xpose.msra.mxu0 0
        %626 = vmatprep.subr.bf16.mxu0 0
        %627 = vmatpush1.bf16.xpose.msra.mxu0 0
        %628 = vmatprep.subr.bf16.mxu0 0
        %629 = vmatpush1.bf16.xpose.msra.mxu0 0
        %630 = vmatprep.subr.bf16.mxu0 0
        %631 = vmatpush1.bf16.xpose.msra.mxu0 0
        %632 = vmatprep.subr.bf16.mxu0 0
        %633 = vmatpush1.bf16.xpose.msra.mxu0 0
        %634 = vmatprep.subr.bf16.mxu0 0
        %635 = vmatpush1.bf16.xpose.msra.mxu0 0
        %636 = vmatprep.subr.bf16.mxu0 0
        %637 = vmatpush1.bf16.xpose.msra.mxu0 0
        %638 = vmatprep.subr.bf16.mxu0 0
        %639 = vmatpush1.bf16.xpose.msra.mxu0 0
        %640 = vmatprep.subr.bf16.mxu0 0
        %641 = vmatpush1.bf16.xpose.msra.mxu0 0
        %642 = vmatprep.subr.bf16.mxu0 0
        %643 = vmatpush1.bf16.xpose.msra.mxu0 0
        %644 = vmatprep.subr.bf16.mxu0 0
        %645 = vmatpush1.bf16.xpose.msra.mxu0 0
        %646 = vmatprep.subr.bf16.mxu0 0
        %647 = vmatpush1.bf16.xpose.msra.mxu0 0
        %648 = vmatprep.subr.bf16.mxu0 0
        %649 = vmatpush1.bf16.xpose.msra.mxu0 0
        %650 = vmatprep.subr.bf16.mxu0 0
        %651 = vmatpush1.bf16.xpose.msra.mxu0 0
        %652 = vmatprep.mubr.bf16.mxu0 0
        %653 = vmatmul.mubr.bf16.gmra.mrb[0].mxu0 %v590
        %v654 = vpop.f32.mrb[0].mxu0
        %v655 = vadd.f32 0.0, %v654
        %v656 = vpop.f32.mrb[0].mxu0
        %v657 = vpop.f32.mrb[0].mxu0
        %v658 = vadd.f32 0.0, %v657
        %v659 = vpop.f32.mrb[0].mxu0
        %660 = vmatprep.mubr.bf16.mxu0 0
        %661 = vmatmul.mubr.bf16.gmra.mrb[0].mxu0 %v591
        %v662 = vpop.f32.mrb[0].mxu0
        %v663 = vadd.f32 0.0, %v662
        %v664 = vpop.f32.mrb[0].mxu0
        %v665 = vpop.f32.mrb[0].mxu0
        %v666 = vadd.f32 0.0, %v665
        %v667 = vpop.f32.mrb[0].mxu0
        %668 = vdwg.mxu0
        %v673 = vunpack.c.l.b16 %v596
        %v674 = vunpack.c.l.b16 %v597
        %v675 = vunpack.c.l.b16 %v598
        %v676 = vunpack.c.l.b16 %v599
        %v677 = vpack.c.b16 %v674, %v673
        %v678 = vpack.c.b16 %v676, %v675
        %681 = vmatprep.subr.bf16.mxu0 0
        %682 = vmatpush1.bf16.xpose.msra.mxu0 %v677
        %683 = vmatprep.subr.bf16.mxu0 0
        %684 = vmatpush1.bf16.xpose.msra.mxu0 %v678
        %685 = vmatprep.subr.bf16.mxu0 0
        %686 = vmatpush1.bf16.xpose.msra.mxu0 0
        %687 = vmatprep.subr.bf16.mxu0 0
        %688 = vmatpush1.bf16.xpose.msra.mxu0 0
        %689 = vmatprep.subr.bf16.mxu0 0
        %690 = vmatpush1.bf16.xpose.msra.mxu0 0
        %691 = vmatprep.subr.bf16.mxu0 0
        %692 = vmatpush1.bf16.xpose.msra.mxu0 0
        %693 = vmatprep.subr.bf16.mxu0 0
        %694 = vmatpush1.bf16.xpose.msra.mxu0 0
        %695 = vmatprep.subr.bf16.mxu0 0
        %696 = vmatpush1.bf16.xpose.msra.mxu0 0
        %697 = vmatprep.subr.bf16.mxu0 0
        %698 = vmatpush1.bf16.xpose.msra.mxu0 0
        %699 = vmatprep.subr.bf16.mxu0 0
        %700 = vmatpush1.bf16.xpose.msra.mxu0 0
        %701 = vmatprep.subr.bf16.mxu0 0
        %702 = vmatpush1.bf16.xpose.msra.mxu0 0
        %703 = vmatprep.subr.bf16.mxu0 0
        %704 = vmatpush1.bf16.xpose.msra.mxu0 0
        %705 = vmatprep.subr.bf16.mxu0 0
        %706 = vmatpush1.bf16.xpose.msra.mxu0 0
        %707 = vmatprep.subr.bf16.mxu0 0
        %708 = vmatpush1.bf16.xpose.msra.mxu0 0
        %709 = vmatprep.subr.bf16.mxu0 0
        %710 = vmatpush1.bf16.xpose.msra.mxu0 0
        %711 = vmatprep.subr.bf16.mxu0 0
        %712 = vmatpush1.bf16.xpose.msra.mxu0 0
        %713 = vmatprep.mubr.bf16.mxu0 0
        %714 = vmatmul.mubr.bf16.gmra.mrb[0].mxu0 %v590
        %v715 = vpop.f32.mrb[0].mxu0
        %v716 = vadd.f32 0.0, %v715
        %v717 = vpop.f32.mrb[0].mxu0
        %v718 = vpop.f32.mrb[0].mxu0
        %v719 = vadd.f32 0.0, %v718
        %v720 = vpop.f32.mrb[0].mxu0
        %721 = vmatprep.mubr.bf16.mxu0 0
        %722 = vmatmul.mubr.bf16.gmra.mrb[0].mxu0 %v591
        %v723 = vpop.f32.mrb[0].mxu0
        %v724 = vadd.f32 0.0, %v723
        %v725 = vpop.f32.mrb[0].mxu0
        %v726 = vpop.f32.mrb[0].mxu0
        %v727 = vadd.f32 0.0, %v726
        %v728 = vpop.f32.mrb[0].mxu0
        %729 = vdwg.mxu0
        %v734 = vunpack.c.l.b16 %v600
        %v735 = vunpack.c.l.b16 %v601
        %v736 = vunpack.c.l.b16 %v602
        %v737 = vunpack.c.l.b16 %v603
        %v738 = vpack.c.b16 %v735, %v734
        %v739 = vpack.c.b16 %v737, %v736
        %742 = vmatprep.subr.bf16.mxu0 0
        %743 = vmatpush1.bf16.xpose.msra.mxu0 %v738
        %744 = vmatprep.subr.bf16.mxu0 0
        %745 = vmatpush1.bf16.xpose.msra.mxu0 %v739
        %746 = vmatprep.subr.bf16.mxu0 0
        %747 = vmatpush1.bf16.xpose.msra.mxu0 0
        %748 = vmatprep.subr.bf16.mxu0 0
        %749 = vmatpush1.bf16.xpose.msra.mxu0 0
        %750 = vmatprep.subr.bf16.mxu0 0
        %751 = vmatpush1.bf16.xpose.msra.mxu0 0
        %752 = vmatprep.subr.bf16.mxu0 0
        %753 = vmatpush1.bf16.xpose.msra.mxu0 0
        %754 = vmatprep.subr.bf16.mxu0 0
        %755 = vmatpush1.bf16.xpose.msra.mxu0 0
        %756 = vmatprep.subr.bf16.mxu0 0
        %757 = vmatpush1.bf16.xpose.msra.mxu0 0
        %758 = vmatprep.subr.bf16.mxu0 0
        %759 = vmatpush1.bf16.xpose.msra.mxu0 0
        %760 = vmatprep.subr.bf16.mxu0 0
        %761 = vmatpush1.bf16.xpose.msra.mxu0 0
        %762 = vmatprep.subr.bf16.mxu0 0
        %763 = vmatpush1.bf16.xpose.msra.mxu0 0
        %764 = vmatprep.subr.bf16.mxu0 0
        %765 = vmatpush1.bf16.xpose.msra.mxu0 0
        %766 = vmatprep.subr.bf16.mxu0 0
        %767 = vmatpush1.bf16.xpose.msra.mxu0 0
        %768 = vmatprep.subr.bf16.mxu0 0
        %769 = vmatpush1.bf16.xpose.msra.mxu0 0
        %770 = vmatprep.subr.bf16.mxu0 0
        %771 = vmatpush1.bf16.xpose.msra.mxu0 0
        %772 = vmatprep.subr.bf16.mxu0 0
        %773 = vmatpush1.bf16.xpose.msra.mxu0 0
        %774 = vmatprep.mubr.bf16.mxu0 0
        %775 = vmatmul.mubr.bf16.gmra.mrb[0].mxu0 %v590
        %v776 = vpop.f32.mrb[0].mxu0
        %v777 = vadd.f32 0.0, %v776
        %v778 = vpop.f32.mrb[0].mxu0
        %v779 = vpop.f32.mrb[0].mxu0
        %v780 = vadd.f32 0.0, %v779
        %v781 = vpop.f32.mrb[0].mxu0
        %782 = vmatprep.mubr.bf16.mxu0 0
        %783 = vmatmul.mubr.bf16.gmra.mrb[0].mxu0 %v591
        %v784 = vpop.f32.mrb[0].mxu0
        %v785 = vadd.f32 0.0, %v784
        %v786 = vpop.f32.mrb[0].mxu0
        %v787 = vpop.f32.mrb[0].mxu0
        %v788 = vadd.f32 0.0, %v787
        %v789 = vpop.f32.mrb[0].mxu0
        %790 = vdwg.mxu0
        %v795 = vunpack.c.l.b16 %v604
        %v796 = vunpack.c.l.b16 %v605
        %v797 = vunpack.c.l.b16 %v606
        %v798 = vunpack.c.l.b16 %v607
        %v799 = vpack.c.b16 %v796, %v795
        %v800 = vpack.c.b16 %v798, %v797
        %803 = vmatprep.subr.bf16.mxu0 0
        %804 = vmatpush1.bf16.xpose.msra.mxu0 %v799
        %805 = vmatprep.subr.bf16.mxu0 0
        %806 = vmatpush1.bf16.xpose.msra.mxu0 %v800
        %807 = vmatprep.subr.bf16.mxu0 0
        %808 = vmatpush1.bf16.xpose.msra.mxu0 0
        %809 = vmatprep.subr.bf16.mxu0 0
        %810 = vmatpush1.bf16.xpose.msra.mxu0 0
        %811 = vmatprep.subr.bf16.mxu0 0
        %812 = vmatpush1.bf16.xpose.msra.mxu0 0
        %813 = vmatprep.subr.bf16.mxu0 0
        %814 = vmatpush1.bf16.xpose.msra.mxu0 0
        %815 = vmatprep.subr.bf16.mxu0 0
        %816 = vmatpush1.bf16.xpose.msra.mxu0 0
        %817 = vmatprep.subr.bf16.mxu0 0
        %818 = vmatpush1.bf16.xpose.msra.mxu0 0
        %819 = vmatprep.subr.bf16.mxu0 0
        %820 = vmatpush1.bf16.xpose.msra.mxu0 0
        %821 = vmatprep.subr.bf16.mxu0 0
        %822 = vmatpush1.bf16.xpose.msra.mxu0 0
        %823 = vmatprep.subr.bf16.mxu0 0
        %824 = vmatpush1.bf16.xpose.msra.mxu0 0
        %825 = vmatprep.subr.bf16.mxu0 0
        %826 = vmatpush1.bf16.xpose.msra.mxu0 0
        %827 = vmatprep.subr.bf16.mxu0 0
        %828 = vmatpush1.bf16.xpose.msra.mxu0 0
        %829 = vmatprep.subr.bf16.mxu0 0
        %830 = vmatpush1.bf16.xpose.msra.mxu0 0
        %831 = vmatprep.subr.bf16.mxu0 0
        %832 = vmatpush1.bf16.xpose.msra.mxu0 0
        %833 = vmatprep.subr.bf16.mxu0 0
        %834 = vmatpush1.bf16.xpose.msra.mxu0 0
        %835 = vmatprep.mubr.bf16.mxu0 0
        %836 = vmatmul.mubr.bf16.gmra.mrb[0].mxu0 %v590
        %v837 = vpop.f32.mrb[0].mxu0
        %v838 = vadd.f32 0.0, %v837
        %v839 = vpop.f32.mrb[0].mxu0
        %v840 = vpop.f32.mrb[0].mxu0
        %v841 = vadd.f32 0.0, %v840
        %v842 = vpop.f32.mrb[0].mxu0
        %843 = vmatprep.mubr.bf16.mxu0 0
        %844 = vmatmul.mubr.bf16.gmra.mrb[0].mxu0 %v591
        %v845 = vpop.f32.mrb[0].mxu0
        %v846 = vadd.f32 0.0, %v845
        %v847 = vpop.f32.mrb[0].mxu0
        %v848 = vpop.f32.mrb[0].mxu0
        %v849 = vadd.f32 0.0, %v848
        %v850 = vpop.f32.mrb[0].mxu0
        %851 = vdwg.mxu0
        %s852 = scalar_lea.vmem %s433, 64 [#allocation10]
        %v853 = vld [vmem:[%s852] sm:$0xf]
        %v854 = vld [vmem:[%s852 + $0x4] sm:$0xf]
        %v855 = vld [vmem:[%s852 + $0x8] sm:$0xf]
        %v856 = vld [vmem:[%s852 + $0xc] sm:$0xf]
        %v857 = vld [vmem:[%s852 + $0x10] sm:$0xf]
        %v858 = vld [vmem:[%s852 + $0x14] sm:$0xf]
        %v859 = vld [vmem:[%s852 + $0x18] sm:$0xf]
        %v860 = vld [vmem:[%s852 + $0x1c] sm:$0xf]
        %v861 = vld [vmem:[%s852 + $0x20] sm:$0xf]
        %v862 = vld [vmem:[%s852 + $0x24] sm:$0xf]
        %v863 = vld [vmem:[%s852 + $0x28] sm:$0xf]
        %v864 = vld [vmem:[%s852 + $0x2c] sm:$0xf]
        %v865 = vld [vmem:[%s852 + $0x30] sm:$0xf]
        %v866 = vld [vmem:[%s852 + $0x34] sm:$0xf]
        %v867 = vld [vmem:[%s852 + $0x38] sm:$0xf]
        %v868 = vld [vmem:[%s852 + $0x3c] sm:$0xf]
        %v873 = vunpack.c.l.b16 %v853
        %v874 = vunpack.c.l.b16 %v854
        %v875 = vunpack.c.l.b16 %v855
        %v876 = vunpack.c.l.b16 %v856
        %v877 = vpack.c.b16 %v874, %v873
        %v878 = vpack.c.b16 %v876, %v875
        %881 = vmatprep.subr.bf16.mxu0 0
        %882 = vmatpush1.bf16.xpose.msra.mxu0 %v877
        %883 = vmatprep.subr.bf16.mxu0 0
        %884 = vmatpush1.bf16.xpose.msra.mxu0 %v878
        %885 = vmatprep.subr.bf16.mxu0 0
        %886 = vmatpush1.bf16.xpose.msra.mxu0 0
        %887 = vmatprep.subr.bf16.mxu0 0
        %888 = vmatpush1.bf16.xpose.msra.mxu0 0
        %889 = vmatprep.subr.bf16.mxu0 0
        %890 = vmatpush1.bf16.xpose.msra.mxu0 0
        %891 = vmatprep.subr.bf16.mxu0 0
        %892 = vmatpush1.bf16.xpose.msra.mxu0 0
        %893 = vmatprep.subr.bf16.mxu0 0
        %894 = vmatpush1.bf16.xpose.msra.mxu0 0
        %895 = vmatprep.subr.bf16.mxu0 0
        %896 = vmatpush1.bf16.xpose.msra.mxu0 0
        %897 = vmatprep.subr.bf16.mxu0 0
        %898 = vmatpush1.bf16.xpose.msra.mxu0 0
        %899 = vmatprep.subr.bf16.mxu0 0
        %900 = vmatpush1.bf16.xpose.msra.mxu0 0
        %901 = vmatprep.subr.bf16.mxu0 0
        %902 = vmatpush1.bf16.xpose.msra.mxu0 0
        %903 = vmatprep.subr.bf16.mxu0 0
        %904 = vmatpush1.bf16.xpose.msra.mxu0 0
        %905 = vmatprep.subr.bf16.mxu0 0
        %906 = vmatpush1.bf16.xpose.msra.mxu0 0
        %907 = vmatprep.subr.bf16.mxu0 0
        %908 = vmatpush1.bf16.xpose.msra.mxu0 0
        %909 = vmatprep.subr.bf16.mxu0 0
        %910 = vmatpush1.bf16.xpose.msra.mxu0 0
        %911 = vmatprep.subr.bf16.mxu0 0
        %912 = vmatpush1.bf16.xpose.msra.mxu0 0
        %913 = vmatprep.mubr.bf16.mxu0 0
        %914 = vmatmul.mubr.bf16.gmra.mrb[0].mxu0 %v590
        %v915 = vpop.f32.mrb[0].mxu0
        %v916 = vadd.f32 0.0, %v915
        %v917 = vpop.f32.mrb[0].mxu0
        %v918 = vpop.f32.mrb[0].mxu0
        %v919 = vadd.f32 0.0, %v918
        %v920 = vpop.f32.mrb[0].mxu0
        %921 = vmatprep.mubr.bf16.mxu0 0
        %922 = vmatmul.mubr.bf16.gmra.mrb[0].mxu0 %v591
        %v923 = vpop.f32.mrb[0].mxu0
        %v924 = vadd.f32 0.0, %v923
        %v925 = vpop.f32.mrb[0].mxu0
        %v926 = vpop.f32.mrb[0].mxu0
        %v927 = vadd.f32 0.0, %v926
        %v928 = vpop.f32.mrb[0].mxu0
        %929 = vdwg.mxu0
        %v934 = vunpack.c.l.b16 %v857
        %v935 = vunpack.c.l.b16 %v858
        %v936 = vunpack.c.l.b16 %v859
        %v937 = vunpack.c.l.b16 %v860
        %v938 = vpack.c.b16 %v935, %v934
        %v939 = vpack.c.b16 %v937, %v936
        %942 = vmatprep.subr.bf16.mxu0 0
        %943 = vmatpush1.bf16.xpose.msra.mxu0 %v938
        %944 = vmatprep.subr.bf16.mxu0 0
        %945 = vmatpush1.bf16.xpose.msra.mxu0 %v939
        %946 = vmatprep.subr.bf16.mxu0 0
        %947 = vmatpush1.bf16.xpose.msra.mxu0 0
        %948 = vmatprep.subr.bf16.mxu0 0
        %949 = vmatpush1.bf16.xpose.msra.mxu0 0
        %950 = vmatprep.subr.bf16.mxu0 0
        %951 = vmatpush1.bf16.xpose.msra.mxu0 0
        %952 = vmatprep.subr.bf16.mxu0 0
        %953 = vmatpush1.bf16.xpose.msra.mxu0 0
        %954 = vmatprep.subr.bf16.mxu0 0
        %955 = vmatpush1.bf16.xpose.msra.mxu0 0
        %956 = vmatprep.subr.bf16.mxu0 0
        %957 = vmatpush1.bf16.xpose.msra.mxu0 0
        %958 = vmatprep.subr.bf16.mxu0 0
        %959 = vmatpush1.bf16.xpose.msra.mxu0 0
        %960 = vmatprep.subr.bf16.mxu0 0
        %961 = vmatpush1.bf16.xpose.msra.mxu0 0
        %962 = vmatprep.subr.bf16.mxu0 0
        %963 = vmatpush1.bf16.xpose.msra.mxu0 0
        %964 = vmatprep.subr.bf16.mxu0 0
        %965 = vmatpush1.bf16.xpose.msra.mxu0 0
        %966 = vmatprep.subr.bf16.mxu0 0
        %967 = vmatpush1.bf16.xpose.msra.mxu0 0
        %968 = vmatprep.subr.bf16.mxu0 0
        %969 = vmatpush1.bf16.xpose.msra.mxu0 0
        %970 = vmatprep.subr.bf16.mxu0 0
        %971 = vmatpush1.bf16.xpose.msra.mxu0 0
        %972 = vmatprep.subr.bf16.mxu0 0
        %973 = vmatpush1.bf16.xpose.msra.mxu0 0
        %974 = vmatprep.mubr.bf16.mxu0 0
        %975 = vmatmul.mubr.bf16.gmra.mrb[0].mxu0 %v590
        %v976 = vpop.f32.mrb[0].mxu0
        %v977 = vadd.f32 0.0, %v976
        %v978 = vpop.f32.mrb[0].mxu0
        %v979 = vpop.f32.mrb[0].mxu0
        %v980 = vadd.f32 0.0, %v979
        %v981 = vpop.f32.mrb[0].mxu0
        %982 = vmatprep.mubr.bf16.mxu0 0
        %983 = vmatmul.mubr.bf16.gmra.mrb[0].mxu0 %v591
        %v984 = vpop.f32.mrb[0].mxu0
        %v985 = vadd.f32 0.0, %v984
        %v986 = vpop.f32.mrb[0].mxu0
        %v987 = vpop.f32.mrb[0].mxu0
        %v988 = vadd.f32 0.0, %v987
        %v989 = vpop.f32.mrb[0].mxu0
        %990 = vdwg.mxu0
        %v995 = vunpack.c.l.b16 %v861
        %v996 = vunpack.c.l.b16 %v862
        %v997 = vunpack.c.l.b16 %v863
        %v998 = vunpack.c.l.b16 %v864
        %v999 = vpack.c.b16 %v996, %v995
        %v1000 = vpack.c.b16 %v998, %v997
        %1003 = vmatprep.subr.bf16.mxu0 0
        %1004 = vmatpush1.bf16.xpose.msra.mxu0 %v999
        %1005 = vmatprep.subr.bf16.mxu0 0
        %1006 = vmatpush1.bf16.xpose.msra.mxu0 %v1000
        %1007 = vmatprep.subr.bf16.mxu0 0
        %1008 = vmatpush1.bf16.xpose.msra.mxu0 0
        %1009 = vmatprep.subr.bf16.mxu0 0
        %1010 = vmatpush1.bf16.xpose.msra.mxu0 0
        %1011 = vmatprep.subr.bf16.mxu0 0
        %1012 = vmatpush1.bf16.xpose.msra.mxu0 0
        %1013 = vmatprep.subr.bf16.mxu0 0
        %1014 = vmatpush1.bf16.xpose.msra.mxu0 0
        %1015 = vmatprep.subr.bf16.mxu0 0
        %1016 = vmatpush1.bf16.xpose.msra.mxu0 0
        %1017 = vmatprep.subr.bf16.mxu0 0
        %1018 = vmatpush1.bf16.xpose.msra.mxu0 0
        %1019 = vmatprep.subr.bf16.mxu0 0
        %1020 = vmatpush1.bf16.xpose.msra.mxu0 0
        %1021 = vmatprep.subr.bf16.mxu0 0
        %1022 = vmatpush1.bf16.xpose.msra.mxu0 0
        %1023 = vmatprep.subr.bf16.mxu0 0
        %1024 = vmatpush1.bf16.xpose.msra.mxu0 0
        %1025 = vmatprep.subr.bf16.mxu0 0
        %1026 = vmatpush1.bf16.xpose.msra.mxu0 0
        %1027 = vmatprep.subr.bf16.mxu0 0
        %1028 = vmatpush1.bf16.xpose.msra.mxu0 0
        %1029 = vmatprep.subr.bf16.mxu0 0
        %1030 = vmatpush1.bf16.xpose.msra.mxu0 0
        %1031 = vmatprep.subr.bf16.mxu0 0
        %1032 = vmatpush1.bf16.xpose.msra.mxu0 0
        %1033 = vmatprep.subr.bf16.mxu0 0
        %1034 = vmatpush1.bf16.xpose.msra.mxu0 0
        %1035 = vmatprep.mubr.bf16.mxu0 0
        %1036 = vmatmul.mubr.bf16.gmra.mrb[0].mxu0 %v590
        %v1037 = vpop.f32.mrb[0].mxu0
        %v1038 = vadd.f32 0.0, %v1037
        %v1039 = vpop.f32.mrb[0].mxu0
        %v1040 = vpop.f32.mrb[0].mxu0
        %v1041 = vadd.f32 0.0, %v1040
        %v1042 = vpop.f32.mrb[0].mxu0
        %1043 = vmatprep.mubr.bf16.mxu0 0
        %1044 = vmatmul.mubr.bf16.gmra.mrb[0].mxu0 %v591
        %v1045 = vpop.f32.mrb[0].mxu0
        %v1046 = vadd.f32 0.0, %v1045
        %v1047 = vpop.f32.mrb[0].mxu0
        %v1048 = vpop.f32.mrb[0].mxu0
        %v1049 = vadd.f32 0.0, %v1048
        %v1050 = vpop.f32.mrb[0].mxu0
        %1051 = vdwg.mxu0
        %v1056 = vunpack.c.l.b16 %v865
        %v1057 = vunpack.c.l.b16 %v866
        %v1058 = vunpack.c.l.b16 %v867
        %v1059 = vunpack.c.l.b16 %v868
        %v1060 = vpack.c.b16 %v1057, %v1056
        %v1061 = vpack.c.b16 %v1059, %v1058
        %1064 = vmatprep.subr.bf16.mxu0 0
        %1065 = vmatpush1.bf16.xpose.msra.mxu0 %v1060
        %1066 = vmatprep.subr.bf16.mxu0 0
        %1067 = vmatpush1.bf16.xpose.msra.mxu0 %v1061
        %1068 = vmatprep.subr.bf16.mxu0 0
        %1069 = vmatpush1.bf16.xpose.msra.mxu0 0
        %1070 = vmatprep.subr.bf16.mxu0 0
        %1071 = vmatpush1.bf16.xpose.msra.mxu0 0
        %1072 = vmatprep.subr.bf16.mxu0 0
        %1073 = vmatpush1.bf16.xpose.msra.mxu0 0
        %1074 = vmatprep.subr.bf16.mxu0 0
        %1075 = vmatpush1.bf16.xpose.msra.mxu0 0
        %1076 = vmatprep.subr.bf16.mxu0 0
        %1077 = vmatpush1.bf16.xpose.msra.mxu0 0
        %1078 = vmatprep.subr.bf16.mxu0 0
        %1079 = vmatpush1.bf16.xpose.msra.mxu0 0
        %1080 = vmatprep.subr.bf16.mxu0 0
        %1081 = vmatpush1.bf16.xpose.msra.mxu0 0
        %1082 = vmatprep.subr.bf16.mxu0 0
        %1083 = vmatpush1.bf16.xpose.msra.mxu0 0
        %1084 = vmatprep.subr.bf16.mxu0 0
        %1085 = vmatpush1.bf16.xpose.msra.mxu0 0
        %1086 = vmatprep.subr.bf16.mxu0 0
        %1087 = vmatpush1.bf16.xpose.msra.mxu0 0
        %1088 = vmatprep.subr.bf16.mxu0 0
        %1089 = vmatpush1.bf16.xpose.msra.mxu0 0
        %1090 = vmatprep.subr.bf16.mxu0 0
        %1091 = vmatpush1.bf16.xpose.msra.mxu0 0
        %1092 = vmatprep.subr.bf16.mxu0 0
        %1093 = vmatpush1.bf16.xpose.msra.mxu0 0
        %1094 = vmatprep.subr.bf16.mxu0 0
        %1095 = vmatpush1.bf16.xpose.msra.mxu0 0
        %1096 = vmatprep.mubr.bf16.mxu0 0
        %1097 = vmatmul.mubr.bf16.gmra.mrb[0].mxu0 %v590
        %v1098 = vpop.f32.mrb[0].mxu0
        %v1099 = vadd.f32 0.0, %v1098
        %v1100 = vpop.f32.mrb[0].mxu0
        %v1101 = vpop.f32.mrb[0].mxu0
        %v1102 = vadd.f32 0.0, %v1101
        %v1103 = vpop.f32.mrb[0].mxu0
        %1104 = vmatprep.mubr.bf16.mxu0 0
        %1105 = vmatmul.mubr.bf16.gmra.mrb[0].mxu0 %v591
        %v1106 = vpop.f32.mrb[0].mxu0
        %v1107 = vadd.f32 0.0, %v1106
        %v1108 = vpop.f32.mrb[0].mxu0
        %v1109 = vpop.f32.mrb[0].mxu0
        %v1110 = vadd.f32 0.0, %v1109
        %v1111 = vpop.f32.mrb[0].mxu0
        %1112 = vdwg.mxu0
        %s1113 = scalar_lea.vmem %s433, 128 [#allocation10]
        %v1114 = vld [vmem:[%s1113] sm:$0xf]
        %v1115 = vld [vmem:[%s1113 + $0x4] sm:$0xf]
        %v1116 = vld [vmem:[%s1113 + $0x8] sm:$0xf]
        %v1117 = vld [vmem:[%s1113 + $0xc] sm:$0xf]
        %v1118 = vld [vmem:[%s1113 + $0x10] sm:$0xf]
        %v1119 = vld [vmem:[%s1113 + $0x14] sm:$0xf]
        %v1120 = vld [vmem:[%s1113 + $0x18] sm:$0xf]
        %v1121 = vld [vmem:[%s1113 + $0x1c] sm:$0xf]
        %v1122 = vld [vmem:[%s1113 + $0x20] sm:$0xf]
        %v1123 = vld [vmem:[%s1113 + $0x24] sm:$0xf]
        %v1124 = vld [vmem:[%s1113 + $0x28] sm:$0xf]
        %v1125 = vld [vmem:[%s1113 + $0x2c] sm:$0xf]
        %v1126 = vld [vmem:[%s1113 + $0x30] sm:$0xf]
        %v1127 = vld [vmem:[%s1113 + $0x34] sm:$0xf]
        %v1128 = vld [vmem:[%s1113 + $0x38] sm:$0xf]
        %v1129 = vld [vmem:[%s1113 + $0x3c] sm:$0xf]
        %v1134 = vunpack.c.l.b16 %v1114
        %v1135 = vunpack.c.l.b16 %v1115
        %v1136 = vunpack.c.l.b16 %v1116
        %v1137 = vunpack.c.l.b16 %v1117
        %v1138 = vpack.c.b16 %v1135, %v1134
        %v1139 = vpack.c.b16 %v1137, %v1136
        %1142 = vmatprep.subr.bf16.mxu0 0
        %1143 = vmatpush1.bf16.xpose.msra.mxu0 %v1138
        %1144 = vmatprep.subr.bf16.mxu0 0
        %1145 = vmatpush1.bf16.xpose.msra.mxu0 %v1139
        %1146 = vmatprep.subr.bf16.mxu0 0
        %1147 = vmatpush1.bf16.xpose.msra.mxu0 0
        %1148 = vmatprep.subr.bf16.mxu0 0
        %1149 = vmatpush1.bf16.xpose.msra.mxu0 0
        %1150 = vmatprep.subr.bf16.mxu0 0
        %1151 = vmatpush1.bf16.xpose.msra.mxu0 0
        %1152 = vmatprep.subr.bf16.mxu0 0
        %1153 = vmatpush1.bf16.xpose.msra.mxu0 0
        %1154 = vmatprep.subr.bf16.mxu0 0
        %1155 = vmatpush1.bf16.xpose.msra.mxu0 0
        %1156 = vmatprep.subr.bf16.mxu0 0
        %1157 = vmatpush1.bf16.xpose.msra.mxu0 0
        %1158 = vmatprep.subr.bf16.mxu0 0
        %1159 = vmatpush1.bf16.xpose.msra.mxu0 0
        %1160 = vmatprep.subr.bf16.mxu0 0
        %1161 = vmatpush1.bf16.xpose.msra.mxu0 0
        %1162 = vmatprep.subr.bf16.mxu0 0
        %1163 = vmatpush1.bf16.xpose.msra.mxu0 0
        %1164 = vmatprep.subr.bf16.mxu0 0
        %1165 = vmatpush1.bf16.xpose.msra.mxu0 0
        %1166 = vmatprep.subr.bf16.mxu0 0
        %1167 = vmatpush1.bf16.xpose.msra.mxu0 0
        %1168 = vmatprep.subr.bf16.mxu0 0
        %1169 = vmatpush1.bf16.xpose.msra.mxu0 0
        %1170 = vmatprep.subr.bf16.mxu0 0
        %1171 = vmatpush1.bf16.xpose.msra.mxu0 0
        %1172 = vmatprep.subr.bf16.mxu0 0
        %1173 = vmatpush1.bf16.xpose.msra.mxu0 0
        %1174 = vmatprep.mubr.bf16.mxu0 0
        %1175 = vmatmul.mubr.bf16.gmra.mrb[0].mxu0 %v590
        %v1176 = vpop.f32.mrb[0].mxu0
        %v1177 = vadd.f32 0.0, %v1176
        %v1178 = vpop.f32.mrb[0].mxu0
        %v1179 = vpop.f32.mrb[0].mxu0
        %v1180 = vadd.f32 0.0, %v1179
        %v1181 = vpop.f32.mrb[0].mxu0
        %1182 = vmatprep.mubr.bf16.mxu0 0
        %1183 = vmatmul.mubr.bf16.gmra.mrb[0].mxu0 %v591
        %v1184 = vpop.f32.mrb[0].mxu0
        %v1185 = vadd.f32 0.0, %v1184
        %v1186 = vpop.f32.mrb[0].mxu0
        %v1187 = vpop.f32.mrb[0].mxu0
        %v1188 = vadd.f32 0.0, %v1187
        %v1189 = vpop.f32.mrb[0].mxu0
        %1190 = vdwg.mxu0
        %v1195 = vunpack.c.l.b16 %v1118
        %v1196 = vunpack.c.l.b16 %v1119
        %v1197 = vunpack.c.l.b16 %v1120
        %v1198 = vunpack.c.l.b16 %v1121
        %v1199 = vpack.c.b16 %v1196, %v1195
        %v1200 = vpack.c.b16 %v1198, %v1197
        %1203 = vmatprep.subr.bf16.mxu0 0
        %1204 = vmatpush1.bf16.xpose.msra.mxu0 %v1199
        %1205 = vmatprep.subr.bf16.mxu0 0
        %1206 = vmatpush1.bf16.xpose.msra.mxu0 %v1200
        %1207 = vmatprep.subr.bf16.mxu0 0
        %1208 = vmatpush1.bf16.xpose.msra.mxu0 0
        %1209 = vmatprep.subr.bf16.mxu0 0
        %1210 = vmatpush1.bf16.xpose.msra.mxu0 0
        %1211 = vmatprep.subr.bf16.mxu0 0
        %1212 = vmatpush1.bf16.xpose.msra.mxu0 0
        %1213 = vmatprep.subr.bf16.mxu0 0
        %1214 = vmatpush1.bf16.xpose.msra.mxu0 0
        %1215 = vmatprep.subr.bf16.mxu0 0
        %1216 = vmatpush1.bf16.xpose.msra.mxu0 0
        %1217 = vmatprep.subr.bf16.mxu0 0
        %1218 = vmatpush1.bf16.xpose.msra.mxu0 0
        %1219 = vmatprep.subr.bf16.mxu0 0
        %1220 = vmatpush1.bf16.xpose.msra.mxu0 0
        %1221 = vmatprep.subr.bf16.mxu0 0
        %1222 = vmatpush1.bf16.xpose.msra.mxu0 0
        %1223 = vmatprep.subr.bf16.mxu0 0
        %1224 = vmatpush1.bf16.xpose.msra.mxu0 0
        %1225 = vmatprep.subr.bf16.mxu0 0
        %1226 = vmatpush1.bf16.xpose.msra.mxu0 0
        %1227 = vmatprep.subr.bf16.mxu0 0
        %1228 = vmatpush1.bf16.xpose.msra.mxu0 0
        %1229 = vmatprep.subr.bf16.mxu0 0
        %1230 = vmatpush1.bf16.xpose.msra.mxu0 0
        %1231 = vmatprep.subr.bf16.mxu0 0
        %1232 = vmatpush1.bf16.xpose.msra.mxu0 0
        %1233 = vmatprep.subr.bf16.mxu0 0
        %1234 = vmatpush1.bf16.xpose.msra.mxu0 0
        %1235 = vmatprep.mubr.bf16.mxu0 0
        %1236 = vmatmul.mubr.bf16.gmra.mrb[0].mxu0 %v590
        %v1237 = vpop.f32.mrb[0].mxu0
        %v1238 = vadd.f32 0.0, %v1237
        %v1239 = vpop.f32.mrb[0].mxu0
        %v1240 = vpop.f32.mrb[0].mxu0
        %v1241 = vadd.f32 0.0, %v1240
        %v1242 = vpop.f32.mrb[0].mxu0
        %1243 = vmatprep.mubr.bf16.mxu0 0
        %1244 = vmatmul.mubr.bf16.gmra.mrb[0].mxu0 %v591
        %v1245 = vpop.f32.mrb[0].mxu0
        %v1246 = vadd.f32 0.0, %v1245
        %v1247 = vpop.f32.mrb[0].mxu0
        %v1248 = vpop.f32.mrb[0].mxu0
        %v1249 = vadd.f32 0.0, %v1248
        %v1250 = vpop.f32.mrb[0].mxu0
        %1251 = vdwg.mxu0
        %v1256 = vunpack.c.l.b16 %v1122
        %v1257 = vunpack.c.l.b16 %v1123
        %v1258 = vunpack.c.l.b16 %v1124
        %v1259 = vunpack.c.l.b16 %v1125
        %v1260 = vpack.c.b16 %v1257, %v1256
        %v1261 = vpack.c.b16 %v1259, %v1258
        %1264 = vmatprep.subr.bf16.mxu0 0
        %1265 = vmatpush1.bf16.xpose.msra.mxu0 %v1260
        %1266 = vmatprep.subr.bf16.mxu0 0
        %1267 = vmatpush1.bf16.xpose.msra.mxu0 %v1261
        %1268 = vmatprep.subr.bf16.mxu0 0
        %1269 = vmatpush1.bf16.xpose.msra.mxu0 0
        %1270 = vmatprep.subr.bf16.mxu0 0
        %1271 = vmatpush1.bf16.xpose.msra.mxu0 0
        %1272 = vmatprep.subr.bf16.mxu0 0
        %1273 = vmatpush1.bf16.xpose.msra.mxu0 0
        %1274 = vmatprep.subr.bf16.mxu0 0
        %1275 = vmatpush1.bf16.xpose.msra.mxu0 0
        %1276 = vmatprep.subr.bf16.mxu0 0
        %1277 = vmatpush1.bf16.xpose.msra.mxu0 0
        %1278 = vmatprep.subr.bf16.mxu0 0
        %1279 = vmatpush1.bf16.xpose.msra.mxu0 0
        %1280 = vmatprep.subr.bf16.mxu0 0
        %1281 = vmatpush1.bf16.xpose.msra.mxu0 0
        %1282 = vmatprep.subr.bf16.mxu0 0
        %1283 = vmatpush1.bf16.xpose.msra.mxu0 0
        %1284 = vmatprep.subr.bf16.mxu0 0
        %1285 = vmatpush1.bf16.xpose.msra.mxu0 0
        %1286 = vmatprep.subr.bf16.mxu0 0
        %1287 = vmatpush1.bf16.xpose.msra.mxu0 0
        %1288 = vmatprep.subr.bf16.mxu0 0
        %1289 = vmatpush1.bf16.xpose.msra.mxu0 0
        %1290 = vmatprep.subr.bf16.mxu0 0
        %1291 = vmatpush1.bf16.xpose.msra.mxu0 0
        %1292 = vmatprep.subr.bf16.mxu0 0
        %1293 = vmatpush1.bf16.xpose.msra.mxu0 0
        %1294 = vmatprep.subr.bf16.mxu0 0
        %1295 = vmatpush1.bf16.xpose.msra.mxu0 0
        %1296 = vmatprep.mubr.bf16.mxu0 0
        %1297 = vmatmul.mubr.bf16.gmra.mrb[0].mxu0 %v590
        %v1298 = vpop.f32.mrb[0].mxu0
        %v1299 = vadd.f32 0.0, %v1298
        %v1300 = vpop.f32.mrb[0].mxu0
        %v1301 = vpop.f32.mrb[0].mxu0
        %v1302 = vadd.f32 0.0, %v1301
        %v1303 = vpop.f32.mrb[0].mxu0
        %1304 = vmatprep.mubr.bf16.mxu0 0
        %1305 = vmatmul.mubr.bf16.gmra.mrb[0].mxu0 %v591
        %v1306 = vpop.f32.mrb[0].mxu0
        %v1307 = vadd.f32 0.0, %v1306
        %v1308 = vpop.f32.mrb[0].mxu0
        %v1309 = vpop.f32.mrb[0].mxu0
        %v1310 = vadd.f32 0.0, %v1309
        %v1311 = vpop.f32.mrb[0].mxu0
        %1312 = vdwg.mxu0
        %v1317 = vunpack.c.l.b16 %v1126
        %v1318 = vunpack.c.l.b16 %v1127
        %v1319 = vunpack.c.l.b16 %v1128
        %v1320 = vunpack.c.l.b16 %v1129
        %v1321 = vpack.c.b16 %v1318, %v1317
        %v1322 = vpack.c.b16 %v1320, %v1319
        %1325 = vmatprep.subr.bf16.mxu0 0
        %1326 = vmatpush1.bf16.xpose.msra.mxu0 %v1321
        %1327 = vmatprep.subr.bf16.mxu0 0
        %1328 = vmatpush1.bf16.xpose.msra.mxu0 %v1322
        %1329 = vmatprep.subr.bf16.mxu0 0
        %1330 = vmatpush1.bf16.xpose.msra.mxu0 0
        %1331 = vmatprep.subr.bf16.mxu0 0
        %1332 = vmatpush1.bf16.xpose.msra.mxu0 0
        %1333 = vmatprep.subr.bf16.mxu0 0
        %1334 = vmatpush1.bf16.xpose.msra.mxu0 0
        %1335 = vmatprep.subr.bf16.mxu0 0
        %1336 = vmatpush1.bf16.xpose.msra.mxu0 0
        %1337 = vmatprep.subr.bf16.mxu0 0
        %1338 = vmatpush1.bf16.xpose.msra.mxu0 0
        %1339 = vmatprep.subr.bf16.mxu0 0
        %1340 = vmatpush1.bf16.xpose.msra.mxu0 0
        %1341 = vmatprep.subr.bf16.mxu0 0
        %1342 = vmatpush1.bf16.xpose.msra.mxu0 0
        %1343 = vmatprep.subr.bf16.mxu0 0
        %1344 = vmatpush1.bf16.xpose.msra.mxu0 0
        %1345 = vmatprep.subr.bf16.mxu0 0
        %1346 = vmatpush1.bf16.xpose.msra.mxu0 0
        %1347 = vmatprep.subr.bf16.mxu0 0
        %1348 = vmatpush1.bf16.xpose.msra.mxu0 0
        %1349 = vmatprep.subr.bf16.mxu0 0
        %1350 = vmatpush1.bf16.xpose.msra.mxu0 0
        %1351 = vmatprep.subr.bf16.mxu0 0
        %1352 = vmatpush1.bf16.xpose.msra.mxu0 0
        %1353 = vmatprep.subr.bf16.mxu0 0
        %1354 = vmatpush1.bf16.xpose.msra.mxu0 0
        %1355 = vmatprep.subr.bf16.mxu0 0
        %1356 = vmatpush1.bf16.xpose.msra.mxu0 0
        %1357 = vmatprep.mubr.bf16.mxu0 0
        %1358 = vmatmul.mubr.bf16.gmra.mrb[0].mxu0 %v590
        %v1359 = vpop.f32.mrb[0].mxu0
        %v1360 = vadd.f32 0.0, %v1359
        %v1361 = vpop.f32.mrb[0].mxu0
        %v1362 = vpop.f32.mrb[0].mxu0
        %v1363 = vadd.f32 0.0, %v1362
        %v1364 = vpop.f32.mrb[0].mxu0
        %1365 = vmatprep.mubr.bf16.mxu0 0
        %1366 = vmatmul.mubr.bf16.gmra.mrb[0].mxu0 %v591
        %v1367 = vpop.f32.mrb[0].mxu0
        %v1368 = vadd.f32 0.0, %v1367
        %v1369 = vpop.f32.mrb[0].mxu0
        %v1370 = vpop.f32.mrb[0].mxu0
        %v1371 = vadd.f32 0.0, %v1370
        %v1372 = vpop.f32.mrb[0].mxu0
        %1373 = vdwg.mxu0
        %s1374 = scalar_lea.vmem %s433, 192 [#allocation10]
        %v1375 = vld [vmem:[%s1374] sm:$0xf]
        %v1376 = vld [vmem:[%s1374 + $0x4] sm:$0xf]
        %v1377 = vld [vmem:[%s1374 + $0x8] sm:$0xf]
        %v1378 = vld [vmem:[%s1374 + $0xc] sm:$0xf]
        %v1379 = vld [vmem:[%s1374 + $0x10] sm:$0xf]
        %v1380 = vld [vmem:[%s1374 + $0x14] sm:$0xf]
        %v1381 = vld [vmem:[%s1374 + $0x18] sm:$0xf]
        %v1382 = vld [vmem:[%s1374 + $0x1c] sm:$0xf]
        %v1383 = vld [vmem:[%s1374 + $0x20] sm:$0xf]
        %v1384 = vld [vmem:[%s1374 + $0x24] sm:$0xf]
        %v1385 = vld [vmem:[%s1374 + $0x28] sm:$0xf]
        %v1386 = vld [vmem:[%s1374 + $0x2c] sm:$0xf]
        %v1387 = vld [vmem:[%s1374 + $0x30] sm:$0xf]
        %v1388 = vld [vmem:[%s1374 + $0x34] sm:$0xf]
        %v1389 = vld [vmem:[%s1374 + $0x38] sm:$0xf]
        %v1390 = vld [vmem:[%s1374 + $0x3c] sm:$0xf]
        %v1395 = vunpack.c.l.b16 %v1375
        %v1396 = vunpack.c.l.b16 %v1376
        %v1397 = vunpack.c.l.b16 %v1377
        %v1398 = vunpack.c.l.b16 %v1378
        %v1399 = vpack.c.b16 %v1396, %v1395
        %v1400 = vpack.c.b16 %v1398, %v1397
        %1403 = vmatprep.subr.bf16.mxu0 0
        %1404 = vmatpush1.bf16.xpose.msra.mxu0 %v1399
        %1405 = vmatprep.subr.bf16.mxu0 0
        %1406 = vmatpush1.bf16.xpose.msra.mxu0 %v1400
        %1407 = vmatprep.subr.bf16.mxu0 0
        %1408 = vmatpush1.bf16.xpose.msra.mxu0 0
        %1409 = vmatprep.subr.bf16.mxu0 0
        %1410 = vmatpush1.bf16.xpose.msra.mxu0 0
        %1411 = vmatprep.subr.bf16.mxu0 0
        %1412 = vmatpush1.bf16.xpose.msra.mxu0 0
        %1413 = vmatprep.subr.bf16.mxu0 0
        %1414 = vmatpush1.bf16.xpose.msra.mxu0 0
        %1415 = vmatprep.subr.bf16.mxu0 0
        %1416 = vmatpush1.bf16.xpose.msra.mxu0 0
        %1417 = vmatprep.subr.bf16.mxu0 0
        %1418 = vmatpush1.bf16.xpose.msra.mxu0 0
        %1419 = vmatprep.subr.bf16.mxu0 0
        %1420 = vmatpush1.bf16.xpose.msra.mxu0 0
        %1421 = vmatprep.subr.bf16.mxu0 0
        %1422 = vmatpush1.bf16.xpose.msra.mxu0 0
        %1423 = vmatprep.subr.bf16.mxu0 0
        %1424 = vmatpush1.bf16.xpose.msra.mxu0 0
        %1425 = vmatprep.subr.bf16.mxu0 0
        %1426 = vmatpush1.bf16.xpose.msra.mxu0 0
        %1427 = vmatprep.subr.bf16.mxu0 0
        %1428 = vmatpush1.bf16.xpose.msra.mxu0 0
        %1429 = vmatprep.subr.bf16.mxu0 0
        %1430 = vmatpush1.bf16.xpose.msra.mxu0 0
        %1431 = vmatprep.subr.bf16.mxu0 0
        %1432 = vmatpush1.bf16.xpose.msra.mxu0 0
        %1433 = vmatprep.subr.bf16.mxu0 0
        %1434 = vmatpush1.bf16.xpose.msra.mxu0 0
        %1435 = vmatprep.mubr.bf16.mxu0 0
        %1436 = vmatmul.mubr.bf16.gmra.mrb[0].mxu0 %v590
        %v1437 = vpop.f32.mrb[0].mxu0
        %v1438 = vadd.f32 0.0, %v1437
        %v1439 = vpop.f32.mrb[0].mxu0
        %v1440 = vpop.f32.mrb[0].mxu0
        %v1441 = vadd.f32 0.0, %v1440
        %v1442 = vpop.f32.mrb[0].mxu0
        %1443 = vmatprep.mubr.bf16.mxu0 0
        %1444 = vmatmul.mubr.bf16.gmra.mrb[0].mxu0 %v591
        %v1445 = vpop.f32.mrb[0].mxu0
        %v1446 = vadd.f32 0.0, %v1445
        %v1447 = vpop.f32.mrb[0].mxu0
        %v1448 = vpop.f32.mrb[0].mxu0
        %v1449 = vadd.f32 0.0, %v1448
        %v1450 = vpop.f32.mrb[0].mxu0
        %1451 = vdwg.mxu0
        %v1456 = vunpack.c.l.b16 %v1379
        %v1457 = vunpack.c.l.b16 %v1380
        %v1458 = vunpack.c.l.b16 %v1381
        %v1459 = vunpack.c.l.b16 %v1382
        %v1460 = vpack.c.b16 %v1457, %v1456
        %v1461 = vpack.c.b16 %v1459, %v1458
        %1464 = vmatprep.subr.bf16.mxu0 0
        %1465 = vmatpush1.bf16.xpose.msra.mxu0 %v1460
        %1466 = vmatprep.subr.bf16.mxu0 0
        %1467 = vmatpush1.bf16.xpose.msra.mxu0 %v1461
        %1468 = vmatprep.subr.bf16.mxu0 0
        %1469 = vmatpush1.bf16.xpose.msra.mxu0 0
        %1470 = vmatprep.subr.bf16.mxu0 0
        %1471 = vmatpush1.bf16.xpose.msra.mxu0 0
        %1472 = vmatprep.subr.bf16.mxu0 0
        %1473 = vmatpush1.bf16.xpose.msra.mxu0 0
        %1474 = vmatprep.subr.bf16.mxu0 0
        %1475 = vmatpush1.bf16.xpose.msra.mxu0 0
        %1476 = vmatprep.subr.bf16.mxu0 0
        %1477 = vmatpush1.bf16.xpose.msra.mxu0 0
        %1478 = vmatprep.subr.bf16.mxu0 0
        %1479 = vmatpush1.bf16.xpose.msra.mxu0 0
        %1480 = vmatprep.subr.bf16.mxu0 0
        %1481 = vmatpush1.bf16.xpose.msra.mxu0 0
        %1482 = vmatprep.subr.bf16.mxu0 0
        %1483 = vmatpush1.bf16.xpose.msra.mxu0 0
        %1484 = vmatprep.subr.bf16.mxu0 0
        %1485 = vmatpush1.bf16.xpose.msra.mxu0 0
        %1486 = vmatprep.subr.bf16.mxu0 0
        %1487 = vmatpush1.bf16.xpose.msra.mxu0 0
        %1488 = vmatprep.subr.bf16.mxu0 0
        %1489 = vmatpush1.bf16.xpose.msra.mxu0 0
        %1490 = vmatprep.subr.bf16.mxu0 0
        %1491 = vmatpush1.bf16.xpose.msra.mxu0 0
        %1492 = vmatprep.subr.bf16.mxu0 0
        %1493 = vmatpush1.bf16.xpose.msra.mxu0 0
        %1494 = vmatprep.subr.bf16.mxu0 0
        %1495 = vmatpush1.bf16.xpose.msra.mxu0 0
        %1496 = vmatprep.mubr.bf16.mxu0 0
        %1497 = vmatmul.mubr.bf16.gmra.mrb[0].mxu0 %v590
        %v1498 = vpop.f32.mrb[0].mxu0
        %v1499 = vadd.f32 0.0, %v1498
        %v1500 = vpop.f32.mrb[0].mxu0
        %v1501 = vpop.f32.mrb[0].mxu0
        %v1502 = vadd.f32 0.0, %v1501
        %v1503 = vpop.f32.mrb[0].mxu0
        %1504 = vmatprep.mubr.bf16.mxu0 0
        %1505 = vmatmul.mubr.bf16.gmra.mrb[0].mxu0 %v591
        %v1506 = vpop.f32.mrb[0].mxu0
        %v1507 = vadd.f32 0.0, %v1506
        %v1508 = vpop.f32.mrb[0].mxu0
        %v1509 = vpop.f32.mrb[0].mxu0
        %v1510 = vadd.f32 0.0, %v1509
        %v1511 = vpop.f32.mrb[0].mxu0
        %1512 = vdwg.mxu0
        %v1517 = vunpack.c.l.b16 %v1383
        %v1518 = vunpack.c.l.b16 %v1384
        %v1519 = vunpack.c.l.b16 %v1385
        %v1520 = vunpack.c.l.b16 %v1386
        %v1521 = vpack.c.b16 %v1518, %v1517
        %v1522 = vpack.c.b16 %v1520, %v1519
        %1525 = vmatprep.subr.bf16.mxu0 0
        %1526 = vmatpush1.bf16.xpose.msra.mxu0 %v1521
        %1527 = vmatprep.subr.bf16.mxu0 0
        %1528 = vmatpush1.bf16.xpose.msra.mxu0 %v1522
        %1529 = vmatprep.subr.bf16.mxu0 0
        %1530 = vmatpush1.bf16.xpose.msra.mxu0 0
        %1531 = vmatprep.subr.bf16.mxu0 0
        %1532 = vmatpush1.bf16.xpose.msra.mxu0 0
        %1533 = vmatprep.subr.bf16.mxu0 0
        %1534 = vmatpush1.bf16.xpose.msra.mxu0 0
        %1535 = vmatprep.subr.bf16.mxu0 0
        %1536 = vmatpush1.bf16.xpose.msra.mxu0 0
        %1537 = vmatprep.subr.bf16.mxu0 0
        %1538 = vmatpush1.bf16.xpose.msra.mxu0 0
        %1539 = vmatprep.subr.bf16.mxu0 0
        %1540 = vmatpush1.bf16.xpose.msra.mxu0 0
        %1541 = vmatprep.subr.bf16.mxu0 0
        %1542 = vmatpush1.bf16.xpose.msra.mxu0 0
        %1543 = vmatprep.subr.bf16.mxu0 0
        %1544 = vmatpush1.bf16.xpose.msra.mxu0 0
        %1545 = vmatprep.subr.bf16.mxu0 0
        %1546 = vmatpush1.bf16.xpose.msra.mxu0 0
        %1547 = vmatprep.subr.bf16.mxu0 0
        %1548 = vmatpush1.bf16.xpose.msra.mxu0 0
        %1549 = vmatprep.subr.bf16.mxu0 0
        %1550 = vmatpush1.bf16.xpose.msra.mxu0 0
        %1551 = vmatprep.subr.bf16.mxu0 0
        %1552 = vmatpush1.bf16.xpose.msra.mxu0 0
        %1553 = vmatprep.subr.bf16.mxu0 0
        %1554 = vmatpush1.bf16.xpose.msra.mxu0 0
        %1555 = vmatprep.subr.bf16.mxu0 0
        %1556 = vmatpush1.bf16.xpose.msra.mxu0 0
        %1557 = vmatprep.mubr.bf16.mxu0 0
        %1558 = vmatmul.mubr.bf16.gmra.mrb[0].mxu0 %v590
        %v1559 = vpop.f32.mrb[0].mxu0
        %v1560 = vadd.f32 0.0, %v1559
        %v1561 = vpop.f32.mrb[0].mxu0
        %v1562 = vpop.f32.mrb[0].mxu0
        %v1563 = vadd.f32 0.0, %v1562
        %v1564 = vpop.f32.mrb[0].mxu0
        %1565 = vmatprep.mubr.bf16.mxu0 0
        %1566 = vmatmul.mubr.bf16.gmra.mrb[0].mxu0 %v591
        %v1567 = vpop.f32.mrb[0].mxu0
        %v1568 = vadd.f32 0.0, %v1567
        %v1569 = vpop.f32.mrb[0].mxu0
        %v1570 = vpop.f32.mrb[0].mxu0
        %v1571 = vadd.f32 0.0, %v1570
        %v1572 = vpop.f32.mrb[0].mxu0
        %1573 = vdwg.mxu0
        %v1578 = vunpack.c.l.b16 %v1387
        %v1579 = vunpack.c.l.b16 %v1388
        %v1580 = vunpack.c.l.b16 %v1389
        %v1581 = vunpack.c.l.b16 %v1390
        %v1582 = vpack.c.b16 %v1579, %v1578
        %v1583 = vpack.c.b16 %v1581, %v1580
        %1586 = vmatprep.subr.bf16.mxu0 0
        %1587 = vmatpush1.bf16.xpose.msra.mxu0 %v1582
        %1588 = vmatprep.subr.bf16.mxu0 0
        %1589 = vmatpush1.bf16.xpose.msra.mxu0 %v1583
        %1590 = vmatprep.subr.bf16.mxu0 0
        %1591 = vmatpush1.bf16.xpose.msra.mxu0 0
        %1592 = vmatprep.subr.bf16.mxu0 0
        %1593 = vmatpush1.bf16.xpose.msra.mxu0 0
        %1594 = vmatprep.subr.bf16.mxu0 0
        %1595 = vmatpush1.bf16.xpose.msra.mxu0 0
        %1596 = vmatprep.subr.bf16.mxu0 0
        %1597 = vmatpush1.bf16.xpose.msra.mxu0 0
        %1598 = vmatprep.subr.bf16.mxu0 0
        %1599 = vmatpush1.bf16.xpose.msra.mxu0 0
        %1600 = vmatprep.subr.bf16.mxu0 0
        %1601 = vmatpush1.bf16.xpose.msra.mxu0 0
        %1602 = vmatprep.subr.bf16.mxu0 0
        %1603 = vmatpush1.bf16.xpose.msra.mxu0 0
        %1604 = vmatprep.subr.bf16.mxu0 0
        %1605 = vmatpush1.bf16.xpose.msra.mxu0 0
        %1606 = vmatprep.subr.bf16.mxu0 0
        %1607 = vmatpush1.bf16.xpose.msra.mxu0 0
        %1608 = vmatprep.subr.bf16.mxu0 0
        %1609 = vmatpush1.bf16.xpose.msra.mxu0 0
        %1610 = vmatprep.subr.bf16.mxu0 0
        %1611 = vmatpush1.bf16.xpose.msra.mxu0 0
        %1612 = vmatprep.subr.bf16.mxu0 0
        %1613 = vmatpush1.bf16.xpose.msra.mxu0 0
        %1614 = vmatprep.subr.bf16.mxu0 0
        %1615 = vmatpush1.bf16.xpose.msra.mxu0 0
        %1616 = vmatprep.subr.bf16.mxu0 0
        %1617 = vmatpush1.bf16.xpose.msra.mxu0 0
        %1618 = vmatprep.mubr.bf16.mxu0 0
        %1619 = vmatmul.mubr.bf16.gmra.mrb[0].mxu0 %v590
        %v1620 = vpop.f32.mrb[0].mxu0
        %v1621 = vadd.f32 0.0, %v1620
        %v1622 = vpop.f32.mrb[0].mxu0
        %v1623 = vpop.f32.mrb[0].mxu0
        %v1624 = vadd.f32 0.0, %v1623
        %v1625 = vpop.f32.mrb[0].mxu0
        %1626 = vmatprep.mubr.bf16.mxu0 0
        %1627 = vmatmul.mubr.bf16.gmra.mrb[0].mxu0 %v591
        %v1628 = vpop.f32.mrb[0].mxu0
        %v1629 = vadd.f32 0.0, %v1628
        %v1630 = vpop.f32.mrb[0].mxu0
        %v1631 = vpop.f32.mrb[0].mxu0
        %v1632 = vadd.f32 0.0, %v1631
        %v1633 = vpop.f32.mrb[0].mxu0
        %1634 = vdwg.mxu0
        %s1635 = scalar_lea.vmem %s433, 256 [#allocation10]
        %v1636 = vld [vmem:[%s1635] sm:$0xf]
        %v1637 = vld [vmem:[%s1635 + $0x4] sm:$0xf]
        %v1638 = vld [vmem:[%s1635 + $0x8] sm:$0xf]
        %v1639 = vld [vmem:[%s1635 + $0xc] sm:$0xf]
        %v1640 = vld [vmem:[%s1635 + $0x10] sm:$0xf]
        %v1641 = vld [vmem:[%s1635 + $0x14] sm:$0xf]
        %v1642 = vld [vmem:[%s1635 + $0x18] sm:$0xf]
        %v1643 = vld [vmem:[%s1635 + $0x1c] sm:$0xf]
        %v1644 = vld [vmem:[%s1635 + $0x20] sm:$0xf]
        %v1645 = vld [vmem:[%s1635 + $0x24] sm:$0xf]
        %v1646 = vld [vmem:[%s1635 + $0x28] sm:$0xf]
        %v1647 = vld [vmem:[%s1635 + $0x2c] sm:$0xf]
        %v1648 = vld [vmem:[%s1635 + $0x30] sm:$0xf]
        %v1649 = vld [vmem:[%s1635 + $0x34] sm:$0xf]
        %v1650 = vld [vmem:[%s1635 + $0x38] sm:$0xf]
        %v1651 = vld [vmem:[%s1635 + $0x3c] sm:$0xf]
        %v1656 = vunpack.c.l.b16 %v1636
        %v1657 = vunpack.c.l.b16 %v1637
        %v1658 = vunpack.c.l.b16 %v1638
        %v1659 = vunpack.c.l.b16 %v1639
        %v1660 = vpack.c.b16 %v1657, %v1656
        %v1661 = vpack.c.b16 %v1659, %v1658
        %1664 = vmatprep.subr.bf16.mxu0 0
        %1665 = vmatpush1.bf16.xpose.msra.mxu0 %v1660
        %1666 = vmatprep.subr.bf16.mxu0 0
        %1667 = vmatpush1.bf16.xpose.msra.mxu0 %v1661
        %1668 = vmatprep.subr.bf16.mxu0 0
        %1669 = vmatpush1.bf16.xpose.msra.mxu0 0
        %1670 = vmatprep.subr.bf16.mxu0 0
        %1671 = vmatpush1.bf16.xpose.msra.mxu0 0
        %1672 = vmatprep.subr.bf16.mxu0 0
        %1673 = vmatpush1.bf16.xpose.msra.mxu0 0
        %1674 = vmatprep.subr.bf16.mxu0 0
        %1675 = vmatpush1.bf16.xpose.msra.mxu0 0
        %1676 = vmatprep.subr.bf16.mxu0 0
        %1677 = vmatpush1.bf16.xpose.msra.mxu0 0
        %1678 = vmatprep.subr.bf16.mxu0 0
        %1679 = vmatpush1.bf16.xpose.msra.mxu0 0
        %1680 = vmatprep.subr.bf16.mxu0 0
        %1681 = vmatpush1.bf16.xpose.msra.mxu0 0
        %1682 = vmatprep.subr.bf16.mxu0 0
        %1683 = vmatpush1.bf16.xpose.msra.mxu0 0
        %1684 = vmatprep.subr.bf16.mxu0 0
        %1685 = vmatpush1.bf16.xpose.msra.mxu0 0
        %1686 = vmatprep.subr.bf16.mxu0 0
        %1687 = vmatpush1.bf16.xpose.msra.mxu0 0
        %1688 = vmatprep.subr.bf16.mxu0 0
        %1689 = vmatpush1.bf16.xpose.msra.mxu0 0
        %1690 = vmatprep.subr.bf16.mxu0 0
        %1691 = vmatpush1.bf16.xpose.msra.mxu0 0
        %1692 = vmatprep.subr.bf16.mxu0 0
        %1693 = vmatpush1.bf16.xpose.msra.mxu0 0
        %1694 = vmatprep.subr.bf16.mxu0 0
        %1695 = vmatpush1.bf16.xpose.msra.mxu0 0
        %1696 = vmatprep.mubr.bf16.mxu0 0
        %1697 = vmatmul.mubr.bf16.gmra.mrb[0].mxu0 %v590
        %v1698 = vpop.f32.mrb[0].mxu0
        %v1699 = vadd.f32 0.0, %v1698
        %v1700 = vpop.f32.mrb[0].mxu0
        %v1701 = vpop.f32.mrb[0].mxu0
        %v1702 = vadd.f32 0.0, %v1701
        %v1703 = vpop.f32.mrb[0].mxu0
        %1704 = vmatprep.mubr.bf16.mxu0 0
        %1705 = vmatmul.mubr.bf16.gmra.mrb[0].mxu0 %v591
        %v1706 = vpop.f32.mrb[0].mxu0
        %v1707 = vadd.f32 0.0, %v1706
        %v1708 = vpop.f32.mrb[0].mxu0
        %v1709 = vpop.f32.mrb[0].mxu0
        %v1710 = vadd.f32 0.0, %v1709
        %v1711 = vpop.f32.mrb[0].mxu0
        %1712 = vdwg.mxu0
        %v1717 = vunpack.c.l.b16 %v1640
        %v1718 = vunpack.c.l.b16 %v1641
        %v1719 = vunpack.c.l.b16 %v1642
        %v1720 = vunpack.c.l.b16 %v1643
        %v1721 = vpack.c.b16 %v1718, %v1717
        %v1722 = vpack.c.b16 %v1720, %v1719
        %1725 = vmatprep.subr.bf16.mxu0 0
        %1726 = vmatpush1.bf16.xpose.msra.mxu0 %v1721
        %1727 = vmatprep.subr.bf16.mxu0 0
        %1728 = vmatpush1.bf16.xpose.msra.mxu0 %v1722
        %1729 = vmatprep.subr.bf16.mxu0 0
        %1730 = vmatpush1.bf16.xpose.msra.mxu0 0
        %1731 = vmatprep.subr.bf16.mxu0 0
        %1732 = vmatpush1.bf16.xpose.msra.mxu0 0
        %1733 = vmatprep.subr.bf16.mxu0 0
        %1734 = vmatpush1.bf16.xpose.msra.mxu0 0
        %1735 = vmatprep.subr.bf16.mxu0 0
        %1736 = vmatpush1.bf16.xpose.msra.mxu0 0
        %1737 = vmatprep.subr.bf16.mxu0 0
        %1738 = vmatpush1.bf16.xpose.msra.mxu0 0
        %1739 = vmatprep.subr.bf16.mxu0 0
        %1740 = vmatpush1.bf16.xpose.msra.mxu0 0
        %1741 = vmatprep.subr.bf16.mxu0 0
        %1742 = vmatpush1.bf16.xpose.msra.mxu0 0
        %1743 = vmatprep.subr.bf16.mxu0 0
        %1744 = vmatpush1.bf16.xpose.msra.mxu0 0
        %1745 = vmatprep.subr.bf16.mxu0 0
        %1746 = vmatpush1.bf16.xpose.msra.mxu0 0
        %1747 = vmatprep.subr.bf16.mxu0 0
        %1748 = vmatpush1.bf16.xpose.msra.mxu0 0
        %1749 = vmatprep.subr.bf16.mxu0 0
        %1750 = vmatpush1.bf16.xpose.msra.mxu0 0
        %1751 = vmatprep.subr.bf16.mxu0 0
        %1752 = vmatpush1.bf16.xpose.msra.mxu0 0
        %1753 = vmatprep.subr.bf16.mxu0 0
        %1754 = vmatpush1.bf16.xpose.msra.mxu0 0
        %1755 = vmatprep.subr.bf16.mxu0 0
        %1756 = vmatpush1.bf16.xpose.msra.mxu0 0
        %1757 = vmatprep.mubr.bf16.mxu0 0
        %1758 = vmatmul.mubr.bf16.gmra.mrb[0].mxu0 %v590
        %v1759 = vpop.f32.mrb[0].mxu0
        %v1760 = vadd.f32 0.0, %v1759
        %v1761 = vpop.f32.mrb[0].mxu0
        %v1762 = vpop.f32.mrb[0].mxu0
        %v1763 = vadd.f32 0.0, %v1762
        %v1764 = vpop.f32.mrb[0].mxu0
        %1765 = vmatprep.mubr.bf16.mxu0 0
        %1766 = vmatmul.mubr.bf16.gmra.mrb[0].mxu0 %v591
        %v1767 = vpop.f32.mrb[0].mxu0
        %v1768 = vadd.f32 0.0, %v1767
        %v1769 = vpop.f32.mrb[0].mxu0
        %v1770 = vpop.f32.mrb[0].mxu0
        %v1771 = vadd.f32 0.0, %v1770
        %v1772 = vpop.f32.mrb[0].mxu0
        %1773 = vdwg.mxu0
        %v1778 = vunpack.c.l.b16 %v1644
        %v1779 = vunpack.c.l.b16 %v1645
        %v1780 = vunpack.c.l.b16 %v1646
        %v1781 = vunpack.c.l.b16 %v1647
        %v1782 = vpack.c.b16 %v1779, %v1778
        %v1783 = vpack.c.b16 %v1781, %v1780
        %1786 = vmatprep.subr.bf16.mxu0 0
        %1787 = vmatpush1.bf16.xpose.msra.mxu0 %v1782
        %1788 = vmatprep.subr.bf16.mxu0 0
        %1789 = vmatpush1.bf16.xpose.msra.mxu0 %v1783
        %1790 = vmatprep.subr.bf16.mxu0 0
        %1791 = vmatpush1.bf16.xpose.msra.mxu0 0
        %1792 = vmatprep.subr.bf16.mxu0 0
        %1793 = vmatpush1.bf16.xpose.msra.mxu0 0
        %1794 = vmatprep.subr.bf16.mxu0 0
        %1795 = vmatpush1.bf16.xpose.msra.mxu0 0
        %1796 = vmatprep.subr.bf16.mxu0 0
        %1797 = vmatpush1.bf16.xpose.msra.mxu0 0
        %1798 = vmatprep.subr.bf16.mxu0 0
        %1799 = vmatpush1.bf16.xpose.msra.mxu0 0
        %1800 = vmatprep.subr.bf16.mxu0 0
        %1801 = vmatpush1.bf16.xpose.msra.mxu0 0
        %1802 = vmatprep.subr.bf16.mxu0 0
        %1803 = vmatpush1.bf16.xpose.msra.mxu0 0
        %1804 = vmatprep.subr.bf16.mxu0 0
        %1805 = vmatpush1.bf16.xpose.msra.mxu0 0
        %1806 = vmatprep.subr.bf16.mxu0 0
        %1807 = vmatpush1.bf16.xpose.msra.mxu0 0
        %1808 = vmatprep.subr.bf16.mxu0 0
        %1809 = vmatpush1.bf16.xpose.msra.mxu0 0
        %1810 = vmatprep.subr.bf16.mxu0 0
        %1811 = vmatpush1.bf16.xpose.msra.mxu0 0
        %1812 = vmatprep.subr.bf16.mxu0 0
        %1813 = vmatpush1.bf16.xpose.msra.mxu0 0
        %1814 = vmatprep.subr.bf16.mxu0 0
        %1815 = vmatpush1.bf16.xpose.msra.mxu0 0
        %1816 = vmatprep.subr.bf16.mxu0 0
        %1817 = vmatpush1.bf16.xpose.msra.mxu0 0
        %1818 = vmatprep.mubr.bf16.mxu0 0
        %1819 = vmatmul.mubr.bf16.gmra.mrb[0].mxu0 %v590
        %v1820 = vpop.f32.mrb[0].mxu0
        %v1821 = vadd.f32 0.0, %v1820
        %v1822 = vpop.f32.mrb[0].mxu0
        %v1823 = vpop.f32.mrb[0].mxu0
        %v1824 = vadd.f32 0.0, %v1823
        %v1825 = vpop.f32.mrb[0].mxu0
        %1826 = vmatprep.mubr.bf16.mxu0 0
        %1827 = vmatmul.mubr.bf16.gmra.mrb[0].mxu0 %v591
        %v1828 = vpop.f32.mrb[0].mxu0
        %v1829 = vadd.f32 0.0, %v1828
        %v1830 = vpop.f32.mrb[0].mxu0
        %v1831 = vpop.f32.mrb[0].mxu0
        %v1832 = vadd.f32 0.0, %v1831
        %v1833 = vpop.f32.mrb[0].mxu0
        %1834 = vdwg.mxu0
        %v1839 = vunpack.c.l.b16 %v1648
        %v1840 = vunpack.c.l.b16 %v1649
        %v1841 = vunpack.c.l.b16 %v1650
        %v1842 = vunpack.c.l.b16 %v1651
        %v1843 = vpack.c.b16 %v1840, %v1839
        %v1844 = vpack.c.b16 %v1842, %v1841
        %1847 = vmatprep.subr.bf16.mxu0 0
        %1848 = vmatpush1.bf16.xpose.msra.mxu0 %v1843
        %1849 = vmatprep.subr.bf16.mxu0 0
        %1850 = vmatpush1.bf16.xpose.msra.mxu0 %v1844
        %1851 = vmatprep.subr.bf16.mxu0 0
        %1852 = vmatpush1.bf16.xpose.msra.mxu0 0
        %1853 = vmatprep.subr.bf16.mxu0 0
        %1854 = vmatpush1.bf16.xpose.msra.mxu0 0
        %1855 = vmatprep.subr.bf16.mxu0 0
        %1856 = vmatpush1.bf16.xpose.msra.mxu0 0
        %1857 = vmatprep.subr.bf16.mxu0 0
        %1858 = vmatpush1.bf16.xpose.msra.mxu0 0
        %1859 = vmatprep.subr.bf16.mxu0 0
        %1860 = vmatpush1.bf16.xpose.msra.mxu0 0
        %1861 = vmatprep.subr.bf16.mxu0 0
        %1862 = vmatpush1.bf16.xpose.msra.mxu0 0
        %1863 = vmatprep.subr.bf16.mxu0 0
        %1864 = vmatpush1.bf16.xpose.msra.mxu0 0
        %1865 = vmatprep.subr.bf16.mxu0 0
        %1866 = vmatpush1.bf16.xpose.msra.mxu0 0
        %1867 = vmatprep.subr.bf16.mxu0 0
        %1868 = vmatpush1.bf16.xpose.msra.mxu0 0
        %1869 = vmatprep.subr.bf16.mxu0 0
        %1870 = vmatpush1.bf16.xpose.msra.mxu0 0
        %1871 = vmatprep.subr.bf16.mxu0 0
        %1872 = vmatpush1.bf16.xpose.msra.mxu0 0
        %1873 = vmatprep.subr.bf16.mxu0 0
        %1874 = vmatpush1.bf16.xpose.msra.mxu0 0
        %1875 = vmatprep.subr.bf16.mxu0 0
        %1876 = vmatpush1.bf16.xpose.msra.mxu0 0
        %1877 = vmatprep.subr.bf16.mxu0 0
        %1878 = vmatpush1.bf16.xpose.msra.mxu0 0
        %1879 = vmatprep.mubr.bf16.mxu0 0
        %1880 = vmatmul.mubr.bf16.gmra.mrb[0].mxu0 %v590
        %v1881 = vpop.f32.mrb[0].mxu0
        %v1882 = vadd.f32 0.0, %v1881
        %v1883 = vpop.f32.mrb[0].mxu0
        %v1884 = vpop.f32.mrb[0].mxu0
        %v1885 = vadd.f32 0.0, %v1884
        %v1886 = vpop.f32.mrb[0].mxu0
        %1887 = vmatprep.mubr.bf16.mxu0 0
        %1888 = vmatmul.mubr.bf16.gmra.mrb[0].mxu0 %v591
        %v1889 = vpop.f32.mrb[0].mxu0
        %v1890 = vadd.f32 0.0, %v1889
        %v1891 = vpop.f32.mrb[0].mxu0
        %v1892 = vpop.f32.mrb[0].mxu0
        %v1893 = vadd.f32 0.0, %v1892
        %v1894 = vpop.f32.mrb[0].mxu0
        %1895 = vdwg.mxu0
        %v1896 = vld [vmem:[#allocation5] sm:$0xff]
        %v1897 = vld [vmem:[#allocation5 + $0x8] sm:$0xff]
        %v1898 = vld [vmem:[#allocation7] sm:$0xff]
        %v1899 = vld [vmem:[#allocation7 + $0x8] sm:$0xff]
        %v1900 = vmul.f32 %v655, %v1896
        %v1901 = vmul.f32 %v658, %v1897
        %v1902 = vmul.f32 %v663, %v1896
        %v1903 = vmul.f32 %v666, %v1897
        %v1904 = vmul.f32 %v716, %v1896
        %v1905 = vmul.f32 %v719, %v1897
        %v1906 = vmul.f32 %v724, %v1896
        %v1907 = vmul.f32 %v727, %v1897
        %v1908 = vmul.f32 %v777, %v1896
        %v1909 = vmul.f32 %v780, %v1897
        %v1910 = vmul.f32 %v785, %v1896
        %v1911 = vmul.f32 %v788, %v1897
        %v1912 = vmul.f32 %v838, %v1896
        %v1913 = vmul.f32 %v841, %v1897
        %v1914 = vmul.f32 %v846, %v1896
        %v1915 = vmul.f32 %v849, %v1897
        %v1916 = vmul.f32 %v916, %v1898
        %v1917 = vmul.f32 %v919, %v1899
        %v1918 = vmul.f32 %v924, %v1898
        %v1919 = vmul.f32 %v927, %v1899
        %v1920 = vmul.f32 %v977, %v1898
        %v1921 = vmul.f32 %v980, %v1899
        %v1922 = vmul.f32 %v985, %v1898
        %v1923 = vmul.f32 %v988, %v1899
        %v1924 = vmul.f32 %v1038, %v1898
        %v1925 = vmul.f32 %v1041, %v1899
        %v1926 = vmul.f32 %v1046, %v1898
        %v1927 = vmul.f32 %v1049, %v1899
        %v1928 = vmul.f32 %v1099, %v1898
        %v1929 = vmul.f32 %v1102, %v1899
        %v1930 = vmul.f32 %v1107, %v1898
        %v1931 = vmul.f32 %v1110, %v1899
        %v1932 = vadd.f32 %v1900, %v1916
        %v1933 = vadd.f32 %v1901, %v1917
        %v1934 = vadd.f32 %v1902, %v1918
        %v1935 = vadd.f32 %v1903, %v1919
        %v1936 = vadd.f32 %v1904, %v1920
        %v1937 = vadd.f32 %v1905, %v1921
        %v1938 = vadd.f32 %v1906, %v1922
        %v1939 = vadd.f32 %v1907, %v1923
        %v1940 = vadd.f32 %v1908, %v1924
        %v1941 = vadd.f32 %v1909, %v1925
        %v1942 = vadd.f32 %v1910, %v1926
        %v1943 = vadd.f32 %v1911, %v1927
        %v1944 = vadd.f32 %v1912, %v1928
        %v1945 = vadd.f32 %v1913, %v1929
        %v1946 = vadd.f32 %v1914, %v1930
        %v1947 = vadd.f32 %v1915, %v1931
        %v1948 = vmul.f32 %v1177, %v1896
        %v1949 = vmul.f32 %v1180, %v1897
        %v1950 = vmul.f32 %v1185, %v1896
        %v1951 = vmul.f32 %v1188, %v1897
        %v1952 = vmul.f32 %v1238, %v1896
        %v1953 = vmul.f32 %v1241, %v1897
        %v1954 = vmul.f32 %v1246, %v1896
        %v1955 = vmul.f32 %v1249, %v1897
        %v1956 = vmul.f32 %v1299, %v1896
        %v1957 = vmul.f32 %v1302, %v1897
        %v1958 = vmul.f32 %v1307, %v1896
        %v1959 = vmul.f32 %v1310, %v1897
        %v1960 = vmul.f32 %v1360, %v1896
        %v1961 = vmul.f32 %v1363, %v1897
        %v1962 = vmul.f32 %v1368, %v1896
        %v1963 = vmul.f32 %v1371, %v1897
        %v1964 = vmul.f32 %v1438, %v1898
        %v1965 = vmul.f32 %v1441, %v1899
        %v1966 = vmul.f32 %v1446, %v1898
        %v1967 = vmul.f32 %v1449, %v1899
        %v1968 = vmul.f32 %v1499, %v1898
        %v1969 = vmul.f32 %v1502, %v1899
        %v1970 = vmul.f32 %v1507, %v1898
        %v1971 = vmul.f32 %v1510, %v1899
        %v1972 = vmul.f32 %v1560, %v1898
        %v1973 = vmul.f32 %v1563, %v1899
        %v1974 = vmul.f32 %v1568, %v1898
        %v1975 = vmul.f32 %v1571, %v1899
        %v1976 = vmul.f32 %v1621, %v1898
        %v1977 = vmul.f32 %v1624, %v1899
        %v1978 = vmul.f32 %v1629, %v1898
        %v1979 = vmul.f32 %v1632, %v1899
        %v1980 = vadd.f32 %v1948, %v1964
        %v1981 = vadd.f32 %v1949, %v1965
        %v1982 = vadd.f32 %v1950, %v1966
        %v1983 = vadd.f32 %v1951, %v1967
        %v1984 = vadd.f32 %v1952, %v1968
        %v1985 = vadd.f32 %v1953, %v1969
        %v1986 = vadd.f32 %v1954, %v1970
        %v1987 = vadd.f32 %v1955, %v1971
        %v1988 = vadd.f32 %v1956, %v1972
        %v1989 = vadd.f32 %v1957, %v1973
        %v1990 = vadd.f32 %v1958, %v1974
        %v1991 = vadd.f32 %v1959, %v1975
        %v1992 = vadd.f32 %v1960, %v1976
        %v1993 = vadd.f32 %v1961, %v1977
        %v1994 = vadd.f32 %v1962, %v1978
        %v1995 = vadd.f32 %v1963, %v1979
        %v1996 = vlaneseq
        %v1997 = vshrl.u32 %v1996, 7
        %v1998 = vadd.s32 %v1997, 8
        %v1999 = vlaneseq
        %v2000 = vand.u32 %v1999, 127
        %vm2001 = vcmp.gt.s32.totalorder %v2000, %v1997
        %vm2002 = vcmp.gt.s32.totalorder %v2000, %v1998
        %v2003 = vsel %vm2001, -1e+30, 0.0
        %v2004 = vsel %vm2002, -1e+30, 0.0
        %v2005 = vld [vmem:[%s442] sm:$0xf]
        %v2006 = vld [vmem:[%s442 + $0x4] sm:$0xf]
        %v2007 = vld [vmem:[%s442 + $0x8] sm:$0xf]
        %v2008 = vld [vmem:[%s442 + $0xc] sm:$0xf]
        %v2009 = vld [vmem:[%s442 + $0x10] sm:$0xf]
        %v2010 = vld [vmem:[%s442 + $0x14] sm:$0xf]
        %v2011 = vld [vmem:[%s442 + $0x18] sm:$0xf]
        %v2012 = vld [vmem:[%s442 + $0x1c] sm:$0xf]
        %v2013 = vld [vmem:[%s442 + $0x20] sm:$0xf]
        %v2014 = vld [vmem:[%s442 + $0x24] sm:$0xf]
        %v2015 = vld [vmem:[%s442 + $0x28] sm:$0xf]
        %v2016 = vld [vmem:[%s442 + $0x2c] sm:$0xf]
        %v2017 = vld [vmem:[%s442 + $0x30] sm:$0xf]
        %v2018 = vld [vmem:[%s442 + $0x34] sm:$0xf]
        %v2019 = vld [vmem:[%s442 + $0x38] sm:$0xf]
        %v2020 = vld [vmem:[%s442 + $0x3c] sm:$0xf]
        %v2021 = vpack.c.bf16 %v1933, %v1932
        %v2022 = vpack.c.bf16 %v1937, %v1936
        %v2023 = vpack.c.bf16 %v1941, %v1940
        %v2024 = vpack.c.bf16 %v1945, %v1944
        %v2025 = vpack.c.bf16 %v1981, %v1980
        %v2026 = vpack.c.bf16 %v1985, %v1984
        %v2027 = vpack.c.bf16 %v1989, %v1988
        %v2028 = vpack.c.bf16 %v1993, %v1992
        %v2029 = vpack.c.bf16 %v1702, %v1699
        %v2030 = vpack.c.bf16 %v1763, %v1760
        %v2031 = vpack.c.bf16 %v1824, %v1821
        %v2032 = vpack.c.bf16 %v1885, %v1882
        %vm2033 = vcmask 261120
        %v2035 = vsel %vm2033, %v2021, 0
        %v2038 = vsel %vm2033, %v2025, 0
        %2040 = vmatprep.subr.bf16.mxu0 0
        %2041 = vmatpush1.bf16.xpose.msra.mxu0 %v2038
        %2042 = vmatprep.subr.bf16.mxu0 0
        %2043 = vmatpush1.bf16.xpose.msra.mxu0 0
        %2044 = vmatprep.subr.bf16.mxu0 0
        %2045 = vmatpush1.bf16.xpose.msra.mxu0 0
        %2046 = vmatprep.subr.bf16.mxu0 0
        %2047 = vmatpush1.bf16.xpose.msra.mxu0 0
        %2048 = vmatprep.subr.bf16.mxu0 0
        %2049 = vmatpush1.bf16.xpose.msra.mxu0 0
        %2050 = vmatprep.subr.bf16.mxu0 0
        %2051 = vmatpush1.bf16.xpose.msra.mxu0 0
        %2052 = vmatprep.subr.bf16.mxu0 0
        %2053 = vmatpush1.bf16.xpose.msra.mxu0 0
        %2054 = vmatprep.subr.bf16.mxu0 0
        %2055 = vmatpush1.bf16.xpose.msra.mxu0 0
        %2056 = vmatprep.subr.bf16.mxu0 0
        %2057 = vmatpush1.bf16.xpose.msra.mxu0 0
        %2058 = vmatprep.subr.bf16.mxu0 0
        %2059 = vmatpush1.bf16.xpose.msra.mxu0 0
        %2060 = vmatprep.subr.bf16.mxu0 0
        %2061 = vmatpush1.bf16.xpose.msra.mxu0 0
        %2062 = vmatprep.subr.bf16.mxu0 0
        %2063 = vmatpush1.bf16.xpose.msra.mxu0 0
        %2064 = vmatprep.subr.bf16.mxu0 0
        %2065 = vmatpush1.bf16.xpose.msra.mxu0 0
        %2066 = vmatprep.subr.bf16.mxu0 0
        %2067 = vmatpush1.bf16.xpose.msra.mxu0 0
        %2068 = vmatprep.subr.bf16.mxu0 0
        %2069 = vmatpush1.bf16.xpose.msra.mxu0 0
        %2070 = vmatprep.subr.bf16.mxu0 0
        %2071 = vmatpush1.bf16.xpose.msra.mxu0 0
        %2072 = vmatprep.mubr.bf16.mxu0 0
        %2073 = vmatmul.mubr.bf16.gmra.mrb[0].mxu0 %v2035
        %v2074 = vpop.f32.mrb[0].mxu0
        %v2075 = vadd.f32 %v2003, %v2074
        %v2076 = vpop.f32.mrb[0].mxu0
        %v2077 = vpop.f32.mrb[0].mxu0
        %v2078 = vadd.f32 %v2004, %v2077
        %v2079 = vpop.f32.mrb[0].mxu0
        %2080 = vdwg.mxu0
        %v2082 = vsel %vm2033, %v2022, 0
        %v2085 = vsel %vm2033, %v2026, 0
        %2087 = vmatprep.subr.bf16.mxu0 0
        %2088 = vmatpush1.bf16.xpose.msra.mxu0 %v2085
        %2089 = vmatprep.subr.bf16.mxu0 0
        %2090 = vmatpush1.bf16.xpose.msra.mxu0 0
        %2091 = vmatprep.subr.bf16.mxu0 0
        %2092 = vmatpush1.bf16.xpose.msra.mxu0 0
        %2093 = vmatprep.subr.bf16.mxu0 0
        %2094 = vmatpush1.bf16.xpose.msra.mxu0 0
        %2095 = vmatprep.subr.bf16.mxu0 0
        %2096 = vmatpush1.bf16.xpose.msra.mxu0 0
        %2097 = vmatprep.subr.bf16.mxu0 0
        %2098 = vmatpush1.bf16.xpose.msra.mxu0 0
        %2099 = vmatprep.subr.bf16.mxu0 0
        %2100 = vmatpush1.bf16.xpose.msra.mxu0 0
        %2101 = vmatprep.subr.bf16.mxu0 0
        %2102 = vmatpush1.bf16.xpose.msra.mxu0 0
        %2103 = vmatprep.subr.bf16.mxu0 0
        %2104 = vmatpush1.bf16.xpose.msra.mxu0 0
        %2105 = vmatprep.subr.bf16.mxu0 0
        %2106 = vmatpush1.bf16.xpose.msra.mxu0 0
        %2107 = vmatprep.subr.bf16.mxu0 0
        %2108 = vmatpush1.bf16.xpose.msra.mxu0 0
        %2109 = vmatprep.subr.bf16.mxu0 0
        %2110 = vmatpush1.bf16.xpose.msra.mxu0 0
        %2111 = vmatprep.subr.bf16.mxu0 0
        %2112 = vmatpush1.bf16.xpose.msra.mxu0 0
        %2113 = vmatprep.subr.bf16.mxu0 0
        %2114 = vmatpush1.bf16.xpose.msra.mxu0 0
        %2115 = vmatprep.subr.bf16.mxu0 0
        %2116 = vmatpush1.bf16.xpose.msra.mxu0 0
        %2117 = vmatprep.subr.bf16.mxu0 0
        %2118 = vmatpush1.bf16.xpose.msra.mxu0 0
        %2119 = vmatprep.mubr.bf16.mxu0 0
        %2120 = vmatmul.mubr.bf16.gmra.mrb[0].mxu0 %v2082
        %v2121 = vpop.f32.mrb[0].mxu0
        %v2122 = vadd.f32 %v2003, %v2121
        %v2123 = vpop.f32.mrb[0].mxu0
        %v2124 = vpop.f32.mrb[0].mxu0
        %v2125 = vadd.f32 %v2004, %v2124
        %v2126 = vpop.f32.mrb[0].mxu0
        %2127 = vdwg.mxu0
        %v2129 = vsel %vm2033, %v2023, 0
        %v2132 = vsel %vm2033, %v2027, 0
        %2134 = vmatprep.subr.bf16.mxu0 0
        %2135 = vmatpush1.bf16.xpose.msra.mxu0 %v2132
        %2136 = vmatprep.subr.bf16.mxu0 0
        %2137 = vmatpush1.bf16.xpose.msra.mxu0 0
        %2138 = vmatprep.subr.bf16.mxu0 0
        %2139 = vmatpush1.bf16.xpose.msra.mxu0 0
        %2140 = vmatprep.subr.bf16.mxu0 0
        %2141 = vmatpush1.bf16.xpose.msra.mxu0 0
        %2142 = vmatprep.subr.bf16.mxu0 0
        %2143 = vmatpush1.bf16.xpose.msra.mxu0 0
        %2144 = vmatprep.subr.bf16.mxu0 0
        %2145 = vmatpush1.bf16.xpose.msra.mxu0 0
        %2146 = vmatprep.subr.bf16.mxu0 0
        %2147 = vmatpush1.bf16.xpose.msra.mxu0 0
        %2148 = vmatprep.subr.bf16.mxu0 0
        %2149 = vmatpush1.bf16.xpose.msra.mxu0 0
        %2150 = vmatprep.subr.bf16.mxu0 0
        %2151 = vmatpush1.bf16.xpose.msra.mxu0 0
        %2152 = vmatprep.subr.bf16.mxu0 0
        %2153 = vmatpush1.bf16.xpose.msra.mxu0 0
        %2154 = vmatprep.subr.bf16.mxu0 0
        %2155 = vmatpush1.bf16.xpose.msra.mxu0 0
        %2156 = vmatprep.subr.bf16.mxu0 0
        %2157 = vmatpush1.bf16.xpose.msra.mxu0 0
        %2158 = vmatprep.subr.bf16.mxu0 0
        %2159 = vmatpush1.bf16.xpose.msra.mxu0 0
        %2160 = vmatprep.subr.bf16.mxu0 0
        %2161 = vmatpush1.bf16.xpose.msra.mxu0 0
        %2162 = vmatprep.subr.bf16.mxu0 0
        %2163 = vmatpush1.bf16.xpose.msra.mxu0 0
        %2164 = vmatprep.subr.bf16.mxu0 0
        %2165 = vmatpush1.bf16.xpose.msra.mxu0 0
        %2166 = vmatprep.mubr.bf16.mxu0 0
        %2167 = vmatmul.mubr.bf16.gmra.mrb[0].mxu0 %v2129
        %v2168 = vpop.f32.mrb[0].mxu0
        %v2169 = vadd.f32 %v2003, %v2168
        %v2170 = vpop.f32.mrb[0].mxu0
        %v2171 = vpop.f32.mrb[0].mxu0
        %v2172 = vadd.f32 %v2004, %v2171
        %v2173 = vpop.f32.mrb[0].mxu0
        %2174 = vdwg.mxu0
        %v2176 = vsel %vm2033, %v2024, 0
        %v2179 = vsel %vm2033, %v2028, 0
        %2181 = vmatprep.subr.bf16.mxu0 0
        %2182 = vmatpush1.bf16.xpose.msra.mxu0 %v2179
        %2183 = vmatprep.subr.bf16.mxu0 0
        %2184 = vmatpush1.bf16.xpose.msra.mxu0 0
        %2185 = vmatprep.subr.bf16.mxu0 0
        %2186 = vmatpush1.bf16.xpose.msra.mxu0 0
        %2187 = vmatprep.subr.bf16.mxu0 0
        %2188 = vmatpush1.bf16.xpose.msra.mxu0 0
        %2189 = vmatprep.subr.bf16.mxu0 0
        %2190 = vmatpush1.bf16.xpose.msra.mxu0 0
        %2191 = vmatprep.subr.bf16.mxu0 0
        %2192 = vmatpush1.bf16.xpose.msra.mxu0 0
        %2193 = vmatprep.subr.bf16.mxu0 0
        %2194 = vmatpush1.bf16.xpose.msra.mxu0 0
        %2195 = vmatprep.subr.bf16.mxu0 0
        %2196 = vmatpush1.bf16.xpose.msra.mxu0 0
        %2197 = vmatprep.subr.bf16.mxu0 0
        %2198 = vmatpush1.bf16.xpose.msra.mxu0 0
        %2199 = vmatprep.subr.bf16.mxu0 0
        %2200 = vmatpush1.bf16.xpose.msra.mxu0 0
        %2201 = vmatprep.subr.bf16.mxu0 0
        %2202 = vmatpush1.bf16.xpose.msra.mxu0 0
        %2203 = vmatprep.subr.bf16.mxu0 0
        %2204 = vmatpush1.bf16.xpose.msra.mxu0 0
        %2205 = vmatprep.subr.bf16.mxu0 0
        %2206 = vmatpush1.bf16.xpose.msra.mxu0 0
        %2207 = vmatprep.subr.bf16.mxu0 0
        %2208 = vmatpush1.bf16.xpose.msra.mxu0 0
        %2209 = vmatprep.subr.bf16.mxu0 0
        %2210 = vmatpush1.bf16.xpose.msra.mxu0 0
        %2211 = vmatprep.subr.bf16.mxu0 0
        %2212 = vmatpush1.bf16.xpose.msra.mxu0 0
        %2213 = vmatprep.mubr.bf16.mxu0 0
        %2214 = vmatmul.mubr.bf16.gmra.mrb[0].mxu0 %v2176
        %v2215 = vpop.f32.mrb[0].mxu0
        %v2216 = vadd.f32 %v2003, %v2215
        %v2217 = vpop.f32.mrb[0].mxu0
        %v2218 = vpop.f32.mrb[0].mxu0
        %v2219 = vadd.f32 %v2004, %v2218
        %v2220 = vpop.f32.mrb[0].mxu0
        %2221 = vdwg.mxu0
        %vm2222 = vcmask 130048
        %v2223 = vsel %vm2222, %v2075, -inf
        %2224 = vmax.xlane.f32.xlu0 %v2223
        %v2225 = vpop.xlane.xlu0 %2224
        %v2226 = vsel %vm2222, %v2078, -inf
        %2227 = vmax.xlane.f32.xlu0 %v2226
        %v2228 = vpop.xlane.xlu0 %2227
        %v2229 = vsel %vm2222, %v2122, -inf
        %2230 = vmax.xlane.f32.xlu0 %v2229
        %v2231 = vpop.xlane.xlu0 %2230
        %v2232 = vsel %vm2222, %v2125, -inf
        %2233 = vmax.xlane.f32.xlu0 %v2232
        %v2234 = vpop.xlane.xlu0 %2233
        %v2235 = vsel %vm2222, %v2169, -inf
        %2236 = vmax.xlane.f32.xlu0 %v2235
        %v2237 = vpop.xlane.xlu0 %2236
        %v2238 = vsel %vm2222, %v2172, -inf
        %2239 = vmax.xlane.f32.xlu0 %v2238
        %v2240 = vpop.xlane.xlu0 %2239
        %v2241 = vsel %vm2222, %v2216, -inf
        %2242 = vmax.xlane.f32.xlu0 %v2241
        %v2243 = vpop.xlane.xlu0 %2242
        %v2244 = vsel %vm2222, %v2219, -inf
        %2245 = vmax.xlane.f32.xlu0 %v2244
        %v2246 = vpop.xlane.xlu0 %2245
        %v2247 = vsub.f32 %v2075, %v2225
        %v2248 = vsub.f32 %v2078, %v2228
        %v2249 = vsub.f32 %v2122, %v2231
        %v2250 = vsub.f32 %v2125, %v2234
        %v2251 = vsub.f32 %v2169, %v2237
        %v2252 = vsub.f32 %v2172, %v2240
        %v2253 = vsub.f32 %v2216, %v2243
        %v2254 = vsub.f32 %v2219, %v2246
        %v2255 = vmul.f32 %v2247, 1.442695
        %v2256 = vpow.pop %v2255
        %v2257 = vmul.f32 %v2248, 1.442695
        %v2258 = vpow.pop %v2257
        %v2259 = vmul.f32 %v2249, 1.442695
        %v2260 = vpow.pop %v2259
        %v2261 = vmul.f32 %v2250, 1.442695
        %v2262 = vpow.pop %v2261
        %v2263 = vmul.f32 %v2251, 1.442695
        %v2264 = vpow.pop %v2263
        %v2265 = vmul.f32 %v2252, 1.442695
        %v2266 = vpow.pop %v2265
        %v2267 = vmul.f32 %v2253, 1.442695
        %v2268 = vpow.pop %v2267
        %v2269 = vmul.f32 %v2254, 1.442695
        %v2270 = vpow.pop %v2269
        %v2271 = vsel %vm2222, %v2256, 0.0
        %2272 = vadd.xlane.f32.xlu0 %v2271
        %v2273 = vpop.xlane.xlu0 %2272
        %v2274 = vsel %vm2222, %v2258, 0.0
        %2275 = vadd.xlane.f32.xlu0 %v2274
        %v2276 = vpop.xlane.xlu0 %2275
        %v2277 = vsel %vm2222, %v2260, 0.0
        %2278 = vadd.xlane.f32.xlu0 %v2277
        %v2279 = vpop.xlane.xlu0 %2278
        %v2280 = vsel %vm2222, %v2262, 0.0
        %2281 = vadd.xlane.f32.xlu0 %v2280
        %v2282 = vpop.xlane.xlu0 %2281
        %v2283 = vsel %vm2222, %v2264, 0.0
        %2284 = vadd.xlane.f32.xlu0 %v2283
        %v2285 = vpop.xlane.xlu0 %2284
        %v2286 = vsel %vm2222, %v2266, 0.0
        %2287 = vadd.xlane.f32.xlu0 %v2286
        %v2288 = vpop.xlane.xlu0 %2287
        %v2289 = vsel %vm2222, %v2268, 0.0
        %2290 = vadd.xlane.f32.xlu0 %v2289
        %v2291 = vpop.xlane.xlu0 %2290
        %v2292 = vsel %vm2222, %v2270, 0.0
        %2293 = vadd.xlane.f32.xlu0 %v2292
        %v2294 = vpop.xlane.xlu0 %2293
        %v2295 = vrcp.pop %v2273
        %v2296 = vrcp.pop %v2276
        %v2297 = vrcp.pop %v2279
        %v2298 = vrcp.pop %v2282
        %v2299 = vrcp.pop %v2285
        %v2300 = vrcp.pop %v2288
        %v2301 = vrcp.pop %v2291
        %v2302 = vrcp.pop %v2294
        %v2303 = vmul.f32 %v2256, %v2295
        %v2304 = vmul.f32 %v2258, %v2296
        %v2305 = vmul.f32 %v2260, %v2297
        %v2306 = vmul.f32 %v2262, %v2298
        %v2307 = vmul.f32 %v2264, %v2299
        %v2308 = vmul.f32 %v2266, %v2300
        %v2309 = vmul.f32 %v2268, %v2301
        %v2310 = vmul.f32 %v2270, %v2302
        %v2311 = vpack.c.bf16 %v2304, %v2303
        %v2312 = vpack.c.bf16 %v2306, %v2305
        %v2313 = vpack.c.bf16 %v2308, %v2307
        %v2314 = vpack.c.bf16 %v2310, %v2309
        %v2316 = vsel %vm2222, %v2311, 0
        %2318 = vmatprep.subr.bf16.mxu0 0
        %2319 = vmatpush1.bf16.msra.mxu0 %v2029
        %2320 = vmatprep.subr.bf16.mxu0 0
        %2321 = vmatpush1.bf16.msra.mxu0 0
        %2322 = vmatprep.subr.bf16.mxu0 0
        %2323 = vmatpush1.bf16.msra.mxu0 0
        %2324 = vmatprep.subr.bf16.mxu0 0
        %2325 = vmatpush1.bf16.msra.mxu0 0
        %2326 = vmatprep.subr.bf16.mxu0 0
        %2327 = vmatpush1.bf16.msra.mxu0 0
        %2328 = vmatprep.subr.bf16.mxu0 0
        %2329 = vmatpush1.bf16.msra.mxu0 0
        %2330 = vmatprep.subr.bf16.mxu0 0
        %2331 = vmatpush1.bf16.msra.mxu0 0
        %2332 = vmatprep.subr.bf16.mxu0 0
        %2333 = vmatpush1.bf16.msra.mxu0 0
        %2334 = vmatprep.subr.bf16.mxu0 0
        %2335 = vmatpush1.bf16.msra.mxu0 0
        %2336 = vmatprep.subr.bf16.mxu0 0
        %2337 = vmatpush1.bf16.msra.mxu0 0
        %2338 = vmatprep.subr.bf16.mxu0 0
        %2339 = vmatpush1.bf16.msra.mxu0 0
        %2340 = vmatprep.subr.bf16.mxu0 0
        %2341 = vmatpush1.bf16.msra.mxu0 0
        %2342 = vmatprep.subr.bf16.mxu0 0
        %2343 = vmatpush1.bf16.msra.mxu0 0
        %2344 = vmatprep.subr.bf16.mxu0 0
        %2345 = vmatpush1.bf16.msra.mxu0 0
        %2346 = vmatprep.subr.bf16.mxu0 0
        %2347 = vmatpush1.bf16.msra.mxu0 0
        %2348 = vmatprep.subr.bf16.mxu0 0
        %2349 = vmatpush1.bf16.msra.mxu0 0
        %2350 = vmatprep.mubr.bf16.mxu0 0
        %2351 = vmatmul.mubr.bf16.gmra.mrb[0].mxu0 %v2316
        %v2352 = vpop.f32.mrb[0].mxu0
        %v2353 = vadd.f32 0.0, %v2352
        %v2354 = vpop.f32.mrb[0].mxu0
        %v2355 = vpop.f32.mrb[0].mxu0
        %v2356 = vadd.f32 0.0, %v2355
        %v2357 = vpop.f32.mrb[0].mxu0
        %2358 = vdwg.mxu0
        %v2360 = vsel %vm2222, %v2312, 0
        %2362 = vmatprep.subr.bf16.mxu0 0
        %2363 = vmatpush1.bf16.msra.mxu0 %v2030
        %2364 = vmatprep.subr.bf16.mxu0 0
        %2365 = vmatpush1.bf16.msra.mxu0 0
        %2366 = vmatprep.subr.bf16.mxu0 0
        %2367 = vmatpush1.bf16.msra.mxu0 0
        %2368 = vmatprep.subr.bf16.mxu0 0
        %2369 = vmatpush1.bf16.msra.mxu0 0
        %2370 = vmatprep.subr.bf16.mxu0 0
        %2371 = vmatpush1.bf16.msra.mxu0 0
        %2372 = vmatprep.subr.bf16.mxu0 0
        %2373 = vmatpush1.bf16.msra.mxu0 0
        %2374 = vmatprep.subr.bf16.mxu0 0
        %2375 = vmatpush1.bf16.msra.mxu0 0
        %2376 = vmatprep.subr.bf16.mxu0 0
        %2377 = vmatpush1.bf16.msra.mxu0 0
        %2378 = vmatprep.subr.bf16.mxu0 0
        %2379 = vmatpush1.bf16.msra.mxu0 0
        %2380 = vmatprep.subr.bf16.mxu0 0
        %2381 = vmatpush1.bf16.msra.mxu0 0
        %2382 = vmatprep.subr.bf16.mxu0 0
        %2383 = vmatpush1.bf16.msra.mxu0 0
        %2384 = vmatprep.subr.bf16.mxu0 0
        %2385 = vmatpush1.bf16.msra.mxu0 0
        %2386 = vmatprep.subr.bf16.mxu0 0
        %2387 = vmatpush1.bf16.msra.mxu0 0
        %2388 = vmatprep.subr.bf16.mxu0 0
        %2389 = vmatpush1.bf16.msra.mxu0 0
        %2390 = vmatprep.subr.bf16.mxu0 0
        %2391 = vmatpush1.bf16.msra.mxu0 0
        %2392 = vmatprep.subr.bf16.mxu0 0
        %2393 = vmatpush1.bf16.msra.mxu0 0
        %2394 = vmatprep.mubr.bf16.mxu0 0
        %2395 = vmatmul.mubr.bf16.gmra.mrb[0].mxu0 %v2360
        %v2396 = vpop.f32.mrb[0].mxu0
        %v2397 = vadd.f32 0.0, %v2396
        %v2398 = vpop.f32.mrb[0].mxu0
        %v2399 = vpop.f32.mrb[0].mxu0
        %v2400 = vadd.f32 0.0, %v2399
        %v2401 = vpop.f32.mrb[0].mxu0
        %2402 = vdwg.mxu0
        %v2404 = vsel %vm2222, %v2313, 0
        %2406 = vmatprep.subr.bf16.mxu0 0
        %2407 = vmatpush1.bf16.msra.mxu0 %v2031
        %2408 = vmatprep.subr.bf16.mxu0 0
        %2409 = vmatpush1.bf16.msra.mxu0 0
        %2410 = vmatprep.subr.bf16.mxu0 0
        %2411 = vmatpush1.bf16.msra.mxu0 0
        %2412 = vmatprep.subr.bf16.mxu0 0
        %2413 = vmatpush1.bf16.msra.mxu0 0
        %2414 = vmatprep.subr.bf16.mxu0 0
        %2415 = vmatpush1.bf16.msra.mxu0 0
        %2416 = vmatprep.subr.bf16.mxu0 0
        %2417 = vmatpush1.bf16.msra.mxu0 0
        %2418 = vmatprep.subr.bf16.mxu0 0
        %2419 = vmatpush1.bf16.msra.mxu0 0
        %2420 = vmatprep.subr.bf16.mxu0 0
        %2421 = vmatpush1.bf16.msra.mxu0 0
        %2422 = vmatprep.subr.bf16.mxu0 0
        %2423 = vmatpush1.bf16.msra.mxu0 0
        %2424 = vmatprep.subr.bf16.mxu0 0
        %2425 = vmatpush1.bf16.msra.mxu0 0
        %2426 = vmatprep.subr.bf16.mxu0 0
        %2427 = vmatpush1.bf16.msra.mxu0 0
        %2428 = vmatprep.subr.bf16.mxu0 0
        %2429 = vmatpush1.bf16.msra.mxu0 0
        %2430 = vmatprep.subr.bf16.mxu0 0
        %2431 = vmatpush1.bf16.msra.mxu0 0
        %2432 = vmatprep.subr.bf16.mxu0 0
        %2433 = vmatpush1.bf16.msra.mxu0 0
        %2434 = vmatprep.subr.bf16.mxu0 0
        %2435 = vmatpush1.bf16.msra.mxu0 0
        %2436 = vmatprep.subr.bf16.mxu0 0
        %2437 = vmatpush1.bf16.msra.mxu0 0
        %2438 = vmatprep.mubr.bf16.mxu0 0
        %2439 = vmatmul.mubr.bf16.gmra.mrb[0].mxu0 %v2404
        %v2440 = vpop.f32.mrb[0].mxu0
        %v2441 = vadd.f32 0.0, %v2440
        %v2442 = vpop.f32.mrb[0].mxu0
        %v2443 = vpop.f32.mrb[0].mxu0
        %v2444 = vadd.f32 0.0, %v2443
        %v2445 = vpop.f32.mrb[0].mxu0
        %2446 = vdwg.mxu0
        %v2448 = vsel %vm2222, %v2314, 0
        %2450 = vmatprep.subr.bf16.mxu0 0
        %2451 = vmatpush1.bf16.msra.mxu0 %v2032
        %2452 = vmatprep.subr.bf16.mxu0 0
        %2453 = vmatpush1.bf16.msra.mxu0 0
        %2454 = vmatprep.subr.bf16.mxu0 0
        %2455 = vmatpush1.bf16.msra.mxu0 0
        %2456 = vmatprep.subr.bf16.mxu0 0
        %2457 = vmatpush1.bf16.msra.mxu0 0
        %2458 = vmatprep.subr.bf16.mxu0 0
        %2459 = vmatpush1.bf16.msra.mxu0 0
        %2460 = vmatprep.subr.bf16.mxu0 0
        %2461 = vmatpush1.bf16.msra.mxu0 0
        %2462 = vmatprep.subr.bf16.mxu0 0
        %2463 = vmatpush1.bf16.msra.mxu0 0
        %2464 = vmatprep.subr.bf16.mxu0 0
        %2465 = vmatpush1.bf16.msra.mxu0 0
        %2466 = vmatprep.subr.bf16.mxu0 0
        %2467 = vmatpush1.bf16.msra.mxu0 0
        %2468 = vmatprep.subr.bf16.mxu0 0
        %2469 = vmatpush1.bf16.msra.mxu0 0
        %2470 = vmatprep.subr.bf16.mxu0 0
        %2471 = vmatpush1.bf16.msra.mxu0 0
        %2472 = vmatprep.subr.bf16.mxu0 0
        %2473 = vmatpush1.bf16.msra.mxu0 0
        %2474 = vmatprep.subr.bf16.mxu0 0
        %2475 = vmatpush1.bf16.msra.mxu0 0
        %2476 = vmatprep.subr.bf16.mxu0 0
        %2477 = vmatpush1.bf16.msra.mxu0 0
        %2478 = vmatprep.subr.bf16.mxu0 0
        %2479 = vmatpush1.bf16.msra.mxu0 0
        %2480 = vmatprep.subr.bf16.mxu0 0
        %2481 = vmatpush1.bf16.msra.mxu0 0
        %2482 = vmatprep.mubr.bf16.mxu0 0
        %2483 = vmatmul.mubr.bf16.gmra.mrb[0].mxu0 %v2448
        %v2484 = vpop.f32.mrb[0].mxu0
        %v2485 = vadd.f32 0.0, %v2484
        %v2486 = vpop.f32.mrb[0].mxu0
        %v2487 = vpop.f32.mrb[0].mxu0
        %v2488 = vadd.f32 0.0, %v2487
        %v2489 = vpop.f32.mrb[0].mxu0
        %2490 = vdwg.mxu0
        %v2491 = vpack.c.bf16 %v2356, %v2353
        %v2492 = vpack.c.bf16 %v2400, %v2397
        %v2497 = vunpack.c.l.b16 %v2009
        %v2498 = vunpack.c.l.b16 %v2010
        %v2499 = vunpack.c.l.b16 %v2011
        %v2500 = vunpack.c.l.b16 %v2012
        %v2501 = vpack.c.b16 %v2498, %v2497
        %v2502 = vpack.c.b16 %v2500, %v2499
        %v2506 = vsel %vm2033, %v2492, 0
        %2508 = vmatprep.subr.bf16.mxu0 0
        %2509 = vmatpush1.bf16.msra.mxu0 %v2501
        %2510 = vmatprep.subr.bf16.mxu0 0
        %2511 = vmatpush1.bf16.msra.mxu0 %v2502
        %2512 = vmatprep.subr.bf16.mxu0 0
        %2513 = vmatpush1.bf16.msra.mxu0 0
        %2514 = vmatprep.subr.bf16.mxu0 0
        %2515 = vmatpush1.bf16.msra.mxu0 0
        %2516 = vmatprep.subr.bf16.mxu0 0
        %2517 = vmatpush1.bf16.msra.mxu0 0
        %2518 = vmatprep.subr.bf16.mxu0 0
        %2519 = vmatpush1.bf16.msra.mxu0 0
        %2520 = vmatprep.subr.bf16.mxu0 0
        %2521 = vmatpush1.bf16.msra.mxu0 0
        %2522 = vmatprep.subr.bf16.mxu0 0
        %2523 = vmatpush1.bf16.msra.mxu0 0
        %2524 = vmatprep.subr.bf16.mxu0 0
        %2525 = vmatpush1.bf16.msra.mxu0 0
        %2526 = vmatprep.subr.bf16.mxu0 0
        %2527 = vmatpush1.bf16.msra.mxu0 0
        %2528 = vmatprep.subr.bf16.mxu0 0
        %2529 = vmatpush1.bf16.msra.mxu0 0
        %2530 = vmatprep.subr.bf16.mxu0 0
        %2531 = vmatpush1.bf16.msra.mxu0 0
        %2532 = vmatprep.subr.bf16.mxu0 0
        %2533 = vmatpush1.bf16.msra.mxu0 0
        %2534 = vmatprep.subr.bf16.mxu0 0
        %2535 = vmatpush1.bf16.msra.mxu0 0
        %2536 = vmatprep.subr.bf16.mxu0 0
        %2537 = vmatpush1.bf16.msra.mxu0 0
        %2538 = vmatprep.subr.bf16.mxu0 0
        %2539 = vmatpush1.bf16.msra.mxu0 0
        %2540 = vmatprep.mubr.bf16.mxu0 0
        %2541 = vmatmul.mubr.bf16.gmra.mrb[0].mxu0 %v2506
        %v2542 = vpop.f32.mrb[0].mxu0
        %v2543 = vadd.f32 0.0, %v2542
        %v2544 = vpop.f32.mrb[0].mxu0
        %v2545 = vpop.f32.mrb[0].mxu0
        %v2546 = vadd.f32 0.0, %v2545
        %v2547 = vpop.f32.mrb[0].mxu0
        %2548 = vdwg.mxu0
        %v2553 = vunpack.c.l.b16 %v2005
        %v2554 = vunpack.c.l.b16 %v2006
        %v2555 = vunpack.c.l.b16 %v2007
        %v2556 = vunpack.c.l.b16 %v2008
        %v2557 = vpack.c.b16 %v2554, %v2553
        %v2558 = vpack.c.b16 %v2556, %v2555
        %v2562 = vsel %vm2033, %v2491, 0
        %2564 = vmatprep.subr.bf16.mxu0 0
        %2565 = vmatpush1.bf16.msra.mxu0 %v2557
        %2566 = vmatprep.subr.bf16.mxu0 0
        %2567 = vmatpush1.bf16.msra.mxu0 %v2558
        %2568 = vmatprep.subr.bf16.mxu0 0
        %2569 = vmatpush1.bf16.msra.mxu0 0
        %2570 = vmatprep.subr.bf16.mxu0 0
        %2571 = vmatpush1.bf16.msra.mxu0 0
        %2572 = vmatprep.subr.bf16.mxu0 0
        %2573 = vmatpush1.bf16.msra.mxu0 0
        %2574 = vmatprep.subr.bf16.mxu0 0
        %2575 = vmatpush1.bf16.msra.mxu0 0
        %2576 = vmatprep.subr.bf16.mxu0 0
        %2577 = vmatpush1.bf16.msra.mxu0 0
        %2578 = vmatprep.subr.bf16.mxu0 0
        %2579 = vmatpush1.bf16.msra.mxu0 0
        %2580 = vmatprep.subr.bf16.mxu0 0
        %2581 = vmatpush1.bf16.msra.mxu0 0
        %2582 = vmatprep.subr.bf16.mxu0 0
        %2583 = vmatpush1.bf16.msra.mxu0 0
        %2584 = vmatprep.subr.bf16.mxu0 0
        %2585 = vmatpush1.bf16.msra.mxu0 0
        %2586 = vmatprep.subr.bf16.mxu0 0
        %2587 = vmatpush1.bf16.msra.mxu0 0
        %2588 = vmatprep.subr.bf16.mxu0 0
        %2589 = vmatpush1.bf16.msra.mxu0 0
        %2590 = vmatprep.subr.bf16.mxu0 0
        %2591 = vmatpush1.bf16.msra.mxu0 0
        %2592 = vmatprep.subr.bf16.mxu0 0
        %2593 = vmatpush1.bf16.msra.mxu0 0
        %2594 = vmatprep.subr.bf16.mxu0 0
        %2595 = vmatpush1.bf16.msra.mxu0 0
        %2596 = vmatprep.mubr.bf16.mxu0 0
        %2597 = vmatmul.mubr.bf16.gmra.mrb[0].mxu0 %v2562
        %v2598 = vpop.f32.mrb[0].mxu0
        %v2599 = vadd.f32 %v2543, %v2598
        %v2600 = vpop.f32.mrb[0].mxu0
        %v2601 = vpop.f32.mrb[0].mxu0
        %v2602 = vadd.f32 %v2546, %v2601
        %v2603 = vpop.f32.mrb[0].mxu0
        %2604 = vdwg.mxu0
        %v2605 = vpack.c.bf16 %v2444, %v2441
        %v2610 = vunpack.c.l.b16 %v2013
        %v2611 = vunpack.c.l.b16 %v2014
        %v2612 = vunpack.c.l.b16 %v2015
        %v2613 = vunpack.c.l.b16 %v2016
        %v2614 = vpack.c.b16 %v2611, %v2610
        %v2615 = vpack.c.b16 %v2613, %v2612
        %v2619 = vsel %vm2033, %v2605, 0
        %2621 = vmatprep.subr.bf16.mxu0 0
        %2622 = vmatpush1.bf16.msra.mxu0 %v2614
        %2623 = vmatprep.subr.bf16.mxu0 0
        %2624 = vmatpush1.bf16.msra.mxu0 %v2615
        %2625 = vmatprep.subr.bf16.mxu0 0
        %2626 = vmatpush1.bf16.msra.mxu0 0
        %2627 = vmatprep.subr.bf16.mxu0 0
        %2628 = vmatpush1.bf16.msra.mxu0 0
        %2629 = vmatprep.subr.bf16.mxu0 0
        %2630 = vmatpush1.bf16.msra.mxu0 0
        %2631 = vmatprep.subr.bf16.mxu0 0
        %2632 = vmatpush1.bf16.msra.mxu0 0
        %2633 = vmatprep.subr.bf16.mxu0 0
        %2634 = vmatpush1.bf16.msra.mxu0 0
        %2635 = vmatprep.subr.bf16.mxu0 0
        %2636 = vmatpush1.bf16.msra.mxu0 0
        %2637 = vmatprep.subr.bf16.mxu0 0
        %2638 = vmatpush1.bf16.msra.mxu0 0
        %2639 = vmatprep.subr.bf16.mxu0 0
        %2640 = vmatpush1.bf16.msra.mxu0 0
        %2641 = vmatprep.subr.bf16.mxu0 0
        %2642 = vmatpush1.bf16.msra.mxu0 0
        %2643 = vmatprep.subr.bf16.mxu0 0
        %2644 = vmatpush1.bf16.msra.mxu0 0
        %2645 = vmatprep.subr.bf16.mxu0 0
        %2646 = vmatpush1.bf16.msra.mxu0 0
        %2647 = vmatprep.subr.bf16.mxu0 0
        %2648 = vmatpush1.bf16.msra.mxu0 0
        %2649 = vmatprep.subr.bf16.mxu0 0
        %2650 = vmatpush1.bf16.msra.mxu0 0
        %2651 = vmatprep.subr.bf16.mxu0 0
        %2652 = vmatpush1.bf16.msra.mxu0 0
        %2653 = vmatprep.mubr.bf16.mxu0 0
        %2654 = vmatmul.mubr.bf16.gmra.mrb[0].mxu0 %v2619
        %v2655 = vpop.f32.mrb[0].mxu0
        %v2656 = vadd.f32 0.0, %v2655
        %v2657 = vpop.f32.mrb[0].mxu0
        %v2658 = vpop.f32.mrb[0].mxu0
        %v2659 = vadd.f32 0.0, %v2658
        %v2660 = vpop.f32.mrb[0].mxu0
        %2661 = vdwg.mxu0
        %v2662 = vadd.f32 %v2599, %v2656
        %v2663 = vadd.f32 %v2602, %v2659
        %v2664 = vpack.c.bf16 %v2488, %v2485
        %v2669 = vunpack.c.l.b16 %v2017
        %v2670 = vunpack.c.l.b16 %v2018
        %v2671 = vunpack.c.l.b16 %v2019
        %v2672 = vunpack.c.l.b16 %v2020
        %v2673 = vpack.c.b16 %v2670, %v2669
        %v2674 = vpack.c.b16 %v2672, %v2671
        %v2678 = vsel %vm2033, %v2664, 0
        %2680 = vmatprep.subr.bf16.mxu0 0
        %2681 = vmatpush1.bf16.msra.mxu0 %v2673
        %2682 = vmatprep.subr.bf16.mxu0 0
        %2683 = vmatpush1.bf16.msra.mxu0 %v2674
        %2684 = vmatprep.subr.bf16.mxu0 0
        %2685 = vmatpush1.bf16.msra.mxu0 0
        %2686 = vmatprep.subr.bf16.mxu0 0
        %2687 = vmatpush1.bf16.msra.mxu0 0
        %2688 = vmatprep.subr.bf16.mxu0 0
        %2689 = vmatpush1.bf16.msra.mxu0 0
        %2690 = vmatprep.subr.bf16.mxu0 0
        %2691 = vmatpush1.bf16.msra.mxu0 0
        %2692 = vmatprep.subr.bf16.mxu0 0
        %2693 = vmatpush1.bf16.msra.mxu0 0
        %2694 = vmatprep.subr.bf16.mxu0 0
        %2695 = vmatpush1.bf16.msra.mxu0 0
        %2696 = vmatprep.subr.bf16.mxu0 0
        %2697 = vmatpush1.bf16.msra.mxu0 0
        %2698 = vmatprep.subr.bf16.mxu0 0
        %2699 = vmatpush1.bf16.msra.mxu0 0
        %2700 = vmatprep.subr.bf16.mxu0 0
        %2701 = vmatpush1.bf16.msra.mxu0 0
        %2702 = vmatprep.subr.bf16.mxu0 0
        %2703 = vmatpush1.bf16.msra.mxu0 0
        %2704 = vmatprep.subr.bf16.mxu0 0
        %2705 = vmatpush1.bf16.msra.mxu0 0
        %2706 = vmatprep.subr.bf16.mxu0 0
        %2707 = vmatpush1.bf16.msra.mxu0 0
        %2708 = vmatprep.subr.bf16.mxu0 0
        %2709 = vmatpush1.bf16.msra.mxu0 0
        %2710 = vmatprep.subr.bf16.mxu0 0
        %2711 = vmatpush1.bf16.msra.mxu0 0
        %2712 = vmatprep.mubr.bf16.mxu0 0
        %2713 = vmatmul.mubr.bf16.gmra.mrb[0].mxu0 %v2678
        %v2714 = vpop.f32.mrb[0].mxu0
        %v2715 = vadd.f32 0.0, %v2714
        %v2716 = vpop.f32.mrb[0].mxu0
        %v2717 = vpop.f32.mrb[0].mxu0
        %v2718 = vadd.f32 0.0, %v2717
        %v2719 = vpop.f32.mrb[0].mxu0
        %2720 = vdwg.mxu0
        %v2721 = vadd.f32 %v2662, %v2715
        %v2722 = vadd.f32 %v2663, %v2718
        %v2723 = vpack.c.bf16 %v1935, %v1934
        %v2724 = vpack.c.bf16 %v1939, %v1938
        %v2725 = vpack.c.bf16 %v1943, %v1942
        %v2726 = vpack.c.bf16 %v1947, %v1946
        %v2727 = vpack.c.bf16 %v1983, %v1982
        %v2728 = vpack.c.bf16 %v1987, %v1986
        %v2729 = vpack.c.bf16 %v1991, %v1990
        %v2730 = vpack.c.bf16 %v1995, %v1994
        %v2731 = vpack.c.bf16 %v1710, %v1707
        %v2732 = vpack.c.bf16 %v1771, %v1768
        %v2733 = vpack.c.bf16 %v1832, %v1829
        %v2734 = vpack.c.bf16 %v1893, %v1890
        %v2736 = vsel %vm2033, %v2723, 0
        %v2739 = vsel %vm2033, %v2727, 0
        %2741 = vmatprep.subr.bf16.mxu0 0
        %2742 = vmatpush1.bf16.xpose.msra.mxu0 %v2739
        %2743 = vmatprep.subr.bf16.mxu0 0
        %2744 = vmatpush1.bf16.xpose.msra.mxu0 0
        %2745 = vmatprep.subr.bf16.mxu0 0
        %2746 = vmatpush1.bf16.xpose.msra.mxu0 0
        %2747 = vmatprep.subr.bf16.mxu0 0
        %2748 = vmatpush1.bf16.xpose.msra.mxu0 0
        %2749 = vmatprep.subr.bf16.mxu0 0
        %2750 = vmatpush1.bf16.xpose.msra.mxu0 0
        %2751 = vmatprep.subr.bf16.mxu0 0
        %2752 = vmatpush1.bf16.xpose.msra.mxu0 0
        %2753 = vmatprep.subr.bf16.mxu0 0
        %2754 = vmatpush1.bf16.xpose.msra.mxu0 0
        %2755 = vmatprep.subr.bf16.mxu0 0
        %2756 = vmatpush1.bf16.xpose.msra.mxu0 0
        %2757 = vmatprep.subr.bf16.mxu0 0
        %2758 = vmatpush1.bf16.xpose.msra.mxu0 0
        %2759 = vmatprep.subr.bf16.mxu0 0
        %2760 = vmatpush1.bf16.xpose.msra.mxu0 0
        %2761 = vmatprep.subr.bf16.mxu0 0
        %2762 = vmatpush1.bf16.xpose.msra.mxu0 0
        %2763 = vmatprep.subr.bf16.mxu0 0
        %2764 = vmatpush1.bf16.xpose.msra.mxu0 0
        %2765 = vmatprep.subr.bf16.mxu0 0
        %2766 = vmatpush1.bf16.xpose.msra.mxu0 0
        %2767 = vmatprep.subr.bf16.mxu0 0
        %2768 = vmatpush1.bf16.xpose.msra.mxu0 0
        %2769 = vmatprep.subr.bf16.mxu0 0
        %2770 = vmatpush1.bf16.xpose.msra.mxu0 0
        %2771 = vmatprep.subr.bf16.mxu0 0
        %2772 = vmatpush1.bf16.xpose.msra.mxu0 0
        %2773 = vmatprep.mubr.bf16.mxu0 0
        %2774 = vmatmul.mubr.bf16.gmra.mrb[0].mxu0 %v2736
        %v2775 = vpop.f32.mrb[0].mxu0
        %v2776 = vadd.f32 %v2003, %v2775
        %v2777 = vpop.f32.mrb[0].mxu0
        %v2778 = vpop.f32.mrb[0].mxu0
        %v2779 = vadd.f32 %v2004, %v2778
        %v2780 = vpop.f32.mrb[0].mxu0
        %2781 = vdwg.mxu0
        %v2783 = vsel %vm2033, %v2724, 0
        %v2786 = vsel %vm2033, %v2728, 0
        %2788 = vmatprep.subr.bf16.mxu0 0
        %2789 = vmatpush1.bf16.xpose.msra.mxu0 %v2786
        %2790 = vmatprep.subr.bf16.mxu0 0
        %2791 = vmatpush1.bf16.xpose.msra.mxu0 0
        %2792 = vmatprep.subr.bf16.mxu0 0
        %2793 = vmatpush1.bf16.xpose.msra.mxu0 0
        %2794 = vmatprep.subr.bf16.mxu0 0
        %2795 = vmatpush1.bf16.xpose.msra.mxu0 0
        %2796 = vmatprep.subr.bf16.mxu0 0
        %2797 = vmatpush1.bf16.xpose.msra.mxu0 0
        %2798 = vmatprep.subr.bf16.mxu0 0
        %2799 = vmatpush1.bf16.xpose.msra.mxu0 0
        %2800 = vmatprep.subr.bf16.mxu0 0
        %2801 = vmatpush1.bf16.xpose.msra.mxu0 0
        %2802 = vmatprep.subr.bf16.mxu0 0
        %2803 = vmatpush1.bf16.xpose.msra.mxu0 0
        %2804 = vmatprep.subr.bf16.mxu0 0
        %2805 = vmatpush1.bf16.xpose.msra.mxu0 0
        %2806 = vmatprep.subr.bf16.mxu0 0
        %2807 = vmatpush1.bf16.xpose.msra.mxu0 0
        %2808 = vmatprep.subr.bf16.mxu0 0
        %2809 = vmatpush1.bf16.xpose.msra.mxu0 0
        %2810 = vmatprep.subr.bf16.mxu0 0
        %2811 = vmatpush1.bf16.xpose.msra.mxu0 0
        %2812 = vmatprep.subr.bf16.mxu0 0
        %2813 = vmatpush1.bf16.xpose.msra.mxu0 0
        %2814 = vmatprep.subr.bf16.mxu0 0
        %2815 = vmatpush1.bf16.xpose.msra.mxu0 0
        %2816 = vmatprep.subr.bf16.mxu0 0
        %2817 = vmatpush1.bf16.xpose.msra.mxu0 0
        %2818 = vmatprep.subr.bf16.mxu0 0
        %2819 = vmatpush1.bf16.xpose.msra.mxu0 0
        %2820 = vmatprep.mubr.bf16.mxu0 0
        %2821 = vmatmul.mubr.bf16.gmra.mrb[0].mxu0 %v2783
        %v2822 = vpop.f32.mrb[0].mxu0
        %v2823 = vadd.f32 %v2003, %v2822
        %v2824 = vpop.f32.mrb[0].mxu0
        %v2825 = vpop.f32.mrb[0].mxu0
        %v2826 = vadd.f32 %v2004, %v2825
        %v2827 = vpop.f32.mrb[0].mxu0
        %2828 = vdwg.mxu0
        %v2830 = vsel %vm2033, %v2725, 0
        %v2833 = vsel %vm2033, %v2729, 0
        %2835 = vmatprep.subr.bf16.mxu0 0
        %2836 = vmatpush1.bf16.xpose.msra.mxu0 %v2833
        %2837 = vmatprep.subr.bf16.mxu0 0
        %2838 = vmatpush1.bf16.xpose.msra.mxu0 0
        %2839 = vmatprep.subr.bf16.mxu0 0
        %2840 = vmatpush1.bf16.xpose.msra.mxu0 0
        %2841 = vmatprep.subr.bf16.mxu0 0
        %2842 = vmatpush1.bf16.xpose.msra.mxu0 0
        %2843 = vmatprep.subr.bf16.mxu0 0
        %2844 = vmatpush1.bf16.xpose.msra.mxu0 0
        %2845 = vmatprep.subr.bf16.mxu0 0
        %2846 = vmatpush1.bf16.xpose.msra.mxu0 0
        %2847 = vmatprep.subr.bf16.mxu0 0
        %2848 = vmatpush1.bf16.xpose.msra.mxu0 0
        %2849 = vmatprep.subr.bf16.mxu0 0
        %2850 = vmatpush1.bf16.xpose.msra.mxu0 0
        %2851 = vmatprep.subr.bf16.mxu0 0
        %2852 = vmatpush1.bf16.xpose.msra.mxu0 0
        %2853 = vmatprep.subr.bf16.mxu0 0
        %2854 = vmatpush1.bf16.xpose.msra.mxu0 0
        %2855 = vmatprep.subr.bf16.mxu0 0
        %2856 = vmatpush1.bf16.xpose.msra.mxu0 0
        %2857 = vmatprep.subr.bf16.mxu0 0
        %2858 = vmatpush1.bf16.xpose.msra.mxu0 0
        %2859 = vmatprep.subr.bf16.mxu0 0
        %2860 = vmatpush1.bf16.xpose.msra.mxu0 0
        %2861 = vmatprep.subr.bf16.mxu0 0
        %2862 = vmatpush1.bf16.xpose.msra.mxu0 0
        %2863 = vmatprep.subr.bf16.mxu0 0
        %2864 = vmatpush1.bf16.xpose.msra.mxu0 0
        %2865 = vmatprep.subr.bf16.mxu0 0
        %2866 = vmatpush1.bf16.xpose.msra.mxu0 0
        %2867 = vmatprep.mubr.bf16.mxu0 0
        %2868 = vmatmul.mubr.bf16.gmra.mrb[0].mxu0 %v2830
        %v2869 = vpop.f32.mrb[0].mxu0
        %v2870 = vadd.f32 %v2003, %v2869
        %v2871 = vpop.f32.mrb[0].mxu0
        %v2872 = vpop.f32.mrb[0].mxu0
        %v2873 = vadd.f32 %v2004, %v2872
        %v2874 = vpop.f32.mrb[0].mxu0
        %2875 = vdwg.mxu0
        %v2877 = vsel %vm2033, %v2726, 0
        %v2880 = vsel %vm2033, %v2730, 0
        %2882 = vmatprep.subr.bf16.mxu0 0
        %2883 = vmatpush1.bf16.xpose.msra.mxu0 %v2880
        %2884 = vmatprep.subr.bf16.mxu0 0
        %2885 = vmatpush1.bf16.xpose.msra.mxu0 0
        %2886 = vmatprep.subr.bf16.mxu0 0
        %2887 = vmatpush1.bf16.xpose.msra.mxu0 0
        %2888 = vmatprep.subr.bf16.mxu0 0
        %2889 = vmatpush1.bf16.xpose.msra.mxu0 0
        %2890 = vmatprep.subr.bf16.mxu0 0
        %2891 = vmatpush1.bf16.xpose.msra.mxu0 0
        %2892 = vmatprep.subr.bf16.mxu0 0
        %2893 = vmatpush1.bf16.xpose.msra.mxu0 0
        %2894 = vmatprep.subr.bf16.mxu0 0
        %2895 = vmatpush1.bf16.xpose.msra.mxu0 0
        %2896 = vmatprep.subr.bf16.mxu0 0
        %2897 = vmatpush1.bf16.xpose.msra.mxu0 0
        %2898 = vmatprep.subr.bf16.mxu0 0
        %2899 = vmatpush1.bf16.xpose.msra.mxu0 0
        %2900 = vmatprep.subr.bf16.mxu0 0
        %2901 = vmatpush1.bf16.xpose.msra.mxu0 0
        %2902 = vmatprep.subr.bf16.mxu0 0
        %2903 = vmatpush1.bf16.xpose.msra.mxu0 0
        %2904 = vmatprep.subr.bf16.mxu0 0
        %2905 = vmatpush1.bf16.xpose.msra.mxu0 0
        %2906 = vmatprep.subr.bf16.mxu0 0
        %2907 = vmatpush1.bf16.xpose.msra.mxu0 0
        %2908 = vmatprep.subr.bf16.mxu0 0
        %2909 = vmatpush1.bf16.xpose.msra.mxu0 0
        %2910 = vmatprep.subr.bf16.mxu0 0
        %2911 = vmatpush1.bf16.xpose.msra.mxu0 0
        %2912 = vmatprep.subr.bf16.mxu0 0
        %2913 = vmatpush1.bf16.xpose.msra.mxu0 0
        %2914 = vmatprep.mubr.bf16.mxu0 0
        %2915 = vmatmul.mubr.bf16.gmra.mrb[0].mxu0 %v2877
        %v2916 = vpop.f32.mrb[0].mxu0
        %v2917 = vadd.f32 %v2003, %v2916
        %v2918 = vpop.f32.mrb[0].mxu0
        %v2919 = vpop.f32.mrb[0].mxu0
        %v2920 = vadd.f32 %v2004, %v2919
        %v2921 = vpop.f32.mrb[0].mxu0
        %2922 = vdwg.mxu0
        %v2923 = vsel %vm2222, %v2776, -inf
        %2924 = vmax.xlane.f32.xlu0 %v2923
        %v2925 = vpop.xlane.xlu0 %2924
        %v2926 = vsel %vm2222, %v2779, -inf
        %2927 = vmax.xlane.f32.xlu0 %v2926
        %v2928 = vpop.xlane.xlu0 %2927
        %v2929 = vsel %vm2222, %v2823, -inf
        %2930 = vmax.xlane.f32.xlu0 %v2929
        %v2931 = vpop.xlane.xlu0 %2930
        %v2932 = vsel %vm2222, %v2826, -inf
        %2933 = vmax.xlane.f32.xlu0 %v2932
        %v2934 = vpop.xlane.xlu0 %2933
        %v2935 = vsel %vm2222, %v2870, -inf
        %2936 = vmax.xlane.f32.xlu0 %v2935
        %v2937 = vpop.xlane.xlu0 %2936
        %v2938 = vsel %vm2222, %v2873, -inf
        %2939 = vmax.xlane.f32.xlu0 %v2938
        %v2940 = vpop.xlane.xlu0 %2939
        %v2941 = vsel %vm2222, %v2917, -inf
        %2942 = vmax.xlane.f32.xlu0 %v2941
        %v2943 = vpop.xlane.xlu0 %2942
        %v2944 = vsel %vm2222, %v2920, -inf
        %2945 = vmax.xlane.f32.xlu0 %v2944
        %v2946 = vpop.xlane.xlu0 %2945
        %v2947 = vsub.f32 %v2776, %v2925
        %v2948 = vsub.f32 %v2779, %v2928
        %v2949 = vsub.f32 %v2823, %v2931
        %v2950 = vsub.f32 %v2826, %v2934
        %v2951 = vsub.f32 %v2870, %v2937
        %v2952 = vsub.f32 %v2873, %v2940
        %v2953 = vsub.f32 %v2917, %v2943
        %v2954 = vsub.f32 %v2920, %v2946
        %v2955 = vmul.f32 %v2947, 1.442695
        %v2956 = vpow.pop %v2955
        %v2957 = vmul.f32 %v2948, 1.442695
        %v2958 = vpow.pop %v2957
        %v2959 = vmul.f32 %v2949, 1.442695
        %v2960 = vpow.pop %v2959
        %v2961 = vmul.f32 %v2950, 1.442695
        %v2962 = vpow.pop %v2961
        %v2963 = vmul.f32 %v2951, 1.442695
        %v2964 = vpow.pop %v2963
        %v2965 = vmul.f32 %v2952, 1.442695
        %v2966 = vpow.pop %v2965
        %v2967 = vmul.f32 %v2953, 1.442695
        %v2968 = vpow.pop %v2967
        %v2969 = vmul.f32 %v2954, 1.442695
        %v2970 = vpow.pop %v2969
        %v2971 = vsel %vm2222, %v2956, 0.0
        %2972 = vadd.xlane.f32.xlu0 %v2971
        %v2973 = vpop.xlane.xlu0 %2972
        %v2974 = vsel %vm2222, %v2958, 0.0
        %2975 = vadd.xlane.f32.xlu0 %v2974
        %v2976 = vpop.xlane.xlu0 %2975
        %v2977 = vsel %vm2222, %v2960, 0.0
        %2978 = vadd.xlane.f32.xlu0 %v2977
        %v2979 = vpop.xlane.xlu0 %2978
        %v2980 = vsel %vm2222, %v2962, 0.0
        %2981 = vadd.xlane.f32.xlu0 %v2980
        %v2982 = vpop.xlane.xlu0 %2981
        %v2983 = vsel %vm2222, %v2964, 0.0
        %2984 = vadd.xlane.f32.xlu0 %v2983
        %v2985 = vpop.xlane.xlu0 %2984
        %v2986 = vsel %vm2222, %v2966, 0.0
        %2987 = vadd.xlane.f32.xlu0 %v2986
        %v2988 = vpop.xlane.xlu0 %2987
        %v2989 = vsel %vm2222, %v2968, 0.0
        %2990 = vadd.xlane.f32.xlu0 %v2989
        %v2991 = vpop.xlane.xlu0 %2990
        %v2992 = vsel %vm2222, %v2970, 0.0
        %2993 = vadd.xlane.f32.xlu0 %v2992
        %v2994 = vpop.xlane.xlu0 %2993
        %v2995 = vrcp.pop %v2973
        %v2996 = vrcp.pop %v2976
        %v2997 = vrcp.pop %v2979
        %v2998 = vrcp.pop %v2982
        %v2999 = vrcp.pop %v2985
        %v3000 = vrcp.pop %v2988
        %v3001 = vrcp.pop %v2991
        %v3002 = vrcp.pop %v2994
        %v3003 = vmul.f32 %v2956, %v2995
        %v3004 = vmul.f32 %v2958, %v2996
        %v3005 = vmul.f32 %v2960, %v2997
        %v3006 = vmul.f32 %v2962, %v2998
        %v3007 = vmul.f32 %v2964, %v2999
        %v3008 = vmul.f32 %v2966, %v3000
        %v3009 = vmul.f32 %v2968, %v3001
        %v3010 = vmul.f32 %v2970, %v3002
        %v3011 = vpack.c.bf16 %v3004, %v3003
        %v3012 = vpack.c.bf16 %v3006, %v3005
        %v3013 = vpack.c.bf16 %v3008, %v3007
        %v3014 = vpack.c.bf16 %v3010, %v3009
        %v3016 = vsel %vm2222, %v3011, 0
        %3018 = vmatprep.subr.bf16.mxu0 0
        %3019 = vmatpush1.bf16.msra.mxu0 %v2731
        %3020 = vmatprep.subr.bf16.mxu0 0
        %3021 = vmatpush1.bf16.msra.mxu0 0
        %3022 = vmatprep.subr.bf16.mxu0 0
        %3023 = vmatpush1.bf16.msra.mxu0 0
        %3024 = vmatprep.subr.bf16.mxu0 0
        %3025 = vmatpush1.bf16.msra.mxu0 0
        %3026 = vmatprep.subr.bf16.mxu0 0
        %3027 = vmatpush1.bf16.msra.mxu0 0
        %3028 = vmatprep.subr.bf16.mxu0 0
        %3029 = vmatpush1.bf16.msra.mxu0 0
        %3030 = vmatprep.subr.bf16.mxu0 0
        %3031 = vmatpush1.bf16.msra.mxu0 0
        %3032 = vmatprep.subr.bf16.mxu0 0
        %3033 = vmatpush1.bf16.msra.mxu0 0
        %3034 = vmatprep.subr.bf16.mxu0 0
        %3035 = vmatpush1.bf16.msra.mxu0 0
        %3036 = vmatprep.subr.bf16.mxu0 0
        %3037 = vmatpush1.bf16.msra.mxu0 0
        %3038 = vmatprep.subr.bf16.mxu0 0
        %3039 = vmatpush1.bf16.msra.mxu0 0
        %3040 = vmatprep.subr.bf16.mxu0 0
        %3041 = vmatpush1.bf16.msra.mxu0 0
        %3042 = vmatprep.subr.bf16.mxu0 0
        %3043 = vmatpush1.bf16.msra.mxu0 0
        %3044 = vmatprep.subr.bf16.mxu0 0
        %3045 = vmatpush1.bf16.msra.mxu0 0
        %3046 = vmatprep.subr.bf16.mxu0 0
        %3047 = vmatpush1.bf16.msra.mxu0 0
        %3048 = vmatprep.subr.bf16.mxu0 0
        %3049 = vmatpush1.bf16.msra.mxu0 0
        %3050 = vmatprep.mubr.bf16.mxu0 0
        %3051 = vmatmul.mubr.bf16.gmra.mrb[0].mxu0 %v3016
        %v3052 = vpop.f32.mrb[0].mxu0
        %v3053 = vadd.f32 0.0, %v3052
        %v3054 = vpop.f32.mrb[0].mxu0
        %v3055 = vpop.f32.mrb[0].mxu0
        %v3056 = vadd.f32 0.0, %v3055
        %v3057 = vpop.f32.mrb[0].mxu0
        %3058 = vdwg.mxu0
        %v3060 = vsel %vm2222, %v3012, 0
        %3062 = vmatprep.subr.bf16.mxu0 0
        %3063 = vmatpush1.bf16.msra.mxu0 %v2732
        %3064 = vmatprep.subr.bf16.mxu0 0
        %3065 = vmatpush1.bf16.msra.mxu0 0
        %3066 = vmatprep.subr.bf16.mxu0 0
        %3067 = vmatpush1.bf16.msra.mxu0 0
        %3068 = vmatprep.subr.bf16.mxu0 0
        %3069 = vmatpush1.bf16.msra.mxu0 0
        %3070 = vmatprep.subr.bf16.mxu0 0
        %3071 = vmatpush1.bf16.msra.mxu0 0
        %3072 = vmatprep.subr.bf16.mxu0 0
        %3073 = vmatpush1.bf16.msra.mxu0 0
        %3074 = vmatprep.subr.bf16.mxu0 0
        %3075 = vmatpush1.bf16.msra.mxu0 0
        %3076 = vmatprep.subr.bf16.mxu0 0
        %3077 = vmatpush1.bf16.msra.mxu0 0
        %3078 = vmatprep.subr.bf16.mxu0 0
        %3079 = vmatpush1.bf16.msra.mxu0 0
        %3080 = vmatprep.subr.bf16.mxu0 0
        %3081 = vmatpush1.bf16.msra.mxu0 0
        %3082 = vmatprep.subr.bf16.mxu0 0
        %3083 = vmatpush1.bf16.msra.mxu0 0
        %3084 = vmatprep.subr.bf16.mxu0 0
        %3085 = vmatpush1.bf16.msra.mxu0 0
        %3086 = vmatprep.subr.bf16.mxu0 0
        %3087 = vmatpush1.bf16.msra.mxu0 0
        %3088 = vmatprep.subr.bf16.mxu0 0
        %3089 = vmatpush1.bf16.msra.mxu0 0
        %3090 = vmatprep.subr.bf16.mxu0 0
        %3091 = vmatpush1.bf16.msra.mxu0 0
        %3092 = vmatprep.subr.bf16.mxu0 0
        %3093 = vmatpush1.bf16.msra.mxu0 0
        %3094 = vmatprep.mubr.bf16.mxu0 0
        %3095 = vmatmul.mubr.bf16.gmra.mrb[0].mxu0 %v3060
        %v3096 = vpop.f32.mrb[0].mxu0
        %v3097 = vadd.f32 0.0, %v3096
        %v3098 = vpop.f32.mrb[0].mxu0
        %v3099 = vpop.f32.mrb[0].mxu0
        %v3100 = vadd.f32 0.0, %v3099
        %v3101 = vpop.f32.mrb[0].mxu0
        %3102 = vdwg.mxu0
        %v3104 = vsel %vm2222, %v3013, 0
        %3106 = vmatprep.subr.bf16.mxu0 0
        %3107 = vmatpush1.bf16.msra.mxu0 %v2733
        %3108 = vmatprep.subr.bf16.mxu0 0
        %3109 = vmatpush1.bf16.msra.mxu0 0
        %3110 = vmatprep.subr.bf16.mxu0 0
        %3111 = vmatpush1.bf16.msra.mxu0 0
        %3112 = vmatprep.subr.bf16.mxu0 0
        %3113 = vmatpush1.bf16.msra.mxu0 0
        %3114 = vmatprep.subr.bf16.mxu0 0
        %3115 = vmatpush1.bf16.msra.mxu0 0
        %3116 = vmatprep.subr.bf16.mxu0 0
        %3117 = vmatpush1.bf16.msra.mxu0 0
        %3118 = vmatprep.subr.bf16.mxu0 0
        %3119 = vmatpush1.bf16.msra.mxu0 0
        %3120 = vmatprep.subr.bf16.mxu0 0
        %3121 = vmatpush1.bf16.msra.mxu0 0
        %3122 = vmatprep.subr.bf16.mxu0 0
        %3123 = vmatpush1.bf16.msra.mxu0 0
        %3124 = vmatprep.subr.bf16.mxu0 0
        %3125 = vmatpush1.bf16.msra.mxu0 0
        %3126 = vmatprep.subr.bf16.mxu0 0
        %3127 = vmatpush1.bf16.msra.mxu0 0
        %3128 = vmatprep.subr.bf16.mxu0 0
        %3129 = vmatpush1.bf16.msra.mxu0 0
        %3130 = vmatprep.subr.bf16.mxu0 0
        %3131 = vmatpush1.bf16.msra.mxu0 0
        %3132 = vmatprep.subr.bf16.mxu0 0
        %3133 = vmatpush1.bf16.msra.mxu0 0
        %3134 = vmatprep.subr.bf16.mxu0 0
        %3135 = vmatpush1.bf16.msra.mxu0 0
        %3136 = vmatprep.subr.bf16.mxu0 0
        %3137 = vmatpush1.bf16.msra.mxu0 0
        %3138 = vmatprep.mubr.bf16.mxu0 0
        %3139 = vmatmul.mubr.bf16.gmra.mrb[0].mxu0 %v3104
        %v3140 = vpop.f32.mrb[0].mxu0
        %v3141 = vadd.f32 0.0, %v3140
        %v3142 = vpop.f32.mrb[0].mxu0
        %v3143 = vpop.f32.mrb[0].mxu0
        %v3144 = vadd.f32 0.0, %v3143
        %v3145 = vpop.f32.mrb[0].mxu0
        %3146 = vdwg.mxu0
        %v3148 = vsel %vm2222, %v3014, 0
        %3150 = vmatprep.subr.bf16.mxu0 0
        %3151 = vmatpush1.bf16.msra.mxu0 %v2734
        %3152 = vmatprep.subr.bf16.mxu0 0
        %3153 = vmatpush1.bf16.msra.mxu0 0
        %3154 = vmatprep.subr.bf16.mxu0 0
        %3155 = vmatpush1.bf16.msra.mxu0 0
        %3156 = vmatprep.subr.bf16.mxu0 0
        %3157 = vmatpush1.bf16.msra.mxu0 0
        %3158 = vmatprep.subr.bf16.mxu0 0
        %3159 = vmatpush1.bf16.msra.mxu0 0
        %3160 = vmatprep.subr.bf16.mxu0 0
        %3161 = vmatpush1.bf16.msra.mxu0 0
        %3162 = vmatprep.subr.bf16.mxu0 0
        %3163 = vmatpush1.bf16.msra.mxu0 0
        %3164 = vmatprep.subr.bf16.mxu0 0
        %3165 = vmatpush1.bf16.msra.mxu0 0
        %3166 = vmatprep.subr.bf16.mxu0 0
        %3167 = vmatpush1.bf16.msra.mxu0 0
        %3168 = vmatprep.subr.bf16.mxu0 0
        %3169 = vmatpush1.bf16.msra.mxu0 0
        %3170 = vmatprep.subr.bf16.mxu0 0
        %3171 = vmatpush1.bf16.msra.mxu0 0
        %3172 = vmatprep.subr.bf16.mxu0 0
        %3173 = vmatpush1.bf16.msra.mxu0 0
        %3174 = vmatprep.subr.bf16.mxu0 0
        %3175 = vmatpush1.bf16.msra.mxu0 0
        %3176 = vmatprep.subr.bf16.mxu0 0
        %3177 = vmatpush1.bf16.msra.mxu0 0
        %3178 = vmatprep.subr.bf16.mxu0 0
        %3179 = vmatpush1.bf16.msra.mxu0 0
        %3180 = vmatprep.subr.bf16.mxu0 0
        %3181 = vmatpush1.bf16.msra.mxu0 0
        %3182 = vmatprep.mubr.bf16.mxu0 0
        %3183 = vmatmul.mubr.bf16.gmra.mrb[0].mxu0 %v3148
        %v3184 = vpop.f32.mrb[0].mxu0
        %v3185 = vadd.f32 0.0, %v3184
        %v3186 = vpop.f32.mrb[0].mxu0
        %v3187 = vpop.f32.mrb[0].mxu0
        %v3188 = vadd.f32 0.0, %v3187
        %v3189 = vpop.f32.mrb[0].mxu0
        %3190 = vdwg.mxu0
        %v3191 = vpack.c.bf16 %v3056, %v3053
        %v3192 = vpack.c.bf16 %v3100, %v3097
        %v3194 = vsel %vm2033, %v3192, 0
        %3196 = vmatprep.subr.bf16.mxu0 0
        %3197 = vmatpush1.bf16.msra.mxu0 %v2501
        %3198 = vmatprep.subr.bf16.mxu0 0
        %3199 = vmatpush1.bf16.msra.mxu0 %v2502
        %3200 = vmatprep.subr.bf16.mxu0 0
        %3201 = vmatpush1.bf16.msra.mxu0 0
        %3202 = vmatprep.subr.bf16.mxu0 0
        %3203 = vmatpush1.bf16.msra.mxu0 0
        %3204 = vmatprep.subr.bf16.mxu0 0
        %3205 = vmatpush1.bf16.msra.mxu0 0
        %3206 = vmatprep.subr.bf16.mxu0 0
        %3207 = vmatpush1.bf16.msra.mxu0 0
        %3208 = vmatprep.subr.bf16.mxu0 0
        %3209 = vmatpush1.bf16.msra.mxu0 0
        %3210 = vmatprep.subr.bf16.mxu0 0
        %3211 = vmatpush1.bf16.msra.mxu0 0
        %3212 = vmatprep.subr.bf16.mxu0 0
        %3213 = vmatpush1.bf16.msra.mxu0 0
        %3214 = vmatprep.subr.bf16.mxu0 0
        %3215 = vmatpush1.bf16.msra.mxu0 0
        %3216 = vmatprep.subr.bf16.mxu0 0
        %3217 = vmatpush1.bf16.msra.mxu0 0
        %3218 = vmatprep.subr.bf16.mxu0 0
        %3219 = vmatpush1.bf16.msra.mxu0 0
        %3220 = vmatprep.subr.bf16.mxu0 0
        %3221 = vmatpush1.bf16.msra.mxu0 0
        %3222 = vmatprep.subr.bf16.mxu0 0
        %3223 = vmatpush1.bf16.msra.mxu0 0
        %3224 = vmatprep.subr.bf16.mxu0 0
        %3225 = vmatpush1.bf16.msra.mxu0 0
        %3226 = vmatprep.subr.bf16.mxu0 0
        %3227 = vmatpush1.bf16.msra.mxu0 0
        %3228 = vmatprep.mubr.bf16.mxu0 0
        %3229 = vmatmul.mubr.bf16.gmra.mrb[0].mxu0 %v3194
        %v3230 = vpop.f32.mrb[0].mxu0
        %v3231 = vadd.f32 0.0, %v3230
        %v3232 = vpop.f32.mrb[0].mxu0
        %v3233 = vpop.f32.mrb[0].mxu0
        %v3234 = vadd.f32 0.0, %v3233
        %v3235 = vpop.f32.mrb[0].mxu0
        %3236 = vdwg.mxu0
        %v3238 = vsel %vm2033, %v3191, 0
        %3240 = vmatprep.subr.bf16.mxu0 0
        %3241 = vmatpush1.bf16.msra.mxu0 %v2557
        %3242 = vmatprep.subr.bf16.mxu0 0
        %3243 = vmatpush1.bf16.msra.mxu0 %v2558
        %3244 = vmatprep.subr.bf16.mxu0 0
        %3245 = vmatpush1.bf16.msra.mxu0 0
        %3246 = vmatprep.subr.bf16.mxu0 0
        %3247 = vmatpush1.bf16.msra.mxu0 0
        %3248 = vmatprep.subr.bf16.mxu0 0
        %3249 = vmatpush1.bf16.msra.mxu0 0
        %3250 = vmatprep.subr.bf16.mxu0 0
        %3251 = vmatpush1.bf16.msra.mxu0 0
        %3252 = vmatprep.subr.bf16.mxu0 0
        %3253 = vmatpush1.bf16.msra.mxu0 0
        %3254 = vmatprep.subr.bf16.mxu0 0
        %3255 = vmatpush1.bf16.msra.mxu0 0
        %3256 = vmatprep.subr.bf16.mxu0 0
        %3257 = vmatpush1.bf16.msra.mxu0 0
        %3258 = vmatprep.subr.bf16.mxu0 0
        %3259 = vmatpush1.bf16.msra.mxu0 0
        %3260 = vmatprep.subr.bf16.mxu0 0
        %3261 = vmatpush1.bf16.msra.mxu0 0
        %3262 = vmatprep.subr.bf16.mxu0 0
        %3263 = vmatpush1.bf16.msra.mxu0 0
        %3264 = vmatprep.subr.bf16.mxu0 0
        %3265 = vmatpush1.bf16.msra.mxu0 0
        %3266 = vmatprep.subr.bf16.mxu0 0
        %3267 = vmatpush1.bf16.msra.mxu0 0
        %3268 = vmatprep.subr.bf16.mxu0 0
        %3269 = vmatpush1.bf16.msra.mxu0 0
        %3270 = vmatprep.subr.bf16.mxu0 0
        %3271 = vmatpush1.bf16.msra.mxu0 0
        %3272 = vmatprep.mubr.bf16.mxu0 0
        %3273 = vmatmul.mubr.bf16.gmra.mrb[0].mxu0 %v3238
        %v3274 = vpop.f32.mrb[0].mxu0
        %v3275 = vadd.f32 %v3231, %v3274
        %v3276 = vpop.f32.mrb[0].mxu0
        %v3277 = vpop.f32.mrb[0].mxu0
        %v3278 = vadd.f32 %v3234, %v3277
        %v3279 = vpop.f32.mrb[0].mxu0
        %3280 = vdwg.mxu0
        %v3281 = vpack.c.bf16 %v3144, %v3141
        %v3283 = vsel %vm2033, %v3281, 0
        %3285 = vmatprep.subr.bf16.mxu0 0
        %3286 = vmatpush1.bf16.msra.mxu0 %v2614
        %3287 = vmatprep.subr.bf16.mxu0 0
        %3288 = vmatpush1.bf16.msra.mxu0 %v2615
        %3289 = vmatprep.subr.bf16.mxu0 0
        %3290 = vmatpush1.bf16.msra.mxu0 0
        %3291 = vmatprep.subr.bf16.mxu0 0
        %3292 = vmatpush1.bf16.msra.mxu0 0
        %3293 = vmatprep.subr.bf16.mxu0 0
        %3294 = vmatpush1.bf16.msra.mxu0 0
        %3295 = vmatprep.subr.bf16.mxu0 0
        %3296 = vmatpush1.bf16.msra.mxu0 0
        %3297 = vmatprep.subr.bf16.mxu0 0
        %3298 = vmatpush1.bf16.msra.mxu0 0
        %3299 = vmatprep.subr.bf16.mxu0 0
        %3300 = vmatpush1.bf16.msra.mxu0 0
        %3301 = vmatprep.subr.bf16.mxu0 0
        %3302 = vmatpush1.bf16.msra.mxu0 0
        %3303 = vmatprep.subr.bf16.mxu0 0
        %3304 = vmatpush1.bf16.msra.mxu0 0
        %3305 = vmatprep.subr.bf16.mxu0 0
        %3306 = vmatpush1.bf16.msra.mxu0 0
        %3307 = vmatprep.subr.bf16.mxu0 0
        %3308 = vmatpush1.bf16.msra.mxu0 0
        %3309 = vmatprep.subr.bf16.mxu0 0
        %3310 = vmatpush1.bf16.msra.mxu0 0
        %3311 = vmatprep.subr.bf16.mxu0 0
        %3312 = vmatpush1.bf16.msra.mxu0 0
        %3313 = vmatprep.subr.bf16.mxu0 0
        %3314 = vmatpush1.bf16.msra.mxu0 0
        %3315 = vmatprep.subr.bf16.mxu0 0
        %3316 = vmatpush1.bf16.msra.mxu0 0
        %3317 = vmatprep.mubr.bf16.mxu0 0
        %3318 = vmatmul.mubr.bf16.gmra.mrb[0].mxu0 %v3283
        %v3319 = vpop.f32.mrb[0].mxu0
        %v3320 = vadd.f32 0.0, %v3319
        %v3321 = vpop.f32.mrb[0].mxu0
        %v3322 = vpop.f32.mrb[0].mxu0
        %v3323 = vadd.f32 0.0, %v3322
        %v3324 = vpop.f32.mrb[0].mxu0
        %3325 = vdwg.mxu0
        %v3326 = vadd.f32 %v3275, %v3320
        %v3327 = vadd.f32 %v3278, %v3323
        %v3328 = vpack.c.bf16 %v3188, %v3185
        %v3330 = vsel %vm2033, %v3328, 0
        %3332 = vmatprep.subr.bf16.mxu0 0
        %3333 = vmatpush1.bf16.msra.mxu0 %v2673
        %3334 = vmatprep.subr.bf16.mxu0 0
        %3335 = vmatpush1.bf16.msra.mxu0 %v2674
        %3336 = vmatprep.subr.bf16.mxu0 0
        %3337 = vmatpush1.bf16.msra.mxu0 0
        %3338 = vmatprep.subr.bf16.mxu0 0
        %3339 = vmatpush1.bf16.msra.mxu0 0
        %3340 = vmatprep.subr.bf16.mxu0 0
        %3341 = vmatpush1.bf16.msra.mxu0 0
        %3342 = vmatprep.subr.bf16.mxu0 0
        %3343 = vmatpush1.bf16.msra.mxu0 0
        %3344 = vmatprep.subr.bf16.mxu0 0
        %3345 = vmatpush1.bf16.msra.mxu0 0
        %3346 = vmatprep.subr.bf16.mxu0 0
        %3347 = vmatpush1.bf16.msra.mxu0 0
        %3348 = vmatprep.subr.bf16.mxu0 0
        %3349 = vmatpush1.bf16.msra.mxu0 0
        %3350 = vmatprep.subr.bf16.mxu0 0
        %3351 = vmatpush1.bf16.msra.mxu0 0
        %3352 = vmatprep.subr.bf16.mxu0 0
        %3353 = vmatpush1.bf16.msra.mxu0 0
        %3354 = vmatprep.subr.bf16.mxu0 0
        %3355 = vmatpush1.bf16.msra.mxu0 0
        %3356 = vmatprep.subr.bf16.mxu0 0
        %3357 = vmatpush1.bf16.msra.mxu0 0
        %3358 = vmatprep.subr.bf16.mxu0 0
        %3359 = vmatpush1.bf16.msra.mxu0 0
        %3360 = vmatprep.subr.bf16.mxu0 0
        %3361 = vmatpush1.bf16.msra.mxu0 0
        %3362 = vmatprep.subr.bf16.mxu0 0
        %3363 = vmatpush1.bf16.msra.mxu0 0
        %3364 = vmatprep.mubr.bf16.mxu0 0
        %3365 = vmatmul.mubr.bf16.gmra.mrb[0].mxu0 %v3330
        %v3366 = vpop.f32.mrb[0].mxu0
        %v3367 = vadd.f32 0.0, %v3366
        %v3368 = vpop.f32.mrb[0].mxu0
        %v3369 = vpop.f32.mrb[0].mxu0
        %v3370 = vadd.f32 0.0, %v3369
        %v3371 = vpop.f32.mrb[0].mxu0
        %3372 = vdwg.mxu0
        %v3373 = vadd.f32 %v3326, %v3367
        %v3374 = vadd.f32 %v3327, %v3370
        %v3375 = vadd.f32 %v521, %v2721
        %v3376 = vadd.f32 %v522, %v2722
        %v3377 = vadd.f32 %v523, %v3373
        %v3378 = vadd.f32 %v524, %v3374
        %3379 = vadd.xlane.f32.xlu0 %v3375
        %v3380 = vpop.xlane.xlu0 %3379
        %3381 = vadd.xlane.f32.xlu0 %v3376
        %v3382 = vpop.xlane.xlu0 %3381
        %3383 = vadd.xlane.f32.xlu0 %v3377
        %v3384 = vpop.xlane.xlu0 %3383
        %3385 = vadd.xlane.f32.xlu0 %v3378
        %v3386 = vpop.xlane.xlu0 %3385
        %v3387 = vmul.f32 %v3380, %v537
        %v3388 = vmul.f32 %v3382, %v537
        %v3389 = vmul.f32 %v3384, %v537
        %v3390 = vmul.f32 %v3386, %v537
        %v3391 = vsub.f32 %v3375, %v3387
        %v3392 = vsub.f32 %v3376, %v3388
        %v3393 = vsub.f32 %v3377, %v3389
        %v3394 = vsub.f32 %v3378, %v3390
        %v3395 = vmul.f32 %v3391, %v3391
        %v3396 = vmul.f32 %v3392, %v3392
        %v3397 = vmul.f32 %v3393, %v3393
        %v3398 = vmul.f32 %v3394, %v3394
        %3399 = vadd.xlane.f32.xlu0 %v3395
        %v3400 = vpop.xlane.xlu0 %3399
        %3401 = vadd.xlane.f32.xlu0 %v3396
        %v3402 = vpop.xlane.xlu0 %3401
        %3403 = vadd.xlane.f32.xlu0 %v3397
        %v3404 = vpop.xlane.xlu0 %3403
        %3405 = vadd.xlane.f32.xlu0 %v3398
        %v3406 = vpop.xlane.xlu0 %3405
        %v3407 = vmul.f32 %v3400, %v537
        %v3408 = vmul.f32 %v3402, %v537
        %v3409 = vmul.f32 %v3404, %v537
        %v3410 = vmul.f32 %v3406, %v537
        %v3411 = vadd.f32 %v3407, 1e-05
        %v3412 = vadd.f32 %v3408, 1e-05
        %v3413 = vadd.f32 %v3409, 1e-05
        %v3414 = vadd.f32 %v3410, 1e-05
        %v3415 = vrsqrt.pop %v3411
        %v3416 = vrsqrt.pop %v3412
        %v3417 = vrsqrt.pop %v3413
        %v3418 = vrsqrt.pop %v3414
        %v3419 = vmul.f32 %v3391, %v3415
        %v3420 = vmul.f32 %v3392, %v3416
        %v3421 = vmul.f32 %v3393, %v3417
        %v3422 = vmul.f32 %v3394, %v3418
        %v3423 = vlaneseq
        %v3424 = vshrl.u32 %v3423, 7
        %v3425 = vsub.s32 2, %v3424
        %v3426 = vrot.slane %v525, %v3425
        %v3427 = vmul.f32 %v3419, %v3426
        %v3428 = vmul.f32 %v3420, %v3426
        %v3429 = vmul.f32 %v3421, %v3426
        %v3430 = vmul.f32 %v3422, %v3426
        %v3431 = vlaneseq
        %v3432 = vshrl.u32 %v3431, 7
        %v3433 = vsub.s32 3, %v3432
        %v3434 = vrot.slane %v525, %v3433
        %v3435 = vadd.f32 %v3427, %v3434
        %v3436 = vadd.f32 %v3428, %v3434
        %v3437 = vadd.f32 %v3429, %v3434
        %v3438 = vadd.f32 %v3430, %v3434
        %v3439 = vpack.c.bf16 %v3436, %v3435
        %v3440 = vpack.c.bf16 %v3438, %v3437
        %v3441 = vld [vmem:[%s451] sm:$0xff]
        %v3442 = vld [vmem:[%s451 + $0x8] sm:$0xff]
        %v3443 = vld [vmem:[%s451 + $0x10] sm:$0xff]
        %v3444 = vld [vmem:[%s451 + $0x18] sm:$0xff]
        %v3445 = vld [vmem:[%s451 + $0x20] sm:$0xff]
        %v3446 = vld [vmem:[%s451 + $0x28] sm:$0xff]
        %v3447 = vld [vmem:[%s451 + $0x30] sm:$0xff]
        %v3448 = vld [vmem:[%s451 + $0x38] sm:$0xff]
        %v3449 = vld [vmem:[%s451 + $0x40] sm:$0xff]
        %v3450 = vld [vmem:[%s451 + $0x48] sm:$0xff]
        %v3451 = vld [vmem:[%s451 + $0x50] sm:$0xff]
        %v3452 = vld [vmem:[%s451 + $0x58] sm:$0xff]
        %v3453 = vld [vmem:[%s451 + $0x60] sm:$0xff]
        %v3454 = vld [vmem:[%s451 + $0x68] sm:$0xff]
        %v3455 = vld [vmem:[%s451 + $0x70] sm:$0xff]
        %v3456 = vld [vmem:[%s451 + $0x78] sm:$0xff]
        %v3457 = vld [vmem:[%s451 + $0x80] sm:$0xff]
        %v3458 = vld [vmem:[%s451 + $0x88] sm:$0xff]
        %v3459 = vld [vmem:[%s451 + $0x90] sm:$0xff]
        %v3460 = vld [vmem:[%s451 + $0x98] sm:$0xff]
        %v3461 = vld [vmem:[%s451 + $0xa0] sm:$0xff]
        %v3462 = vld [vmem:[%s451 + $0xa8] sm:$0xff]
        %v3463 = vld [vmem:[%s451 + $0xb0] sm:$0xff]
        %v3464 = vld [vmem:[%s451 + $0xb8] sm:$0xff]
        %v3465 = vld [vmem:[%s451 + $0xc0] sm:$0xff]
        %v3466 = vld [vmem:[%s451 + $0xc8] sm:$0xff]
        %v3467 = vld [vmem:[%s451 + $0xd0] sm:$0xff]
        %v3468 = vld [vmem:[%s451 + $0xd8] sm:$0xff]
        %v3469 = vld [vmem:[%s451 + $0xe0] sm:$0xff]
        %v3470 = vld [vmem:[%s451 + $0xe8] sm:$0xff]
        %v3471 = vld [vmem:[%s451 + $0xf0] sm:$0xff]
        %v3472 = vld [vmem:[%s451 + $0xf8] sm:$0xff]
        %v3473 = vlaneseq
        %v3474 = vshrl.u32 %v3473, 7
        %v3475 = vsub.s32 5, %v3474
        %v3476 = vrot.slane %v525, %v3475
        %v3477 = vlaneseq
        %v3478 = vshrl.u32 %v3477, 7
        %v3479 = vsub.s32 5, %v3478
        %v3480 = vrot.slane %v526, %v3479
        %v3481 = vlaneseq
        %v3482 = vshrl.u32 %v3481, 7
        %v3483 = vsub.s32 5, %v3482
        %v3484 = vrot.slane %v527, %v3483
        %v3485 = vlaneseq
        %v3486 = vshrl.u32 %v3485, 7
        %v3487 = vsub.s32 5, %v3486
        %v3488 = vrot.slane %v528, %v3487
        %v3521 = vunpack.c.l.b16 %v3441
        %v3522 = vunpack.c.h.b16 %v3441
        %v3523 = vunpack.c.l.b16 %v3442
        %v3524 = vunpack.c.h.b16 %v3442
        %v3525 = vunpack.c.l.b16 %v3443
        %v3526 = vunpack.c.h.b16 %v3443
        %v3527 = vunpack.c.l.b16 %v3444
        %v3528 = vunpack.c.h.b16 %v3444
        %v3529 = vunpack.c.l.b16 %v3445
        %v3530 = vunpack.c.h.b16 %v3445
        %v3531 = vunpack.c.l.b16 %v3446
        %v3532 = vunpack.c.h.b16 %v3446
        %v3533 = vunpack.c.l.b16 %v3447
        %v3534 = vunpack.c.h.b16 %v3447
        %v3535 = vunpack.c.l.b16 %v3448
        %v3536 = vunpack.c.h.b16 %v3448
        %v3537 = vunpack.c.l.b16 %v3449
        %v3538 = vunpack.c.h.b16 %v3449
        %v3539 = vunpack.c.l.b16 %v3450
        %v3540 = vunpack.c.h.b16 %v3450
        %v3541 = vunpack.c.l.b16 %v3451
        %v3542 = vunpack.c.h.b16 %v3451
        %v3543 = vunpack.c.l.b16 %v3452
        %v3544 = vunpack.c.h.b16 %v3452
        %v3545 = vunpack.c.l.b16 %v3453
        %v3546 = vunpack.c.h.b16 %v3453
        %v3547 = vunpack.c.l.b16 %v3454
        %v3548 = vunpack.c.h.b16 %v3454
        %v3549 = vunpack.c.l.b16 %v3455
        %v3550 = vunpack.c.h.b16 %v3455
        %v3551 = vunpack.c.l.b16 %v3456
        %v3552 = vunpack.c.h.b16 %v3456
        %v3553 = vunpack.c.l.b16 %v3457
        %v3554 = vunpack.c.h.b16 %v3457
        %v3555 = vunpack.c.l.b16 %v3458
        %v3556 = vunpack.c.h.b16 %v3458
        %v3557 = vunpack.c.l.b16 %v3459
        %v3558 = vunpack.c.h.b16 %v3459
        %v3559 = vunpack.c.l.b16 %v3460
        %v3560 = vunpack.c.h.b16 %v3460
        %v3561 = vunpack.c.l.b16 %v3461
        %v3562 = vunpack.c.h.b16 %v3461
        %v3563 = vunpack.c.l.b16 %v3462
        %v3564 = vunpack.c.h.b16 %v3462
        %v3565 = vunpack.c.l.b16 %v3463
        %v3566 = vunpack.c.h.b16 %v3463
        %v3567 = vunpack.c.l.b16 %v3464
        %v3568 = vunpack.c.h.b16 %v3464
        %v3569 = vunpack.c.l.b16 %v3465
        %v3570 = vunpack.c.h.b16 %v3465
        %v3571 = vunpack.c.l.b16 %v3466
        %v3572 = vunpack.c.h.b16 %v3466
        %v3573 = vunpack.c.l.b16 %v3467
        %v3574 = vunpack.c.h.b16 %v3467
        %v3575 = vunpack.c.l.b16 %v3468
        %v3576 = vunpack.c.h.b16 %v3468
        %v3577 = vunpack.c.l.b16 %v3469
        %v3578 = vunpack.c.h.b16 %v3469
        %v3579 = vunpack.c.l.b16 %v3470
        %v3580 = vunpack.c.h.b16 %v3470
        %v3581 = vunpack.c.l.b16 %v3471
        %v3582 = vunpack.c.h.b16 %v3471
        %v3583 = vunpack.c.l.b16 %v3472
        %v3584 = vunpack.c.h.b16 %v3472
        %v3585 = vpack.c.b16 %v3525, %v3521
        %v3586 = vpack.c.b16 %v3526, %v3522
        %v3587 = vpack.c.b16 %v3527, %v3523
        %v3588 = vpack.c.b16 %v3528, %v3524
        %v3589 = vpack.c.b16 %v3533, %v3529
        %v3590 = vpack.c.b16 %v3534, %v3530
        %v3591 = vpack.c.b16 %v3535, %v3531
        %v3592 = vpack.c.b16 %v3536, %v3532
        %v3593 = vpack.c.b16 %v3541, %v3537
        %v3594 = vpack.c.b16 %v3542, %v3538
        %v3595 = vpack.c.b16 %v3543, %v3539
        %v3596 = vpack.c.b16 %v3544, %v3540
        %v3597 = vpack.c.b16 %v3549, %v3545
        %v3598 = vpack.c.b16 %v3550, %v3546
        %v3599 = vpack.c.b16 %v3551, %v3547
        %v3600 = vpack.c.b16 %v3552, %v3548
        %v3601 = vpack.c.b16 %v3557, %v3553
        %v3602 = vpack.c.b16 %v3558, %v3554
        %v3603 = vpack.c.b16 %v3559, %v3555
        %v3604 = vpack.c.b16 %v3560, %v3556
        %v3605 = vpack.c.b16 %v3565, %v3561
        %v3606 = vpack.c.b16 %v3566, %v3562
        %v3607 = vpack.c.b16 %v3567, %v3563
        %v3608 = vpack.c.b16 %v3568, %v3564
        %v3609 = vpack.c.b16 %v3573, %v3569
        %v3610 = vpack.c.b16 %v3574, %v3570
        %v3611 = vpack.c.b16 %v3575, %v3571
        %v3612 = vpack.c.b16 %v3576, %v3572
        %v3613 = vpack.c.b16 %v3581, %v3577
        %v3614 = vpack.c.b16 %v3582, %v3578
        %v3615 = vpack.c.b16 %v3583, %v3579
        %v3616 = vpack.c.b16 %v3584, %v3580
        %3649 = vmatprep.subr.bf16.mxu0 %v3586
        %3650 = vmatpush1.bf16.msra.mxu0 %v3585
        %3651 = vmatprep.subr.bf16.mxu0 %v3590
        %3652 = vmatpush1.bf16.msra.mxu0 %v3589
        %3653 = vmatprep.subr.bf16.mxu0 %v3594
        %3654 = vmatpush1.bf16.msra.mxu0 %v3593
        %3655 = vmatprep.subr.bf16.mxu0 %v3598
        %3656 = vmatpush1.bf16.msra.mxu0 %v3597
        %3657 = vmatprep.subr.bf16.mxu0 %v3602
        %3658 = vmatpush1.bf16.msra.mxu0 %v3601
        %3659 = vmatprep.subr.bf16.mxu0 %v3606
        %3660 = vmatpush1.bf16.msra.mxu0 %v3605
        %3661 = vmatprep.subr.bf16.mxu0 %v3610
        %3662 = vmatpush1.bf16.msra.mxu0 %v3609
        %3663 = vmatprep.subr.bf16.mxu0 %v3614
        %3664 = vmatpush1.bf16.msra.mxu0 %v3613
        %3665 = vmatprep.subr.bf16.mxu0 0
        %3666 = vmatpush1.bf16.msra.mxu0 0
        %3667 = vmatprep.subr.bf16.mxu0 0
        %3668 = vmatpush1.bf16.msra.mxu0 0
        %3669 = vmatprep.subr.bf16.mxu0 0
        %3670 = vmatpush1.bf16.msra.mxu0 0
        %3671 = vmatprep.subr.bf16.mxu0 0
        %3672 = vmatpush1.bf16.msra.mxu0 0
        %3673 = vmatprep.subr.bf16.mxu0 0
        %3674 = vmatpush1.bf16.msra.mxu0 0
        %3675 = vmatprep.subr.bf16.mxu0 0
        %3676 = vmatpush1.bf16.msra.mxu0 0
        %3677 = vmatprep.subr.bf16.mxu0 0
        %3678 = vmatpush1.bf16.msra.mxu0 0
        %3679 = vmatprep.subr.bf16.mxu0 0
        %3680 = vmatpush1.bf16.msra.mxu0 0
        %3681 = vmatprep.mubr.bf16.mxu0 0
        %3682 = vmatmul.mubr.bf16.gmra.mrb[0].mxu0 %v3439
        %v3683 = vpop.f32.mrb[0].mxu0
        %v3684 = vadd.f32 %v3476, %v3683
        %v3685 = vpop.f32.mrb[0].mxu0
        %v3686 = vadd.f32 %v3480, %v3685
        %v3687 = vpop.f32.mrb[0].mxu0
        %v3688 = vadd.f32 %v3476, %v3687
        %v3689 = vpop.f32.mrb[0].mxu0
        %v3690 = vadd.f32 %v3480, %v3689
        %3691 = vmatprep.mubr.bf16.mxu0 0
        %3692 = vmatmul.mubr.bf16.gmra.mrb[0].mxu0 %v3440
        %v3693 = vpop.f32.mrb[0].mxu0
        %v3694 = vadd.f32 %v3476, %v3693
        %v3695 = vpop.f32.mrb[0].mxu0
        %v3696 = vadd.f32 %v3480, %v3695
        %v3697 = vpop.f32.mrb[0].mxu0
        %v3698 = vadd.f32 %v3476, %v3697
        %v3699 = vpop.f32.mrb[0].mxu0
        %v3700 = vadd.f32 %v3480, %v3699
        %3701 = vdwg.mxu0
        %3702 = vmatprep.subr.bf16.mxu0 %v3588
        %3703 = vmatpush1.bf16.msra.mxu0 %v3587
        %3704 = vmatprep.subr.bf16.mxu0 %v3592
        %3705 = vmatpush1.bf16.msra.mxu0 %v3591
        %3706 = vmatprep.subr.bf16.mxu0 %v3596
        %3707 = vmatpush1.bf16.msra.mxu0 %v3595
        %3708 = vmatprep.subr.bf16.mxu0 %v3600
        %3709 = vmatpush1.bf16.msra.mxu0 %v3599
        %3710 = vmatprep.subr.bf16.mxu0 %v3604
        %3711 = vmatpush1.bf16.msra.mxu0 %v3603
        %3712 = vmatprep.subr.bf16.mxu0 %v3608
        %3713 = vmatpush1.bf16.msra.mxu0 %v3607
        %3714 = vmatprep.subr.bf16.mxu0 %v3612
        %3715 = vmatpush1.bf16.msra.mxu0 %v3611
        %3716 = vmatprep.subr.bf16.mxu0 %v3616
        %3717 = vmatpush1.bf16.msra.mxu0 %v3615
        %3718 = vmatprep.subr.bf16.mxu0 0
        %3719 = vmatpush1.bf16.msra.mxu0 0
        %3720 = vmatprep.subr.bf16.mxu0 0
        %3721 = vmatpush1.bf16.msra.mxu0 0
        %3722 = vmatprep.subr.bf16.mxu0 0
        %3723 = vmatpush1.bf16.msra.mxu0 0
        %3724 = vmatprep.subr.bf16.mxu0 0
        %3725 = vmatpush1.bf16.msra.mxu0 0
        %3726 = vmatprep.subr.bf16.mxu0 0
        %3727 = vmatpush1.bf16.msra.mxu0 0
        %3728 = vmatprep.subr.bf16.mxu0 0
        %3729 = vmatpush1.bf16.msra.mxu0 0
        %3730 = vmatprep.subr.bf16.mxu0 0
        %3731 = vmatpush1.bf16.msra.mxu0 0
        %3732 = vmatprep.subr.bf16.mxu0 0
        %3733 = vmatpush1.bf16.msra.mxu0 0
        %3734 = vmatprep.mubr.bf16.mxu0 0
        %3735 = vmatmul.mubr.bf16.gmra.mrb[0].mxu0 %v3439
        %v3736 = vpop.f32.mrb[0].mxu0
        %v3737 = vadd.f32 %v3484, %v3736
        %v3738 = vpop.f32.mrb[0].mxu0
        %v3739 = vadd.f32 %v3488, %v3738
        %v3740 = vpop.f32.mrb[0].mxu0
        %v3741 = vadd.f32 %v3484, %v3740
        %v3742 = vpop.f32.mrb[0].mxu0
        %v3743 = vadd.f32 %v3488, %v3742
        %3744 = vmatprep.mubr.bf16.mxu0 0
        %3745 = vmatmul.mubr.bf16.gmra.mrb[0].mxu0 %v3440
        %v3746 = vpop.f32.mrb[0].mxu0
        %v3747 = vadd.f32 %v3484, %v3746
        %v3748 = vpop.f32.mrb[0].mxu0
        %v3749 = vadd.f32 %v3488, %v3748
        %v3750 = vpop.f32.mrb[0].mxu0
        %v3751 = vadd.f32 %v3484, %v3750
        %v3752 = vpop.f32.mrb[0].mxu0
        %v3753 = vadd.f32 %v3488, %v3752
        %3754 = vdwg.mxu0
        %v3755 = vmul.f32 %v3684, 0.5
        %v3756 = vmul.f32 %v3686, 0.5
        %v3757 = vmul.f32 %v3737, 0.5
        %v3758 = vmul.f32 %v3739, 0.5
        %v3759 = vmul.f32 %v3688, 0.5
        %v3760 = vmul.f32 %v3690, 0.5
        %v3761 = vmul.f32 %v3741, 0.5
        %v3762 = vmul.f32 %v3743, 0.5
        %v3763 = vmul.f32 %v3694, 0.5
        %v3764 = vmul.f32 %v3696, 0.5
        %v3765 = vmul.f32 %v3747, 0.5
        %v3766 = vmul.f32 %v3749, 0.5
        %v3767 = vmul.f32 %v3698, 0.5
        %v3768 = vmul.f32 %v3700, 0.5
        %v3769 = vmul.f32 %v3751, 0.5
        %v3770 = vmul.f32 %v3753, 0.5
        %v3771 = vmul.f32 %v3684, 0.70710677
        %v3772 = vmul.f32 %v3686, 0.70710677
        %v3773 = vmul.f32 %v3737, 0.70710677
        %v3774 = vmul.f32 %v3739, 0.70710677
        %v3775 = vmul.f32 %v3688, 0.70710677
        %v3776 = vmul.f32 %v3690, 0.70710677
        %v3777 = vmul.f32 %v3741, 0.70710677
        %v3778 = vmul.f32 %v3743, 0.70710677
        %v3779 = vmul.f32 %v3694, 0.70710677
        %v3780 = vmul.f32 %v3696, 0.70710677
        %v3781 = vmul.f32 %v3747, 0.70710677
        %v3782 = vmul.f32 %v3749, 0.70710677
        %v3783 = vmul.f32 %v3698, 0.70710677
        %v3784 = vmul.f32 %v3700, 0.70710677
        %v3785 = vmul.f32 %v3751, 0.70710677
        %v3786 = vmul.f32 %v3753, 0.70710677
        %vm3787 = vcmp.ge.f32.partialorder %v3771, 0.0
        %vm3788 = vcmp.ge.f32.partialorder %v3772, 0.0
        %vm3789 = vcmp.ge.f32.partialorder %v3773, 0.0
        %vm3790 = vcmp.ge.f32.partialorder %v3774, 0.0
        %vm3791 = vcmp.ge.f32.partialorder %v3775, 0.0
        %vm3792 = vcmp.ge.f32.partialorder %v3776, 0.0
        %vm3793 = vcmp.ge.f32.partialorder %v3777, 0.0
        %vm3794 = vcmp.ge.f32.partialorder %v3778, 0.0
        %vm3795 = vcmp.ge.f32.partialorder %v3779, 0.0
        %vm3796 = vcmp.ge.f32.partialorder %v3780, 0.0
        %vm3797 = vcmp.ge.f32.partialorder %v3781, 0.0
        %vm3798 = vcmp.ge.f32.partialorder %v3782, 0.0
        %vm3799 = vcmp.ge.f32.partialorder %v3783, 0.0
        %vm3800 = vcmp.ge.f32.partialorder %v3784, 0.0
        %vm3801 = vcmp.ge.f32.partialorder %v3785, 0.0
        %vm3802 = vcmp.ge.f32.partialorder %v3786, 0.0
        %v3803 = vsel %vm3787, 1.0, -1.0
        %v3804 = vsel %vm3788, 1.0, -1.0
        %v3805 = vsel %vm3789, 1.0, -1.0
        %v3806 = vsel %vm3790, 1.0, -1.0
        %v3807 = vsel %vm3791, 1.0, -1.0
        %v3808 = vsel %vm3792, 1.0, -1.0
        %v3809 = vsel %vm3793, 1.0, -1.0
        %v3810 = vsel %vm3794, 1.0, -1.0
        %v3811 = vsel %vm3795, 1.0, -1.0
        %v3812 = vsel %vm3796, 1.0, -1.0
        %v3813 = vsel %vm3797, 1.0, -1.0
        %v3814 = vsel %vm3798, 1.0, -1.0
        %v3815 = vsel %vm3799, 1.0, -1.0
        %v3816 = vsel %vm3800, 1.0, -1.0
        %v3817 = vsel %vm3801, 1.0, -1.0
        %v3818 = vsel %vm3802, 1.0, -1.0
        %v3819 = vand.u32 2147483647, %v3771
        %v3820 = vand.u32 2147483647, %v3772
        %v3821 = vand.u32 2147483647, %v3773
        %v3822 = vand.u32 2147483647, %v3774
        %v3823 = vand.u32 2147483647, %v3775
        %v3824 = vand.u32 2147483647, %v3776
        %v3825 = vand.u32 2147483647, %v3777
        %v3826 = vand.u32 2147483647, %v3778
        %v3827 = vand.u32 2147483647, %v3779
        %v3828 = vand.u32 2147483647, %v3780
        %v3829 = vand.u32 2147483647, %v3781
        %v3830 = vand.u32 2147483647, %v3782
        %v3831 = vand.u32 2147483647, %v3783
        %v3832 = vand.u32 2147483647, %v3784
        %v3833 = vand.u32 2147483647, %v3785
        %v3834 = vand.u32 2147483647, %v3786
        %v3835 = vmul.f32 %v3819, 0.3275911
        %v3836 = vmul.f32 %v3820, 0.3275911
        %v3837 = vmul.f32 %v3821, 0.3275911
        %v3838 = vmul.f32 %v3822, 0.3275911
        %v3839 = vmul.f32 %v3823, 0.3275911
        %v3840 = vmul.f32 %v3824, 0.3275911
        %v3841 = vmul.f32 %v3825, 0.3275911
        %v3842 = vmul.f32 %v3826, 0.3275911
        %v3843 = vmul.f32 %v3827, 0.3275911
        %v3844 = vmul.f32 %v3828, 0.3275911
        %v3845 = vmul.f32 %v3829, 0.3275911
        %v3846 = vmul.f32 %v3830, 0.3275911
        %v3847 = vmul.f32 %v3831, 0.3275911
        %v3848 = vmul.f32 %v3832, 0.3275911
        %v3849 = vmul.f32 %v3833, 0.3275911
        %v3850 = vmul.f32 %v3834, 0.3275911
        %v3851 = vadd.f32 %v3835, 1.0
        %v3852 = vadd.f32 %v3836, 1.0
        %v3853 = vadd.f32 %v3837, 1.0
        %v3854 = vadd.f32 %v3838, 1.0
        %v3855 = vadd.f32 %v3839, 1.0
        %v3856 = vadd.f32 %v3840, 1.0
        %v3857 = vadd.f32 %v3841, 1.0
        %v3858 = vadd.f32 %v3842, 1.0
        %v3859 = vadd.f32 %v3843, 1.0
        %v3860 = vadd.f32 %v3844, 1.0
        %v3861 = vadd.f32 %v3845, 1.0
        %v3862 = vadd.f32 %v3846, 1.0
        %v3863 = vadd.f32 %v3847, 1.0
        %v3864 = vadd.f32 %v3848, 1.0
        %v3865 = vadd.f32 %v3849, 1.0
        %v3866 = vadd.f32 %v3850, 1.0
        %v3867 = vrcp.pop %v3851
        %v3868 = vmul.f32 1.0, %v3867
        %v3869 = vrcp.pop %v3852
        %v3870 = vmul.f32 1.0, %v3869
        %v3871 = vrcp.pop %v3853
        %v3872 = vmul.f32 1.0, %v3871
        %v3873 = vrcp.pop %v3854
        %v3874 = vmul.f32 1.0, %v3873
        %v3875 = vrcp.pop %v3855
        %v3876 = vmul.f32 1.0, %v3875
        %v3877 = vrcp.pop %v3856
        %v3878 = vmul.f32 1.0, %v3877
        %v3879 = vrcp.pop %v3857
        %v3880 = vmul.f32 1.0, %v3879
        %v3881 = vrcp.pop %v3858
        %v3882 = vmul.f32 1.0, %v3881
        %v3883 = vrcp.pop %v3859
        %v3884 = vmul.f32 1.0, %v3883
        %v3885 = vrcp.pop %v3860
        %v3886 = vmul.f32 1.0, %v3885
        %v3887 = vrcp.pop %v3861
        %v3888 = vmul.f32 1.0, %v3887
        %v3889 = vrcp.pop %v3862
        %v3890 = vmul.f32 1.0, %v3889
        %v3891 = vrcp.pop %v3863
        %v3892 = vmul.f32 1.0, %v3891
        %v3893 = vrcp.pop %v3864
        %v3894 = vmul.f32 1.0, %v3893
        %v3895 = vrcp.pop %v3865
        %v3896 = vmul.f32 1.0, %v3895
        %v3897 = vrcp.pop %v3866
        %v3898 = vmul.f32 1.0, %v3897
        %v3899 = vmul.f32 %v3868, 1.0614054
        %v3900 = vmul.f32 %v3870, 1.0614054
        %v3901 = vmul.f32 %v3872, 1.0614054
        %v3902 = vmul.f32 %v3874, 1.0614054
        %v3903 = vmul.f32 %v3876, 1.0614054
        %v3904 = vmul.f32 %v3878, 1.0614054
        %v3905 = vmul.f32 %v3880, 1.0614054
        %v3906 = vmul.f32 %v3882, 1.0614054
        %v3907 = vmul.f32 %v3884, 1.0614054
        %v3908 = vmul.f32 %v3886, 1.0614054
        %v3909 = vmul.f32 %v3888, 1.0614054
        %v3910 = vmul.f32 %v3890, 1.0614054
        %v3911 = vmul.f32 %v3892, 1.0614054
        %v3912 = vmul.f32 %v3894, 1.0614054
        %v3913 = vmul.f32 %v3896, 1.0614054
        %v3914 = vmul.f32 %v3898, 1.0614054
        %v3915 = vadd.f32 %v3899, -1.4531521
        %v3916 = vadd.f32 %v3900, -1.4531521
        %v3917 = vadd.f32 %v3901, -1.4531521
        %v3918 = vadd.f32 %v3902, -1.4531521
        %v3919 = vadd.f32 %v3903, -1.4531521
        %v3920 = vadd.f32 %v3904, -1.4531521
        %v3921 = vadd.f32 %v3905, -1.4531521
        %v3922 = vadd.f32 %v3906, -1.4531521
        %v3923 = vadd.f32 %v3907, -1.4531521
        %v3924 = vadd.f32 %v3908, -1.4531521
        %v3925 = vadd.f32 %v3909, -1.4531521
        %v3926 = vadd.f32 %v3910, -1.4531521
        %v3927 = vadd.f32 %v3911, -1.4531521
        %v3928 = vadd.f32 %v3912, -1.4531521
        %v3929 = vadd.f32 %v3913, -1.4531521
        %v3930 = vadd.f32 %v3914, -1.4531521
        %v3931 = vmul.f32 %v3915, %v3868
        %v3932 = vmul.f32 %v3916, %v3870
        %v3933 = vmul.f32 %v3917, %v3872
        %v3934 = vmul.f32 %v3918, %v3874
        %v3935 = vmul.f32 %v3919, %v3876
        %v3936 = vmul.f32 %v3920, %v3878
        %v3937 = vmul.f32 %v3921, %v3880
        %v3938 = vmul.f32 %v3922, %v3882
        %v3939 = vmul.f32 %v3923, %v3884
        %v3940 = vmul.f32 %v3924, %v3886
        %v3941 = vmul.f32 %v3925, %v3888
        %v3942 = vmul.f32 %v3926, %v3890
        %v3943 = vmul.f32 %v3927, %v3892
        %v3944 = vmul.f32 %v3928, %v3894
        %v3945 = vmul.f32 %v3929, %v3896
        %v3946 = vmul.f32 %v3930, %v3898
        %v3947 = vadd.f32 %v3931, 1.4214138
        %v3948 = vadd.f32 %v3932, 1.4214138
        %v3949 = vadd.f32 %v3933, 1.4214138
        %v3950 = vadd.f32 %v3934, 1.4214138
        %v3951 = vadd.f32 %v3935, 1.4214138
        %v3952 = vadd.f32 %v3936, 1.4214138
        %v3953 = vadd.f32 %v3937, 1.4214138
        %v3954 = vadd.f32 %v3938, 1.4214138
        %v3955 = vadd.f32 %v3939, 1.4214138
        %v3956 = vadd.f32 %v3940, 1.4214138
        %v3957 = vadd.f32 %v3941, 1.4214138
        %v3958 = vadd.f32 %v3942, 1.4214138
        %v3959 = vadd.f32 %v3943, 1.4214138
        %v3960 = vadd.f32 %v3944, 1.4214138
        %v3961 = vadd.f32 %v3945, 1.4214138
        %v3962 = vadd.f32 %v3946, 1.4214138
        %v3963 = vmul.f32 %v3947, %v3868
        %v3964 = vmul.f32 %v3948, %v3870
        %v3965 = vmul.f32 %v3949, %v3872
        %v3966 = vmul.f32 %v3950, %v3874
        %v3967 = vmul.f32 %v3951, %v3876
        %v3968 = vmul.f32 %v3952, %v3878
        %v3969 = vmul.f32 %v3953, %v3880
        %v3970 = vmul.f32 %v3954, %v3882
        %v3971 = vmul.f32 %v3955, %v3884
        %v3972 = vmul.f32 %v3956, %v3886
        %v3973 = vmul.f32 %v3957, %v3888
        %v3974 = vmul.f32 %v3958, %v3890
        %v3975 = vmul.f32 %v3959, %v3892
        %v3976 = vmul.f32 %v3960, %v3894
        %v3977 = vmul.f32 %v3961, %v3896
        %v3978 = vmul.f32 %v3962, %v3898
        %v3979 = vadd.f32 %v3963, -0.28449672
        %v3980 = vadd.f32 %v3964, -0.28449672
        %v3981 = vadd.f32 %v3965, -0.28449672
        %v3982 = vadd.f32 %v3966, -0.28449672
        %v3983 = vadd.f32 %v3967, -0.28449672
        %v3984 = vadd.f32 %v3968, -0.28449672
        %v3985 = vadd.f32 %v3969, -0.28449672
        %v3986 = vadd.f32 %v3970, -0.28449672
        %v3987 = vadd.f32 %v3971, -0.28449672
        %v3988 = vadd.f32 %v3972, -0.28449672
        %v3989 = vadd.f32 %v3973, -0.28449672
        %v3990 = vadd.f32 %v3974, -0.28449672
        %v3991 = vadd.f32 %v3975, -0.28449672
        %v3992 = vadd.f32 %v3976, -0.28449672
        %v3993 = vadd.f32 %v3977, -0.28449672
        %v3994 = vadd.f32 %v3978, -0.28449672
        %v3995 = vmul.f32 %v3979, %v3868
        %v3996 = vmul.f32 %v3980, %v3870
        %v3997 = vmul.f32 %v3981, %v3872
        %v3998 = vmul.f32 %v3982, %v3874
        %v3999 = vmul.f32 %v3983, %v3876
        %v4000 = vmul.f32 %v3984, %v3878
        %v4001 = vmul.f32 %v3985, %v3880
        %v4002 = vmul.f32 %v3986, %v3882
        %v4003 = vmul.f32 %v3987, %v3884
        %v4004 = vmul.f32 %v3988, %v3886
        %v4005 = vmul.f32 %v3989, %v3888
        %v4006 = vmul.f32 %v3990, %v3890
        %v4007 = vmul.f32 %v3991, %v3892
        %v4008 = vmul.f32 %v3992, %v3894
        %v4009 = vmul.f32 %v3993, %v3896
        %v4010 = vmul.f32 %v3994, %v3898
        %v4011 = vadd.f32 %v3995, 0.2548296
        %v4012 = vadd.f32 %v3996, 0.2548296
        %v4013 = vadd.f32 %v3997, 0.2548296
        %v4014 = vadd.f32 %v3998, 0.2548296
        %v4015 = vadd.f32 %v3999, 0.2548296
        %v4016 = vadd.f32 %v4000, 0.2548296
        %v4017 = vadd.f32 %v4001, 0.2548296
        %v4018 = vadd.f32 %v4002, 0.2548296
        %v4019 = vadd.f32 %v4003, 0.2548296
        %v4020 = vadd.f32 %v4004, 0.2548296
        %v4021 = vadd.f32 %v4005, 0.2548296
        %v4022 = vadd.f32 %v4006, 0.2548296
        %v4023 = vadd.f32 %v4007, 0.2548296
        %v4024 = vadd.f32 %v4008, 0.2548296
        %v4025 = vadd.f32 %v4009, 0.2548296
        %v4026 = vadd.f32 %v4010, 0.2548296
        %v4027 = vmul.f32 %v4011, %v3868
        %v4028 = vmul.f32 %v4012, %v3870
        %v4029 = vmul.f32 %v4013, %v3872
        %v4030 = vmul.f32 %v4014, %v3874
        %v4031 = vmul.f32 %v4015, %v3876
        %v4032 = vmul.f32 %v4016, %v3878
        %v4033 = vmul.f32 %v4017, %v3880
        %v4034 = vmul.f32 %v4018, %v3882
        %v4035 = vmul.f32 %v4019, %v3884
        %v4036 = vmul.f32 %v4020, %v3886
        %v4037 = vmul.f32 %v4021, %v3888
        %v4038 = vmul.f32 %v4022, %v3890
        %v4039 = vmul.f32 %v4023, %v3892
        %v4040 = vmul.f32 %v4024, %v3894
        %v4041 = vmul.f32 %v4025, %v3896
        %v4042 = vmul.f32 %v4026, %v3898
        %v4043 = vsub.f32 0.0, %v3819
        %v4044 = vsub.f32 0.0, %v3820
        %v4045 = vsub.f32 0.0, %v3821
        %v4046 = vsub.f32 0.0, %v3822
        %v4047 = vsub.f32 0.0, %v3823
        %v4048 = vsub.f32 0.0, %v3824
        %v4049 = vsub.f32 0.0, %v3825
        %v4050 = vsub.f32 0.0, %v3826
        %v4051 = vsub.f32 0.0, %v3827
        %v4052 = vsub.f32 0.0, %v3828
        %v4053 = vsub.f32 0.0, %v3829
        %v4054 = vsub.f32 0.0, %v3830
        %v4055 = vsub.f32 0.0, %v3831
        %v4056 = vsub.f32 0.0, %v3832
        %v4057 = vsub.f32 0.0, %v3833
        %v4058 = vsub.f32 0.0, %v3834
        %v4059 = vmul.f32 %v4043, %v3819
        %v4060 = vmul.f32 %v4044, %v3820
        %v4061 = vmul.f32 %v4045, %v3821
        %v4062 = vmul.f32 %v4046, %v3822
        %v4063 = vmul.f32 %v4047, %v3823
        %v4064 = vmul.f32 %v4048, %v3824
        %v4065 = vmul.f32 %v4049, %v3825
        %v4066 = vmul.f32 %v4050, %v3826
        %v4067 = vmul.f32 %v4051, %v3827
        %v4068 = vmul.f32 %v4052, %v3828
        %v4069 = vmul.f32 %v4053, %v3829
        %v4070 = vmul.f32 %v4054, %v3830
        %v4071 = vmul.f32 %v4055, %v3831
        %v4072 = vmul.f32 %v4056, %v3832
        %v4073 = vmul.f32 %v4057, %v3833
        %v4074 = vmul.f32 %v4058, %v3834
        %v4075 = vmul.f32 %v4059, 1.442695
        %v4076 = vpow.pop %v4075
        %v4077 = vmul.f32 %v4060, 1.442695
        %v4078 = vpow.pop %v4077
        %v4079 = vmul.f32 %v4061, 1.442695
        %v4080 = vpow.pop %v4079
        %v4081 = vmul.f32 %v4062, 1.442695
        %v4082 = vpow.pop %v4081
        %v4083 = vmul.f32 %v4063, 1.442695
        %v4084 = vpow.pop %v4083
        %v4085 = vmul.f32 %v4064, 1.442695
        %v4086 = vpow.pop %v4085
        %v4087 = vmul.f32 %v4065, 1.442695
        %v4088 = vpow.pop %v4087
        %v4089 = vmul.f32 %v4066, 1.442695
        %v4090 = vpow.pop %v4089
        %v4091 = vmul.f32 %v4067, 1.442695
        %v4092 = vpow.pop %v4091
        %v4093 = vmul.f32 %v4068, 1.442695
        %v4094 = vpow.pop %v4093
        %v4095 = vmul.f32 %v4069, 1.442695
        %v4096 = vpow.pop %v4095
        %v4097 = vmul.f32 %v4070, 1.442695
        %v4098 = vpow.pop %v4097
        %v4099 = vmul.f32 %v4071, 1.442695
        %v4100 = vpow.pop %v4099
        %v4101 = vmul.f32 %v4072, 1.442695
        %v4102 = vpow.pop %v4101
        %v4103 = vmul.f32 %v4073, 1.442695
        %v4104 = vpow.pop %v4103
        %v4105 = vmul.f32 %v4074, 1.442695
        %v4106 = vpow.pop %v4105
        %v4107 = vmul.f32 %v4027, %v4076
        %v4108 = vmul.f32 %v4028, %v4078
        %v4109 = vmul.f32 %v4029, %v4080
        %v4110 = vmul.f32 %v4030, %v4082
        %v4111 = vmul.f32 %v4031, %v4084
        %v4112 = vmul.f32 %v4032, %v4086
        %v4113 = vmul.f32 %v4033, %v4088
        %v4114 = vmul.f32 %v4034, %v4090
        %v4115 = vmul.f32 %v4035, %v4092
        %v4116 = vmul.f32 %v4036, %v4094
        %v4117 = vmul.f32 %v4037, %v4096
        %v4118 = vmul.f32 %v4038, %v4098
        %v4119 = vmul.f32 %v4039, %v4100
        %v4120 = vmul.f32 %v4040, %v4102
        %v4121 = vmul.f32 %v4041, %v4104
        %v4122 = vmul.f32 %v4042, %v4106
        %v4123 = vsub.f32 1.0, %v4107
        %v4124 = vsub.f32 1.0, %v4108
        %v4125 = vsub.f32 1.0, %v4109
        %v4126 = vsub.f32 1.0, %v4110
        %v4127 = vsub.f32 1.0, %v4111
        %v4128 = vsub.f32 1.0, %v4112
        %v4129 = vsub.f32 1.0, %v4113
        %v4130 = vsub.f32 1.0, %v4114
        %v4131 = vsub.f32 1.0, %v4115
        %v4132 = vsub.f32 1.0, %v4116
        %v4133 = vsub.f32 1.0, %v4117
        %v4134 = vsub.f32 1.0, %v4118
        %v4135 = vsub.f32 1.0, %v4119
        %v4136 = vsub.f32 1.0, %v4120
        %v4137 = vsub.f32 1.0, %v4121
        %v4138 = vsub.f32 1.0, %v4122
        %v4139 = vmul.f32 %v3803, %v4123
        %v4140 = vmul.f32 %v3804, %v4124
        %v4141 = vmul.f32 %v3805, %v4125
        %v4142 = vmul.f32 %v3806, %v4126
        %v4143 = vmul.f32 %v3807, %v4127
        %v4144 = vmul.f32 %v3808, %v4128
        %v4145 = vmul.f32 %v3809, %v4129
        %v4146 = vmul.f32 %v3810, %v4130
        %v4147 = vmul.f32 %v3811, %v4131
        %v4148 = vmul.f32 %v3812, %v4132
        %v4149 = vmul.f32 %v3813, %v4133
        %v4150 = vmul.f32 %v3814, %v4134
        %v4151 = vmul.f32 %v3815, %v4135
        %v4152 = vmul.f32 %v3816, %v4136
        %v4153 = vmul.f32 %v3817, %v4137
        %v4154 = vmul.f32 %v3818, %v4138
        %v4155 = vadd.f32 %v4139, 1.0
        %v4156 = vadd.f32 %v4140, 1.0
        %v4157 = vadd.f32 %v4141, 1.0
        %v4158 = vadd.f32 %v4142, 1.0
        %v4159 = vadd.f32 %v4143, 1.0
        %v4160 = vadd.f32 %v4144, 1.0
        %v4161 = vadd.f32 %v4145, 1.0
        %v4162 = vadd.f32 %v4146, 1.0
        %v4163 = vadd.f32 %v4147, 1.0
        %v4164 = vadd.f32 %v4148, 1.0
        %v4165 = vadd.f32 %v4149, 1.0
        %v4166 = vadd.f32 %v4150, 1.0
        %v4167 = vadd.f32 %v4151, 1.0
        %v4168 = vadd.f32 %v4152, 1.0
        %v4169 = vadd.f32 %v4153, 1.0
        %v4170 = vadd.f32 %v4154, 1.0
        %v4171 = vmul.f32 %v3755, %v4155
        %v4172 = vmul.f32 %v3756, %v4156
        %v4173 = vmul.f32 %v3757, %v4157
        %v4174 = vmul.f32 %v3758, %v4158
        %v4175 = vmul.f32 %v3759, %v4159
        %v4176 = vmul.f32 %v3760, %v4160
        %v4177 = vmul.f32 %v3761, %v4161
        %v4178 = vmul.f32 %v3762, %v4162
        %v4179 = vmul.f32 %v3763, %v4163
        %v4180 = vmul.f32 %v3764, %v4164
        %v4181 = vmul.f32 %v3765, %v4165
        %v4182 = vmul.f32 %v3766, %v4166
        %v4183 = vmul.f32 %v3767, %v4167
        %v4184 = vmul.f32 %v3768, %v4168
        %v4185 = vmul.f32 %v3769, %v4169
        %v4186 = vmul.f32 %v3770, %v4170
        %v4187 = vpack.c.bf16 %v4175, %v4171
        %v4188 = vpack.c.bf16 %v4176, %v4172
        %v4189 = vpack.c.bf16 %v4177, %v4173
        %v4190 = vpack.c.bf16 %v4178, %v4174
        %v4191 = vpack.c.bf16 %v4183, %v4179
        %v4192 = vpack.c.bf16 %v4184, %v4180
        %v4193 = vpack.c.bf16 %v4185, %v4181
        %v4194 = vpack.c.bf16 %v4186, %v4182
        %v4195 = vld [vmem:[%s460] sm:$0xf]
        %v4196 = vld [vmem:[%s460 + $0x4] sm:$0xf]
        %v4197 = vld [vmem:[%s460 + $0x8] sm:$0xf]
        %v4198 = vld [vmem:[%s460 + $0xc] sm:$0xf]
        %v4199 = vld [vmem:[%s460 + $0x10] sm:$0xf]
        %v4200 = vld [vmem:[%s460 + $0x14] sm:$0xf]
        %v4201 = vld [vmem:[%s460 + $0x18] sm:$0xf]
        %v4202 = vld [vmem:[%s460 + $0x1c] sm:$0xf]
        %v4203 = vld [vmem:[%s460 + $0x20] sm:$0xf]
        %v4204 = vld [vmem:[%s460 + $0x24] sm:$0xf]
        %v4205 = vld [vmem:[%s460 + $0x28] sm:$0xf]
        %v4206 = vld [vmem:[%s460 + $0x2c] sm:$0xf]
        %v4207 = vld [vmem:[%s460 + $0x30] sm:$0xf]
        %v4208 = vld [vmem:[%s460 + $0x34] sm:$0xf]
        %v4209 = vld [vmem:[%s460 + $0x38] sm:$0xf]
        %v4210 = vld [vmem:[%s460 + $0x3c] sm:$0xf]
        %v4211 = vld [vmem:[%s460 + $0x40] sm:$0xf]
        %v4212 = vld [vmem:[%s460 + $0x44] sm:$0xf]
        %v4213 = vld [vmem:[%s460 + $0x48] sm:$0xf]
        %v4214 = vld [vmem:[%s460 + $0x4c] sm:$0xf]
        %v4215 = vld [vmem:[%s460 + $0x50] sm:$0xf]
        %v4216 = vld [vmem:[%s460 + $0x54] sm:$0xf]
        %v4217 = vld [vmem:[%s460 + $0x58] sm:$0xf]
        %v4218 = vld [vmem:[%s460 + $0x5c] sm:$0xf]
        %v4219 = vld [vmem:[%s460 + $0x60] sm:$0xf]
        %v4220 = vld [vmem:[%s460 + $0x64] sm:$0xf]
        %v4221 = vld [vmem:[%s460 + $0x68] sm:$0xf]
        %v4222 = vld [vmem:[%s460 + $0x6c] sm:$0xf]
        %v4223 = vld [vmem:[%s460 + $0x70] sm:$0xf]
        %v4224 = vld [vmem:[%s460 + $0x74] sm:$0xf]
        %v4225 = vld [vmem:[%s460 + $0x78] sm:$0xf]
        %v4226 = vld [vmem:[%s460 + $0x7c] sm:$0xf]
        %v4227 = vld [vmem:[%s460 + $0x80] sm:$0xf]
        %v4228 = vld [vmem:[%s460 + $0x84] sm:$0xf]
        %v4229 = vld [vmem:[%s460 + $0x88] sm:$0xf]
        %v4230 = vld [vmem:[%s460 + $0x8c] sm:$0xf]
        %v4231 = vld [vmem:[%s460 + $0x90] sm:$0xf]
        %v4232 = vld [vmem:[%s460 + $0x94] sm:$0xf]
        %v4233 = vld [vmem:[%s460 + $0x98] sm:$0xf]
        %v4234 = vld [vmem:[%s460 + $0x9c] sm:$0xf]
        %v4235 = vld [vmem:[%s460 + $0xa0] sm:$0xf]
        %v4236 = vld [vmem:[%s460 + $0xa4] sm:$0xf]
        %v4237 = vld [vmem:[%s460 + $0xa8] sm:$0xf]
        %v4238 = vld [vmem:[%s460 + $0xac] sm:$0xf]
        %v4239 = vld [vmem:[%s460 + $0xb0] sm:$0xf]
        %v4240 = vld [vmem:[%s460 + $0xb4] sm:$0xf]
        %v4241 = vld [vmem:[%s460 + $0xb8] sm:$0xf]
        %v4242 = vld [vmem:[%s460 + $0xbc] sm:$0xf]
        %v4243 = vld [vmem:[%s460 + $0xc0] sm:$0xf]
        %v4244 = vld [vmem:[%s460 + $0xc4] sm:$0xf]
        %v4245 = vld [vmem:[%s460 + $0xc8] sm:$0xf]
        %v4246 = vld [vmem:[%s460 + $0xcc] sm:$0xf]
        %v4247 = vld [vmem:[%s460 + $0xd0] sm:$0xf]
        %v4248 = vld [vmem:[%s460 + $0xd4] sm:$0xf]
        %v4249 = vld [vmem:[%s460 + $0xd8] sm:$0xf]
        %v4250 = vld [vmem:[%s460 + $0xdc] sm:$0xf]
        %v4251 = vld [vmem:[%s460 + $0xe0] sm:$0xf]
        %v4252 = vld [vmem:[%s460 + $0xe4] sm:$0xf]
        %v4253 = vld [vmem:[%s460 + $0xe8] sm:$0xf]
        %v4254 = vld [vmem:[%s460 + $0xec] sm:$0xf]
        %v4255 = vld [vmem:[%s460 + $0xf0] sm:$0xf]
        %v4256 = vld [vmem:[%s460 + $0xf4] sm:$0xf]
        %v4257 = vld [vmem:[%s460 + $0xf8] sm:$0xf]
        %v4258 = vld [vmem:[%s460 + $0xfc] sm:$0xf]
        %v4259 = vlaneseq
        %v4260 = vshrl.u32 %v4259, 7
        %v4261 = vsub.s32 4, %v4260
        %v4262 = vrot.slane %v525, %v4261
        %v4327 = vunpack.c.l.b16 %v4195
        %v4328 = vunpack.c.l.b16 %v4196
        %v4329 = vunpack.c.l.b16 %v4197
        %v4330 = vunpack.c.l.b16 %v4198
        %v4331 = vunpack.c.l.b16 %v4199
        %v4332 = vunpack.c.l.b16 %v4200
        %v4333 = vunpack.c.l.b16 %v4201
        %v4334 = vunpack.c.l.b16 %v4202
        %v4335 = vunpack.c.l.b16 %v4203
        %v4336 = vunpack.c.l.b16 %v4204
        %v4337 = vunpack.c.l.b16 %v4205
        %v4338 = vunpack.c.l.b16 %v4206
        %v4339 = vunpack.c.l.b16 %v4207
        %v4340 = vunpack.c.l.b16 %v4208
        %v4341 = vunpack.c.l.b16 %v4209
        %v4342 = vunpack.c.l.b16 %v4210
        %v4343 = vunpack.c.l.b16 %v4211
        %v4344 = vunpack.c.l.b16 %v4212
        %v4345 = vunpack.c.l.b16 %v4213
        %v4346 = vunpack.c.l.b16 %v4214
        %v4347 = vunpack.c.l.b16 %v4215
        %v4348 = vunpack.c.l.b16 %v4216
        %v4349 = vunpack.c.l.b16 %v4217
        %v4350 = vunpack.c.l.b16 %v4218
        %v4351 = vunpack.c.l.b16 %v4219
        %v4352 = vunpack.c.l.b16 %v4220
        %v4353 = vunpack.c.l.b16 %v4221
        %v4354 = vunpack.c.l.b16 %v4222
        %v4355 = vunpack.c.l.b16 %v4223
        %v4356 = vunpack.c.l.b16 %v4224
        %v4357 = vunpack.c.l.b16 %v4225
        %v4358 = vunpack.c.l.b16 %v4226
        %v4359 = vunpack.c.l.b16 %v4227
        %v4360 = vunpack.c.l.b16 %v4228
        %v4361 = vunpack.c.l.b16 %v4229
        %v4362 = vunpack.c.l.b16 %v4230
        %v4363 = vunpack.c.l.b16 %v4231
        %v4364 = vunpack.c.l.b16 %v4232
        %v4365 = vunpack.c.l.b16 %v4233
        %v4366 = vunpack.c.l.b16 %v4234
        %v4367 = vunpack.c.l.b16 %v4235
        %v4368 = vunpack.c.l.b16 %v4236
        %v4369 = vunpack.c.l.b16 %v4237
        %v4370 = vunpack.c.l.b16 %v4238
        %v4371 = vunpack.c.l.b16 %v4239
        %v4372 = vunpack.c.l.b16 %v4240
        %v4373 = vunpack.c.l.b16 %v4241
        %v4374 = vunpack.c.l.b16 %v4242
        %v4375 = vunpack.c.l.b16 %v4243
        %v4376 = vunpack.c.l.b16 %v4244
        %v4377 = vunpack.c.l.b16 %v4245
        %v4378 = vunpack.c.l.b16 %v4246
        %v4379 = vunpack.c.l.b16 %v4247
        %v4380 = vunpack.c.l.b16 %v4248
        %v4381 = vunpack.c.l.b16 %v4249
        %v4382 = vunpack.c.l.b16 %v4250
        %v4383 = vunpack.c.l.b16 %v4251
        %v4384 = vunpack.c.l.b16 %v4252
        %v4385 = vunpack.c.l.b16 %v4253
        %v4386 = vunpack.c.l.b16 %v4254
        %v4387 = vunpack.c.l.b16 %v4255
        %v4388 = vunpack.c.l.b16 %v4256
        %v4389 = vunpack.c.l.b16 %v4257
        %v4390 = vunpack.c.l.b16 %v4258
        %v4391 = vpack.c.b16 %v4328, %v4327
        %v4392 = vpack.c.b16 %v4330, %v4329
        %v4393 = vpack.c.b16 %v4332, %v4331
        %v4394 = vpack.c.b16 %v4334, %v4333
        %v4395 = vpack.c.b16 %v4336, %v4335
        %v4396 = vpack.c.b16 %v4338, %v4337
        %v4397 = vpack.c.b16 %v4340, %v4339
        %v4398 = vpack.c.b16 %v4342, %v4341
        %v4399 = vpack.c.b16 %v4344, %v4343
        %v4400 = vpack.c.b16 %v4346, %v4345
        %v4401 = vpack.c.b16 %v4348, %v4347
        %v4402 = vpack.c.b16 %v4350, %v4349
        %v4403 = vpack.c.b16 %v4352, %v4351
        %v4404 = vpack.c.b16 %v4354, %v4353
        %v4405 = vpack.c.b16 %v4356, %v4355
        %v4406 = vpack.c.b16 %v4358, %v4357
        %v4407 = vpack.c.b16 %v4360, %v4359
        %v4408 = vpack.c.b16 %v4362, %v4361
        %v4409 = vpack.c.b16 %v4364, %v4363
        %v4410 = vpack.c.b16 %v4366, %v4365
        %v4411 = vpack.c.b16 %v4368, %v4367
        %v4412 = vpack.c.b16 %v4370, %v4369
        %v4413 = vpack.c.b16 %v4372, %v4371
        %v4414 = vpack.c.b16 %v4374, %v4373
        %v4415 = vpack.c.b16 %v4376, %v4375
        %v4416 = vpack.c.b16 %v4378, %v4377
        %v4417 = vpack.c.b16 %v4380, %v4379
        %v4418 = vpack.c.b16 %v4382, %v4381
        %v4419 = vpack.c.b16 %v4384, %v4383
        %v4420 = vpack.c.b16 %v4386, %v4385
        %v4421 = vpack.c.b16 %v4388, %v4387
        %v4422 = vpack.c.b16 %v4390, %v4389
        %4455 = vmatprep.subr.bf16.mxu0 0
        %4456 = vmatpush1.bf16.msra.mxu0 %v4391
        %4457 = vmatprep.subr.bf16.mxu0 0
        %4458 = vmatpush1.bf16.msra.mxu0 %v4392
        %4459 = vmatprep.subr.bf16.mxu0 0
        %4460 = vmatpush1.bf16.msra.mxu0 %v4393
        %4461 = vmatprep.subr.bf16.mxu0 0
        %4462 = vmatpush1.bf16.msra.mxu0 %v4394
        %4463 = vmatprep.subr.bf16.mxu0 0
        %4464 = vmatpush1.bf16.msra.mxu0 %v4395
        %4465 = vmatprep.subr.bf16.mxu0 0
        %4466 = vmatpush1.bf16.msra.mxu0 %v4396
        %4467 = vmatprep.subr.bf16.mxu0 0
        %4468 = vmatpush1.bf16.msra.mxu0 %v4397
        %4469 = vmatprep.subr.bf16.mxu0 0
        %4470 = vmatpush1.bf16.msra.mxu0 %v4398
        %4471 = vmatprep.subr.bf16.mxu0 0
        %4472 = vmatpush1.bf16.msra.mxu0 %v4399
        %4473 = vmatprep.subr.bf16.mxu0 0
        %4474 = vmatpush1.bf16.msra.mxu0 %v4400
        %4475 = vmatprep.subr.bf16.mxu0 0
        %4476 = vmatpush1.bf16.msra.mxu0 %v4401
        %4477 = vmatprep.subr.bf16.mxu0 0
        %4478 = vmatpush1.bf16.msra.mxu0 %v4402
        %4479 = vmatprep.subr.bf16.mxu0 0
        %4480 = vmatpush1.bf16.msra.mxu0 %v4403
        %4481 = vmatprep.subr.bf16.mxu0 0
        %4482 = vmatpush1.bf16.msra.mxu0 %v4404
        %4483 = vmatprep.subr.bf16.mxu0 0
        %4484 = vmatpush1.bf16.msra.mxu0 %v4405
        %4485 = vmatprep.subr.bf16.mxu0 0
        %4486 = vmatpush1.bf16.msra.mxu0 %v4406
        %4487 = vmatprep.mubr.bf16.mxu0 %v4188
        %4488 = vmatmul.mubr.bf16.gmra.mrb[0].mxu0 %v4187
        %v4489 = vpop.f32.mrb[0].mxu0
        %v4490 = vadd.f32 %v4262, %v4489
        %v4491 = vpop.f32.mrb[0].mxu0
        %v4492 = vpop.f32.mrb[0].mxu0
        %v4493 = vadd.f32 %v4262, %v4492
        %v4494 = vpop.f32.mrb[0].mxu0
        %4495 = vmatprep.mubr.bf16.mxu0 %v4192
        %4496 = vmatmul.mubr.bf16.gmra.mrb[0].mxu0 %v4191
        %v4497 = vpop.f32.mrb[0].mxu0
        %v4498 = vadd.f32 %v4262, %v4497
        %v4499 = vpop.f32.mrb[0].mxu0
        %v4500 = vpop.f32.mrb[0].mxu0
        %v4501 = vadd.f32 %v4262, %v4500
        %v4502 = vpop.f32.mrb[0].mxu0
        %4503 = vdwg.mxu0
        %4504 = vmatprep.subr.bf16.mxu0 0
        %4505 = vmatpush1.bf16.msra.mxu0 %v4407
        %4506 = vmatprep.subr.bf16.mxu0 0
        %4507 = vmatpush1.bf16.msra.mxu0 %v4408
        %4508 = vmatprep.subr.bf16.mxu0 0
        %4509 = vmatpush1.bf16.msra.mxu0 %v4409
        %4510 = vmatprep.subr.bf16.mxu0 0
        %4511 = vmatpush1.bf16.msra.mxu0 %v4410
        %4512 = vmatprep.subr.bf16.mxu0 0
        %4513 = vmatpush1.bf16.msra.mxu0 %v4411
        %4514 = vmatprep.subr.bf16.mxu0 0
        %4515 = vmatpush1.bf16.msra.mxu0 %v4412
        %4516 = vmatprep.subr.bf16.mxu0 0
        %4517 = vmatpush1.bf16.msra.mxu0 %v4413
        %4518 = vmatprep.subr.bf16.mxu0 0
        %4519 = vmatpush1.bf16.msra.mxu0 %v4414
        %4520 = vmatprep.subr.bf16.mxu0 0
        %4521 = vmatpush1.bf16.msra.mxu0 %v4415
        %4522 = vmatprep.subr.bf16.mxu0 0
        %4523 = vmatpush1.bf16.msra.mxu0 %v4416
        %4524 = vmatprep.subr.bf16.mxu0 0
        %4525 = vmatpush1.bf16.msra.mxu0 %v4417
        %4526 = vmatprep.subr.bf16.mxu0 0
        %4527 = vmatpush1.bf16.msra.mxu0 %v4418
        %4528 = vmatprep.subr.bf16.mxu0 0
        %4529 = vmatpush1.bf16.msra.mxu0 %v4419
        %4530 = vmatprep.subr.bf16.mxu0 0
        %4531 = vmatpush1.bf16.msra.mxu0 %v4420
        %4532 = vmatprep.subr.bf16.mxu0 0
        %4533 = vmatpush1.bf16.msra.mxu0 %v4421
        %4534 = vmatprep.subr.bf16.mxu0 0
        %4535 = vmatpush1.bf16.msra.mxu0 %v4422
        %4536 = vmatprep.mubr.bf16.mxu0 %v4190
        %4537 = vmatmul.mubr.bf16.gmra.mrb[0].mxu0 %v4189
        %v4538 = vpop.f32.mrb[0].mxu0
        %v4539 = vadd.f32 %v4490, %v4538
        %v4540 = vpop.f32.mrb[0].mxu0
        %v4541 = vpop.f32.mrb[0].mxu0
        %v4542 = vadd.f32 %v4493, %v4541
        %v4543 = vpop.f32.mrb[0].mxu0
        %4544 = vmatprep.mubr.bf16.mxu0 %v4194
        %4545 = vmatmul.mubr.bf16.gmra.mrb[0].mxu0 %v4193
        %v4546 = vpop.f32.mrb[0].mxu0
        %v4547 = vadd.f32 %v4498, %v4546
        %v4548 = vpop.f32.mrb[0].mxu0
        %v4549 = vpop.f32.mrb[0].mxu0
        %v4550 = vadd.f32 %v4501, %v4549
        %v4551 = vpop.f32.mrb[0].mxu0
        %4552 = vdwg.mxu0
        %v4553 = vadd.f32 %v3375, %v4539
        %v4554 = vadd.f32 %v3376, %v4542
        %v4555 = vadd.f32 %v3377, %v4547
        %v4556 = vadd.f32 %v3378, %v4550
        %4557 = vst [vmem:[#allocation16] sm:$0xff] %v4553
        %4558 = vst [vmem:[#allocation16 + $0x8] sm:$0xff] %v4554
        %4559 = vst [vmem:[#allocation16 + $0x10] sm:$0xff] %v4555
        %4560 = vst [vmem:[#allocation16 + $0x18] sm:$0xff] %v4556
        // Predicated region
        $region89: #{tpu_custom_call.1} parent=51 // pred_check
          %p4561 = pneg %p237
        $region90: #{tpu_custom_call.1} parent=51 // pred_check_branch
          %4563 = sbr.rel (%p4561) target = $region92
        $region91: #{tpu_custom_call.1} parent=51 // pred_region
          %s4565 = ssub.s32 512, 512
          %4566 = vsyncadd [#allocation4], %s4565
          %s4567 = sshll.u32 [#allocation16], 4
          %s4568 = int_to_ptr.vmem [resolvable:$true] %s4567
          %4573 = dma.vmem_to_hbm [thread:$0]  %s4568, 512, %s8, [#allocation4], 128, 128, 8
        $region92: #{tpu_custom_call.1} parent=51 // pred_fallthru
          _
        // Predicated region
        $region93: #{tpu_custom_call.1} parent=51 // pred_check
          %p4574 = pneg %p237
        $region94: #{tpu_custom_call.1} parent=51 // pred_check_branch
          %4576 = sbr.rel (%p4574) target = $region96
        $region95: #{tpu_custom_call.1} parent=51 // pred_region
          %4577 = dma.done [#allocation4], 512
        $region96: #{tpu_custom_call.1} parent=51 // pred_fallthru
          _
      $region52: #{tpu_custom_call.1} parent=5 // pred_fallthru
        _
      %p4578 = scmp.le.s32.totalorder 2, %s26
      // Predicated region
      $region97: #{tpu_custom_call.1} parent=5 // pred_check
        %p4579 = pneg %p4578
      $region98: #{tpu_custom_call.1} parent=5 // pred_check_branch
        %4581 = sbr.rel (%p4579) target = $region100
      $region99: #{tpu_custom_call.1} parent=5 // pred_region
        %s4582 = ssub.s32 %s26, 2
      $region100: #{tpu_custom_call.1} parent=5 // pred_fallthru
        _
    $region6: #{tpu_custom_call.1} parent=1 // loop_footer
      %s30 = sadd.s32 1, %s26
    $region7: #{tpu_custom_call.1} parent=1 // loop_footer_branch
      %25 = sbr.rel target = $region3
    $region8: #{tpu_custom_call.1} parent=1 // loop_exit
      _
    %4583 = vsyncpa [#allocation3], 1
    %s4584 = scalar_lea.sflag [#allocation3], 1
    %4585 = vsyncpa %s4584, 1
    %4586 = vsyncpa [#allocation6], 1
    %4587 = vsyncpa [#allocation9], 1
    %s4588 = scalar_lea.sflag [#allocation9], 1
    %4589 = vsyncpa %s4588, 1
    %4590 = vsyncpa [#allocation12], 1
    %s4591 = scalar_lea.sflag [#allocation12], 1
    %4592 = vsyncpa %s4591, 1
    %4593 = vsyncpa [#allocation15], 1
    %s4594 = scalar_lea.sflag [#allocation15], 1
    %4595 = vsyncpa %s4594, 1
    %4596 = vsyncpa [#allocation4], 1
    %s4597 = scalar_lea.sflag [#allocation4], 1
    %4598 = vsyncpa %s4597, 1

</llo_original>
